<compile_context>
chip_gen: v5e
topology: v5e:2x2
jax: 0.10.0
libtpu: 0.0.40
codegen_flags: <defaults>
</compile_context>

<pallas_src>
from functools import partial

import numpy as np
import jax
import jax.numpy as jnp
from jax.experimental import pallas as pl
from jax.experimental.pallas import tpu as pltpu


# ---------------- helpers ----------------

def _round_up(x, m):
    return ((x + m - 1) // m) * m


def _pick_row_tile(H, target=8):
    """Largest divisor of H that is <= target (falls back to H)."""
    if H <= target:
        return H
    for t in range(target, 0, -1):
        if H % t == 0:
            return t
    return H


# ---------------- kernel 1: proj_in (1x1 conv, two lane-dense outputs) ----------------

def _proj_in_kernel(x_ref, wa_ref, ba_ref, wb_ref, bb_ref, pwa_ref, abc_ref,
                    *, mm_dtype):
    x = x_ref[...].astype(mm_dtype)
    pwa = jnp.dot(x, wa_ref[...].astype(mm_dtype),
                  preferred_element_type=jnp.float32) + ba_ref[...]
    abc = jnp.dot(x, wb_ref[...].astype(mm_dtype),
                  preferred_element_type=jnp.float32) + bb_ref[...]
    pwa_ref[...] = pwa.astype(pwa_ref.dtype)
    abc_ref[...] = abc.astype(abc_ref.dtype)


def _proj_in(x, w_pwa, b_pwa, w_abc, b_abc, *, tm, mm_dtype):
    M, C = x.shape
    d0p = w_pwa.shape[1]
    Cp = w_abc.shape[1]
    tm = min(tm, M)
    grid = (pl.cdiv(M, tm),)          # non-divisible M handled by block masking
    return pl.pallas_call(
        partial(_proj_in_kernel, mm_dtype=mm_dtype),
        out_shape=(jax.ShapeDtypeStruct((M, d0p), x.dtype),
                   jax.ShapeDtypeStruct((M, Cp), x.dtype)),
        grid=grid,
        in_specs=[pl.BlockSpec((tm, C), lambda i: (i, 0)),
                  pl.BlockSpec((C, d0p), lambda i: (0, 0)),
                  pl.BlockSpec((1, d0p), lambda i: (0, 0)),
                  pl.BlockSpec((C, Cp), lambda i: (0, 0)),
                  pl.BlockSpec((1, Cp), lambda i: (0, 0))],
        out_specs=(pl.BlockSpec((tm, d0p), lambda i: (i, 0)),
                   pl.BlockSpec((tm, Cp), lambda i: (i, 0))),
        compiler_params=pltpu.CompilerParams(dimension_semantics=("parallel",)),
    )(x, w_pwa, b_pwa, w_abc, b_abc)


# ---------------- kernel 2: depthwise 7x7 conv (padded channels, H/C tiled) ----------------

def _dwconv7_kernel(x_hbm, w_ref, b_ref, o_ref, xbuf, sbuf, sem,
                    *, th, W, Wp, Cc):
    # x_hbm : (B, H+6, W+6, Cp) zero-padded input, left in HBM (pl.ANY)
    # w_ref : (49, Cc)  taps for this channel block
    # b_ref : (1, Cc)
    # o_ref : (th, W, Cc) output tile (leading batch dim squeezed)
    # xbuf  : (th+6, W+6, Cc) VMEM window scratch
    # sbuf  : (7*(th+6), W, Cc) VMEM: 7 column-shifted, aligned copies
    b = pl.program_id(0)
    jh = pl.program_id(1)
    jc = pl.program_id(2)
    rows = th + 6
    row0 = pl.multiple_of(jh * th, th)
    c0 = pl.multiple_of(jc * Cc, Cc)

    # 1) one HBM -> VMEM DMA for the halo window of this (batch, row, chan) tile
    cp = pltpu.make_async_copy(
        x_hbm.at[b, pl.ds(row0, rows), pl.ds(0, Wp), pl.ds(c0, Cc)],
        xbuf, sem)
    cp.start()
    cp.wait()

    # 2) hoist the kw shifts out of the tap loop: one sublane-rotate per
    #    (input row, kw) instead of per tap; every access in the hot loop below
    #    is then a fully aligned (offset-0) load.
    for kw in range(7):
        sbuf[kw * rows:(kw + 1) * rows] = xbuf[:, kw:kw + W, :]

    w_all = w_ref[...].astype(jnp.float32)    # (49, Cc), held in vregs
    bias = b_ref[...].astype(jnp.float32)     # (1, Cc)

    # 3) 49-tap MAC with a per-row accumulator (bounded live range: the
    #    accumulator is only (W, Cc) = a handful of vregs).
    def row_body(h, carry):
        acc = jnp.zeros((W, Cc), jnp.float32)
        for kh in range(7):
            src = h + kh
            for kw in range(7):
                tap = sbuf[kw * rows + src].astype(jnp.float32)       # (W, Cc)
                acc = acc + tap * w_all[kh * 7 + kw:kh * 7 + kw + 1, :]
        o_ref[h] = (acc + bias).astype(o_ref.dtype)
        return carry

    jax.lax.fori_loop(0, th, row_body, 0)


def _dwconv7(x_pad, w, b, *, H, W, th, Cc=128):
    # x_pad: (B, H+6, W+6, Cp)  zero-padded NHWC, Cp a multiple of 128
    B = x_pad.shape[0]
    Wp = x_pad.shape[2]
    Cp = x_pad.shape[3]
    nH = H // th
    nC = Cp // Cc
    return pl.pallas_call(
        partial(_dwconv7_kernel, th=th, W=W, Wp=Wp, Cc=Cc),
        out_shape=jax.ShapeDtypeStruct((B, H, W, Cp), x_pad.dtype),
        grid=(B, nH, nC),
        in_specs=[pl.BlockSpec(memory_space=pl.ANY),                 # manual DMA
                  pl.BlockSpec((49, Cc), lambda b, jh, jc: (0, jc)),
                  pl.BlockSpec((1, Cc), lambda b, jh, jc: (0, jc))],
        out_specs=pl.BlockSpec((None, th, W, Cc),
                               lambda b, jh, jc: (b, jh, 0, jc)),
        scratch_shapes=[pltpu.VMEM((th + 6, Wp, Cc), x_pad.dtype),
                        pltpu.VMEM((7 * (th + 6), W, Cc), x_pad.dtype),
                        pltpu.SemaphoreType.DMA(())],
        compiler_params=pltpu.CompilerParams(
            dimension_semantics=("parallel", "parallel", "parallel")),
    )(x_pad, w, b)


# ---------------- kernel 3: fused gating chain + proj_out ----------------

def _gating_kernel(pwa_ref, dw_ref, *refs, dims, offs, n_pw, mm_dtype):
    # refs = w_0, b_0, ..., w_{n_pw-1}, b_{n_pw-1}, w_out, b_out, o_ref
    o_ref = refs[-1]
    wrefs = refs[:-1]
    d0 = dims[0]
    dw = dw_ref[...].astype(jnp.float32)
    # channel-group splits happen on the VMEM-resident tile (no HBM slicing)
    y = pwa_ref[:, :d0].astype(jnp.float32) * dw[:, :d0]
    for i in range(n_pw):
        w = wrefs[2 * i][...].astype(mm_dtype)
        bb = wrefs[2 * i + 1][...]
        y = jnp.dot(y.astype(mm_dtype), w,
                    preferred_element_type=jnp.float32) + bb
        y = y * dw[:, offs[i + 1]:offs[i + 2]]
    w_out = wrefs[2 * n_pw][...].astype(mm_dtype)
    b_out = wrefs[2 * n_pw + 1][...]
    out = jnp.dot(y.astype(mm_dtype), w_out,
                  preferred_element_type=jnp.float32) + b_out
    o_ref[...] = out.astype(o_ref.dtype)


def _gating_chain(pwa, dw, pws_w, pws_b, w_out, b_out, dims, *, tm, mm_dtype):
    M, d0p = pwa.shape
    Cp = dw.shape[1]
    dim_out = w_out.shape[1]
    n_pw = len(pws_w)
    offs = [0]
    for d in dims:
        offs.append(offs[-1] + int(d))
    tm = min(tm, M)
    grid = (pl.cdiv(M, tm),)

    weight_args = []
    in_specs = [pl.BlockSpec((tm, d0p), lambda i: (i, 0)),
                pl.BlockSpec((tm, Cp), lambda i: (i, 0))]
    for i in range(n_pw):
        weight_args += [pws_w[i], pws_b[i]]
        in_specs += [pl.BlockSpec(pws_w[i].shape, lambda i: (0, 0)),
                     pl.BlockSpec(pws_b[i].shape, lambda i: (0, 0))]
    weight_args += [w_out, b_out]
    in_specs += [pl.BlockSpec(w_out.shape, lambda i: (0, 0)),
                 pl.BlockSpec(b_out.shape, lambda i: (0, 0))]

    return pl.pallas_call(
        partial(_gating_kernel, dims=tuple(int(d) for d in dims),
                offs=tuple(offs), n_pw=n_pw, mm_dtype=mm_dtype),
        out_shape=jax.ShapeDtypeStruct((M, dim_out), pwa.dtype),
        grid=grid,
        in_specs=in_specs,
        out_specs=pl.BlockSpec((tm, dim_out), lambda i: (i, 0)),
        compiler_params=pltpu.CompilerParams(dimension_semantics=("parallel",)),
    )(pwa, dw, *weight_args)


# ---------------- parameter init (deterministic, synthetic) ----------------

def _init_linear(key, cin, cout, scale=0.05):
    kw, kb = jax.random.split(key)
    w = jax.random.normal(kw, (cin, cout), jnp.float32) * scale
    b = jax.random.normal(kb, (cout,), jnp.float32) * scale
    return w, b


def init_gnconv_params(key, dim, order=5):
    dims = [dim // 2 ** i for i in range(order)]
    dims.reverse()                                   # [dim/16, ..., dim]
    csum = sum(dims)
    ks = jax.random.split(key, order + 3)
    params = {}
    params['proj_in'] = _init_linear(ks[0], dim, 2 * dim)
    kw, kb = jax.random.split(ks[1])
    params['dw_w'] = jax.random.normal(kw, (7, 7, csum), jnp.float32) * 0.05
    params['dw_b'] = jax.random.normal(kb, (csum,), jnp.float32) * 0.05
    params['pws'] = [_init_linear(ks[2 + i], dims[i], dims[i + 1])
                     for i in range(order - 1)]
    params['proj_out'] = _init_linear(ks[order + 1], dim, dim)
    return params, dims


def pack_gnconv_params(params, dims, scale=1.0):
    """One-time repacking: split + zero-pad weight columns to 128-lane layouts,
    fold the scalar `scale` into the depthwise weights/bias (conv is linear)."""
    d0 = int(dims[0])
    csum = int(sum(dims))
    d0p = _round_up(d0, 128)
    Cp = _round_up(csum, 128)

    def padc(a, n):
        return jnp.pad(a, [(0, 0)] * (a.ndim - 1) + [(0, n - a.shape[-1])])

    w_in, b_in = params['proj_in']
    packed = {
        'w_pwa': padc(w_in[:, :d0], d0p),
        'b_pwa': padc(b_in[:d0], d0p).reshape(1, d0p),
        'w_abc': padc(w_in[:, d0:], Cp),
        'b_abc': padc(b_in[d0:], Cp).reshape(1, Cp),
        'dw_w': padc((params['dw_w'] * scale).reshape(49, csum), Cp),
        'dw_b': padc(params['dw_b'] * scale, Cp).reshape(1, Cp),
        'pws_w': [w for (w, b) in params['pws']],
        'pws_b': [b.reshape(1, -1) for (w, b) in params['pws']],
        'w_out': params['proj_out'][0],
        'b_out': params['proj_out'][1].reshape(1, -1),
    }
    return packed


# ---------------- gnconv forward (Pallas) ----------------

@partial(jax.jit, static_argnames=("dims", "tm", "mm_dtype"))
def gnconv_forward(x_nchw, packed, dims, tm=512, mm_dtype=jnp.float32):
    B, C, H, W = x_nchw.shape
    M = B * H * W
    Cp = packed['w_abc'].shape[1]

    x = jnp.transpose(x_nchw, (0, 2, 3, 1)).reshape(M, C)     # NCHW -> (M, C)

    # 1) proj_in : two lane-dense outputs, no post-hoc column slicing
    pwa, abc = _proj_in(x, packed['w_pwa'], packed['b_pwa'],
                        packed['w_abc'], packed['b_abc'],
                        tm=tm, mm_dtype=mm_dtype)

    # 2) depthwise 7x7 (scale already folded into the packed weights/bias)
    abc_img = abc.reshape(B, H, W, Cp)
    abc_pad = jnp.pad(abc_img, ((0, 0), (3, 3), (3, 3), (0, 0)))
    th = _pick_row_tile(H)
    dw = _dwconv7(abc_pad, packed['dw_w'], packed['dw_b'], H=H, W=W, th=th)
    dwf = dw.reshape(M, Cp)

    # 3) fused gating chain + proj_out (all intermediates stay in VMEM)
    y = _gating_chain(pwa, dwf, packed['pws_w'], packed['pws_b'],
                      packed['w_out'], packed['b_out'], dims,
                      tm=tm, mm_dtype=mm_dtype)

    return jnp.transpose(y.reshape(B, H, W, C), (0, 3, 1, 2))  # back to NCHW


# ---------------- pure-JAX reference (for correctness check) ----------------

def gnconv_reference(x_nchw, params, dims, scale=1.0):
    order = len(dims)
    B, C, H, W = x_nchw.shape
    csum = sum(dims)
    x = jnp.transpose(x_nchw, (0, 2, 3, 1))
    w_in, b_in = params['proj_in']
    fused = jnp.einsum('bhwc,cd->bhwd', x, w_in) + b_in
    pwa = fused[..., :dims[0]]
    abc = fused[..., dims[0]:]
    abc_p = jnp.pad(abc, ((0, 0), (3, 3), (3, 3), (0, 0)))
    dw = jnp.zeros((B, H, W, csum), jnp.float32)
    for kh in range(7):
        for kw in range(7):
            dw = dw + abc_p[:, kh:kh + H, kw:kw + W, :] * params['dw_w'][kh, kw, :]
    dw = (dw + params['dw_b']) * scale
    offs = np.cumsum([0] + list(dims))
    dw_list = [dw[..., int(offs[i]):int(offs[i + 1])] for i in range(order)]
    y = pwa * dw_list[0]
    for i in range(order - 1):
        w_i, b_i = params['pws'][i]
        y = (jnp.einsum('bhwc,cd->bhwd', y, w_i) + b_i) * dw_list[i + 1]
    w_out, b_out = params['proj_out']
    y = jnp.einsum('bhwc,cd->bhwd', y, w_out) + b_out
    return jnp.transpose(y, (0, 3, 1, 2))


if __name__ == "__main__":
    key = jax.random.PRNGKey(0)
    kx, kp = jax.random.split(key)

    dim, order = 32, 5          # dims = [2, 4, 8, 16, 32], sum = 62 -> padded 128
    B, H, W = 2, 16, 16

    params, dims = init_gnconv_params(kp, dim, order)
    x = jax.random.normal(kx, (B, dim, H, W), jnp.float32)

    packed = pack_gnconv_params(params, dims, scale=1.0)

    ref = gnconv_reference(x, params, dims, scale=1.0)
    ref = jax.block_until_ready(ref)

    # f32 MXU path: tight check against the pure-JAX reference
    out = gnconv_forward(x, packed, dims=tuple(dims))
    out = jax.block_until_ready(out)
    assert out.shape == (B, dim, H, W)
    np.testing.assert_allclose(np.asarray(out), np.asarray(ref),
                               atol=2e-3, rtol=2e-3)

    # bf16-operand / f32-accumulate MXU path (production option): loose check
    out_bf16 = gnconv_forward(x, packed, dims=tuple(dims),
                              mm_dtype=jnp.bfloat16)
    out_bf16 = jax.block_until_ready(out_bf16)
    np.testing.assert_allclose(np.asarray(out_bf16), np.asarray(ref),
                               atol=2e-2, rtol=2e-2)

    print("KERNEL_OK")
</pallas_src>

<mosaic_0001>
module attributes {stable_mosaic.version = 11 : i64} {
  func.func @_gating_kernel(%arg0: i32, %arg1: memref<512x128xf32, #tpu.memory_space<vmem>>, %arg2: memref<512x128xf32, #tpu.memory_space<vmem>>, %arg3: memref<2x4xf32, #tpu.memory_space<vmem>>, %arg4: memref<1x4xf32, #tpu.memory_space<vmem>>, %arg5: memref<4x8xf32, #tpu.memory_space<vmem>>, %arg6: memref<1x8xf32, #tpu.memory_space<vmem>>, %arg7: memref<8x16xf32, #tpu.memory_space<vmem>>, %arg8: memref<1x16xf32, #tpu.memory_space<vmem>>, %arg9: memref<16x32xf32, #tpu.memory_space<vmem>>, %arg10: memref<1x32xf32, #tpu.memory_space<vmem>>, %arg11: memref<32x32xf32, #tpu.memory_space<vmem>>, %arg12: memref<1x32xf32, #tpu.memory_space<vmem>>, %arg13: memref<512x32xf32, #tpu.memory_space<vmem>>) attributes {dimension_semantics = [#tpu.dimension_semantics<parallel>], iteration_bounds = array<i64: 1>, scalar_prefetch = 0 : i64, scratch_operands = 0 : i64, tpu.core_type = #tpu.core_type<tc>, window_params = [{transform_indices = @transform_0, window_bounds = array<i64: 512, 128>}, {transform_indices = @transform_1, window_bounds = array<i64: 512, 128>}, {pipeline_mode = #tpu.pipeline_mode<synchronous>, transform_indices = @transform_2, window_bounds = array<i64: 2, 4>}, {pipeline_mode = #tpu.pipeline_mode<synchronous>, transform_indices = @transform_3, window_bounds = array<i64: 1, 4>}, {pipeline_mode = #tpu.pipeline_mode<synchronous>, transform_indices = @transform_4, window_bounds = array<i64: 4, 8>}, {pipeline_mode = #tpu.pipeline_mode<synchronous>, transform_indices = @transform_5, window_bounds = array<i64: 1, 8>}, {pipeline_mode = #tpu.pipeline_mode<synchronous>, transform_indices = @transform_6, window_bounds = array<i64: 8, 16>}, {pipeline_mode = #tpu.pipeline_mode<synchronous>, transform_indices = @transform_7, window_bounds = array<i64: 1, 16>}, {pipeline_mode = #tpu.pipeline_mode<synchronous>, transform_indices = @transform_8, window_bounds = array<i64: 16, 32>}, {pipeline_mode = #tpu.pipeline_mode<synchronous>, transform_indices = @transform_9, window_bounds = array<i64: 1, 32>}, {pipeline_mode = #tpu.pipeline_mode<synchronous>, transform_indices = @transform_10, window_bounds = array<i64: 32, 32>}, {pipeline_mode = #tpu.pipeline_mode<synchronous>, transform_indices = @transform_11, window_bounds = array<i64: 1, 32>}, {transform_indices = @transform_12, window_bounds = array<i64: 512, 32>}]} {
    %c0 = arith.constant 0 : index
    %c0_0 = arith.constant 0 : index
    %0 = vector.load %arg2[%c0, %c0_0] : memref<512x128xf32, #tpu.memory_space<vmem>>, vector<512x128xf32>
    %c0_1 = arith.constant 0 : index
    %c0_2 = arith.constant 0 : index
    %1 = vector.load %arg1[%c0_1, %c0_2] : memref<512x128xf32, #tpu.memory_space<vmem>>, vector<512x2xf32>
    %2 = vector.extract_strided_slice %0 {offsets = [0, 0], sizes = [512, 2], strides = [1, 1]} : vector<512x128xf32> to vector<512x2xf32>
    %3 = arith.mulf %1, %2 : vector<512x2xf32>
    %c0_3 = arith.constant 0 : index
    %c0_4 = arith.constant 0 : index
    %4 = vector.load %arg3[%c0_3, %c0_4] : memref<2x4xf32, #tpu.memory_space<vmem>>, vector<2x4xf32>
    %c0_5 = arith.constant 0 : index
    %c0_6 = arith.constant 0 : index
    %5 = vector.load %arg4[%c0_5, %c0_6] : memref<1x4xf32, #tpu.memory_space<vmem>>, vector<1x4xf32>
    %cst = arith.constant dense<0.000000e+00> : vector<512x4xf32>
    %6 = tpu.matmul %3, %4, %cst {dimension_numbers = #tpu.dot_dimension_numbers<[1], [0], [0], [1], [0, 0, 1, 1], [], []>} : vector<512x2xf32>, vector<2x4xf32>, vector<512x4xf32> -> vector<512x4xf32>
    %7 = vector.broadcast %5 : vector<1x4xf32> to vector<512x4xf32>
    %8 = arith.addf %6, %7 : vector<512x4xf32>
    %9 = vector.extract_strided_slice %0 {offsets = [0, 2], sizes = [512, 4], strides = [1, 1]} : vector<512x128xf32> to vector<512x4xf32>
    %10 = arith.mulf %8, %9 : vector<512x4xf32>
    %c0_7 = arith.constant 0 : index
    %c0_8 = arith.constant 0 : index
    %11 = vector.load %arg5[%c0_7, %c0_8] : memref<4x8xf32, #tpu.memory_space<vmem>>, vector<4x8xf32>
    %c0_9 = arith.constant 0 : index
    %c0_10 = arith.constant 0 : index
    %12 = vector.load %arg6[%c0_9, %c0_10] : memref<1x8xf32, #tpu.memory_space<vmem>>, vector<1x8xf32>
    %cst_11 = arith.constant dense<0.000000e+00> : vector<512x8xf32>
    %13 = tpu.matmul %10, %11, %cst_11 {dimension_numbers = #tpu.dot_dimension_numbers<[1], [0], [0], [1], [0, 0, 1, 1], [], []>} : vector<512x4xf32>, vector<4x8xf32>, vector<512x8xf32> -> vector<512x8xf32>
    %14 = vector.broadcast %12 : vector<1x8xf32> to vector<512x8xf32>
    %15 = arith.addf %13, %14 : vector<512x8xf32>
    %16 = vector.extract_strided_slice %0 {offsets = [0, 6], sizes = [512, 8], strides = [1, 1]} : vector<512x128xf32> to vector<512x8xf32>
    %17 = arith.mulf %15, %16 : vector<512x8xf32>
    %c0_12 = arith.constant 0 : index
    %c0_13 = arith.constant 0 : index
    %18 = vector.load %arg7[%c0_12, %c0_13] : memref<8x16xf32, #tpu.memory_space<vmem>>, vector<8x16xf32>
    %c0_14 = arith.constant 0 : index
    %c0_15 = arith.constant 0 : index
    %19 = vector.load %arg8[%c0_14, %c0_15] : memref<1x16xf32, #tpu.memory_space<vmem>>, vector<1x16xf32>
    %cst_16 = arith.constant dense<0.000000e+00> : vector<512x16xf32>
    %20 = tpu.matmul %17, %18, %cst_16 {dimension_numbers = #tpu.dot_dimension_numbers<[1], [0], [0], [1], [0, 0, 1, 1], [], []>} : vector<512x8xf32>, vector<8x16xf32>, vector<512x16xf32> -> vector<512x16xf32>
    %21 = vector.broadcast %19 : vector<1x16xf32> to vector<512x16xf32>
    %22 = arith.addf %20, %21 : vector<512x16xf32>
    %23 = vector.extract_strided_slice %0 {offsets = [0, 14], sizes = [512, 16], strides = [1, 1]} : vector<512x128xf32> to vector<512x16xf32>
    %24 = arith.mulf %22, %23 : vector<512x16xf32>
    %c0_17 = arith.constant 0 : index
    %c0_18 = arith.constant 0 : index
    %25 = vector.load %arg9[%c0_17, %c0_18] : memref<16x32xf32, #tpu.memory_space<vmem>>, vector<16x32xf32>
    %c0_19 = arith.constant 0 : index
    %c0_20 = arith.constant 0 : index
    %26 = vector.load %arg10[%c0_19, %c0_20] : memref<1x32xf32, #tpu.memory_space<vmem>>, vector<1x32xf32>
    %cst_21 = arith.constant dense<0.000000e+00> : vector<512x32xf32>
    %27 = tpu.matmul %24, %25, %cst_21 {dimension_numbers = #tpu.dot_dimension_numbers<[1], [0], [0], [1], [0, 0, 1, 1], [], []>} : vector<512x16xf32>, vector<16x32xf32>, vector<512x32xf32> -> vector<512x32xf32>
    %28 = vector.broadcast %26 : vector<1x32xf32> to vector<512x32xf32>
    %29 = arith.addf %27, %28 : vector<512x32xf32>
    %30 = vector.extract_strided_slice %0 {offsets = [0, 30], sizes = [512, 32], strides = [1, 1]} : vector<512x128xf32> to vector<512x32xf32>
    %31 = arith.mulf %29, %30 : vector<512x32xf32>
    %c0_22 = arith.constant 0 : index
    %c0_23 = arith.constant 0 : index
    %32 = vector.load %arg11[%c0_22, %c0_23] : memref<32x32xf32, #tpu.memory_space<vmem>>, vector<32x32xf32>
    %c0_24 = arith.constant 0 : index
    %c0_25 = arith.constant 0 : index
    %33 = vector.load %arg12[%c0_24, %c0_25] : memref<1x32xf32, #tpu.memory_space<vmem>>, vector<1x32xf32>
    %cst_26 = arith.constant dense<0.000000e+00> : vector<512x32xf32>
    %34 = tpu.matmul %31, %32, %cst_26 {dimension_numbers = #tpu.dot_dimension_numbers<[1], [0], [0], [1], [0, 0, 1, 1], [], []>} : vector<512x32xf32>, vector<32x32xf32>, vector<512x32xf32> -> vector<512x32xf32>
    %35 = vector.broadcast %33 : vector<1x32xf32> to vector<512x32xf32>
    %36 = arith.addf %34, %35 : vector<512x32xf32>
    %c0_27 = arith.constant 0 : index
    %c0_28 = arith.constant 0 : index
    %37 = vector.load %arg13[%c0_27, %c0_28] : memref<512x32xf32, #tpu.memory_space<vmem>>, vector<512x32xf32>
    tpu.vector_store %arg13[%c0_27, %c0_28], %36 {strides = array<i32>} : memref<512x32xf32, #tpu.memory_space<vmem>>, vector<512x32xf32>,
    return
  }
  func.func @transform_0(%arg0: i32) -> (i32, i32) {
    %c0_i32 = arith.constant 0 : i32
    %c0_i32_0 = arith.constant 0 : i32
    return %arg0, %c0_i32 : i32, i32
  }
  func.func @transform_1(%arg0: i32) -> (i32, i32) {
    %c0_i32 = arith.constant 0 : i32
    %c0_i32_0 = arith.constant 0 : i32
    return %arg0, %c0_i32 : i32, i32
  }
  func.func @transform_2(%arg0: i32) -> (i32, i32) {
    %c0_i32 = arith.constant 0 : i32
    %c0_i32_0 = arith.constant 0 : i32
    %c0_i32_1 = arith.constant 0 : i32
    return %c0_i32, %c0_i32_0 : i32, i32
  }
  func.func @transform_3(%arg0: i32) -> (i32, i32) {
    %c0_i32 = arith.constant 0 : i32
    %c0_i32_0 = arith.constant 0 : i32
    %c0_i32_1 = arith.constant 0 : i32
    return %c0_i32, %c0_i32_0 : i32, i32
  }
  func.func @transform_4(%arg0: i32) -> (i32, i32) {
    %c0_i32 = arith.constant 0 : i32
    %c0_i32_0 = arith.constant 0 : i32
    %c0_i32_1 = arith.constant 0 : i32
    return %c0_i32, %c0_i32_0 : i32, i32
  }
  func.func @transform_5(%arg0: i32) -> (i32, i32) {
    %c0_i32 = arith.constant 0 : i32
    %c0_i32_0 = arith.constant 0 : i32
    %c0_i32_1 = arith.constant 0 : i32
    return %c0_i32, %c0_i32_0 : i32, i32
  }
  func.func @transform_6(%arg0: i32) -> (i32, i32) {
    %c0_i32 = arith.constant 0 : i32
    %c0_i32_0 = arith.constant 0 : i32
    %c0_i32_1 = arith.constant 0 : i32
    return %c0_i32, %c0_i32_0 : i32, i32
  }
  func.func @transform_7(%arg0: i32) -> (i32, i32) {
    %c0_i32 = arith.constant 0 : i32
    %c0_i32_0 = arith.constant 0 : i32
    %c0_i32_1 = arith.constant 0 : i32
    return %c0_i32, %c0_i32_0 : i32, i32
  }
  func.func @transform_8(%arg0: i32) -> (i32, i32) {
    %c0_i32 = arith.constant 0 : i32
    %c0_i32_0 = arith.constant 0 : i32
    %c0_i32_1 = arith.constant 0 : i32
    return %c0_i32, %c0_i32_0 : i32, i32
  }
  func.func @transform_9(%arg0: i32) -> (i32, i32) {
    %c0_i32 = arith.constant 0 : i32
    %c0_i32_0 = arith.constant 0 : i32
    %c0_i32_1 = arith.constant 0 : i32
    return %c0_i32, %c0_i32_0 : i32, i32
  }
  func.func @transform_10(%arg0: i32) -> (i32, i32) {
    %c0_i32 = arith.constant 0 : i32
    %c0_i32_0 = arith.constant 0 : i32
    %c0_i32_1 = arith.constant 0 : i32
    return %c0_i32, %c0_i32_0 : i32, i32
  }
  func.func @transform_11(%arg0: i32) -> (i32, i32) {
    %c0_i32 = arith.constant 0 : i32
    %c0_i32_0 = arith.constant 0 : i32
    %c0_i32_1 = arith.constant 0 : i32
    return %c0_i32, %c0_i32_0 : i32, i32
  }
  func.func @transform_12(%arg0: i32) -> (i32, i32) {
    %c0_i32 = arith.constant 0 : i32
    %c0_i32_0 = arith.constant 0 : i32
    return %arg0, %c0_i32 : i32, i32
  }
}

module attributes {stable_mosaic.version = 11 : i64} {
  func.func @_proj_in_kernel(%arg0: i32, %arg1: memref<512x32xf32, #tpu.memory_space<vmem>>, %arg2: memref<32x128xf32, #tpu.memory_space<vmem>>, %arg3: memref<1x128xf32, #tpu.memory_space<vmem>>, %arg4: memref<32x128xf32, #tpu.memory_space<vmem>>, %arg5: memref<1x128xf32, #tpu.memory_space<vmem>>, %arg6: memref<512x128xf32, #tpu.memory_space<vmem>>, %arg7: memref<512x128xf32, #tpu.memory_space<vmem>>) attributes {dimension_semantics = [#tpu.dimension_semantics<parallel>], iteration_bounds = array<i64: 1>, scalar_prefetch = 0 : i64, scratch_operands = 0 : i64, tpu.core_type = #tpu.core_type<tc>, window_params = [{transform_indices = @transform_0, window_bounds = array<i64: 512, 32>}, {pipeline_mode = #tpu.pipeline_mode<synchronous>, transform_indices = @transform_1, window_bounds = array<i64: 32, 128>}, {pipeline_mode = #tpu.pipeline_mode<synchronous>, transform_indices = @transform_2, window_bounds = array<i64: 1, 128>}, {pipeline_mode = #tpu.pipeline_mode<synchronous>, transform_indices = @transform_3, window_bounds = array<i64: 32, 128>}, {pipeline_mode = #tpu.pipeline_mode<synchronous>, transform_indices = @transform_4, window_bounds = array<i64: 1, 128>}, {transform_indices = @transform_5, window_bounds = array<i64: 512, 128>}, {transform_indices = @transform_6, window_bounds = array<i64: 512, 128>}]} {
    %c0 = arith.constant 0 : index
    %c0_0 = arith.constant 0 : index
    %0 = vector.load %arg1[%c0, %c0_0] : memref<512x32xf32, #tpu.memory_space<vmem>>, vector<512x32xf32>
    %c0_1 = arith.constant 0 : index
    %c0_2 = arith.constant 0 : index
    %1 = vector.load %arg2[%c0_1, %c0_2] : memref<32x128xf32, #tpu.memory_space<vmem>>, vector<32x128xf32>
    %cst = arith.constant dense<0.000000e+00> : vector<512x128xf32>
    %2 = tpu.matmul %0, %1, %cst {dimension_numbers = #tpu.dot_dimension_numbers<[1], [0], [0], [1], [0, 0, 1, 1], [], []>} : vector<512x32xf32>, vector<32x128xf32>, vector<512x128xf32> -> vector<512x128xf32>
    %c0_3 = arith.constant 0 : index
    %c0_4 = arith.constant 0 : index
    %3 = vector.load %arg3[%c0_3, %c0_4] : memref<1x128xf32, #tpu.memory_space<vmem>>, vector<1x128xf32>
    %4 = vector.broadcast %3 : vector<1x128xf32> to vector<512x128xf32>
    %5 = arith.addf %2, %4 : vector<512x128xf32>
    %c0_5 = arith.constant 0 : index
    %c0_6 = arith.constant 0 : index
    %6 = vector.load %arg4[%c0_5, %c0_6] : memref<32x128xf32, #tpu.memory_space<vmem>>, vector<32x128xf32>
    %cst_7 = arith.constant dense<0.000000e+00> : vector<512x128xf32>
    %7 = tpu.matmul %0, %6, %cst_7 {dimension_numbers = #tpu.dot_dimension_numbers<[1], [0], [0], [1], [0, 0, 1, 1], [], []>} : vector<512x32xf32>, vector<32x128xf32>, vector<512x128xf32> -> vector<512x128xf32>
    %c0_8 = arith.constant 0 : index
    %c0_9 = arith.constant 0 : index
    %8 = vector.load %arg5[%c0_8, %c0_9] : memref<1x128xf32, #tpu.memory_space<vmem>>, vector<1x128xf32>
    %9 = vector.broadcast %8 : vector<1x128xf32> to vector<512x128xf32>
    %10 = arith.addf %7, %9 : vector<512x128xf32>
    %c0_10 = arith.constant 0 : index
    %c0_11 = arith.constant 0 : index
    %11 = vector.load %arg6[%c0_10, %c0_11] : memref<512x128xf32, #tpu.memory_space<vmem>>, vector<512x128xf32>
    tpu.vector_store %arg6[%c0_10, %c0_11], %5 {strides = array<i32>} : memref<512x128xf32, #tpu.memory_space<vmem>>, vector<512x128xf32>,
    %c0_12 = arith.constant 0 : index
    %c0_13 = arith.constant 0 : index
    %12 = vector.load %arg7[%c0_12, %c0_13] : memref<512x128xf32, #tpu.memory_space<vmem>>, vector<512x128xf32>
    tpu.vector_store %arg7[%c0_12, %c0_13], %10 {strides = array<i32>} : memref<512x128xf32, #tpu.memory_space<vmem>>, vector<512x128xf32>,
    return
  }
  func.func @transform_0(%arg0: i32) -> (i32, i32) {
    %c0_i32 = arith.constant 0 : i32
    %c0_i32_0 = arith.constant 0 : i32
    return %arg0, %c0_i32 : i32, i32
  }
  func.func @transform_1(%arg0: i32) -> (i32, i32) {
    %c0_i32 = arith.constant 0 : i32
    %c0_i32_0 = arith.constant 0 : i32
    %c0_i32_1 = arith.constant 0 : i32
    return %c0_i32, %c0_i32_0 : i32, i32
  }
  func.func @transform_2(%arg0: i32) -> (i32, i32) {
    %c0_i32 = arith.constant 0 : i32
    %c0_i32_0 = arith.constant 0 : i32
    %c0_i32_1 = arith.constant 0 : i32
    return %c0_i32, %c0_i32_0 : i32, i32
  }
  func.func @transform_3(%arg0: i32) -> (i32, i32) {
    %c0_i32 = arith.constant 0 : i32
    %c0_i32_0 = arith.constant 0 : i32
    %c0_i32_1 = arith.constant 0 : i32
    return %c0_i32, %c0_i32_0 : i32, i32
  }
  func.func @transform_4(%arg0: i32) -> (i32, i32) {
    %c0_i32 = arith.constant 0 : i32
    %c0_i32_0 = arith.constant 0 : i32
    %c0_i32_1 = arith.constant 0 : i32
    return %c0_i32, %c0_i32_0 : i32, i32
  }
  func.func @transform_5(%arg0: i32) -> (i32, i32) {
    %c0_i32 = arith.constant 0 : i32
    %c0_i32_0 = arith.constant 0 : i32
    return %arg0, %c0_i32 : i32, i32
  }
  func.func @transform_6(%arg0: i32) -> (i32, i32) {
    %c0_i32 = arith.constant 0 : i32
    %c0_i32_0 = arith.constant 0 : i32
    return %arg0, %c0_i32 : i32, i32
  }
}

module attributes {stable_mosaic.version = 11 : i64} {
  func.func @_dwconv7_kernel(%arg0: i32, %arg1: i32, %arg2: i32, %arg3: memref<2x22x22x128xf32, #tpu.memory_space<any>>, %arg4: memref<49x128xf32, #tpu.memory_space<vmem>>, %arg5: memref<1x128xf32, #tpu.memory_space<vmem>>, %arg6: memref<1x8x16x128xf32, #tpu.memory_space<vmem>>, %arg7: memref<14x22x128xf32, #tpu.memory_space<vmem>>, %arg8: memref<98x16x128xf32, #tpu.memory_space<vmem>>, %arg9: memref<!tpu.dma_semaphore, #tpu.memory_space<semaphore_mem>>) attributes {dimension_semantics = [#tpu.dimension_semantics<parallel>, #tpu.dimension_semantics<parallel>, #tpu.dimension_semantics<parallel>], iteration_bounds = array<i64: 2, 2, 1>, scalar_prefetch = 0 : i64, scratch_operands = 3 : i64, tpu.core_type = #tpu.core_type<tc>, window_params = [{}, {transform_indices = @transform_1, window_bounds = array<i64: 49, 128>}, {transform_indices = @transform_2, window_bounds = array<i64: 1, 128>}, {transform_indices = @transform_3, window_bounds = array<i64: 1, 8, 16, 128>}]} {
    %c8_i32 = arith.constant 8 : i32
    %0 = arith.muli %arg1, %c8_i32 : i32
    %1 = tpu.assume_multiple %0, 8 : i32
    %c128_i32 = arith.constant 128 : i32
    %2 = arith.muli %arg2, %c128_i32 : i32
    %3 = tpu.assume_multiple %2, 128 : i32
    %c0_i32 = arith.constant 0 : i32
    %4 = tpu.memref_slice %arg3[%arg0, %1, %c0_i32, %3] : memref<2x22x22x128xf32, #tpu.memory_space<any>> -> memref<1x14x22x128xf32, #tpu.memory_space<any>>
    %5 = tpu.memref_squeeze %4 : memref<1x14x22x128xf32, #tpu.memory_space<any>> -> memref<14x22x128xf32, #tpu.memory_space<any>>
    tpu.enqueue_dma source(%5 : memref<14x22x128xf32, #tpu.memory_space<any>>) target(%arg7 : memref<14x22x128xf32, #tpu.memory_space<vmem>>) target_semaphore(%arg9 : memref<!tpu.dma_semaphore, #tpu.memory_space<semaphore_mem>>)
    %c0_i32_0 = arith.constant 0 : i32
    %6 = tpu.memref_slice %arg3[%arg0, %1, %c0_i32_0, %3] : memref<2x22x22x128xf32, #tpu.memory_space<any>> -> memref<1x14x22x128xf32, #tpu.memory_space<any>>
    %7 = tpu.memref_squeeze %6 : memref<1x14x22x128xf32, #tpu.memory_space<any>> -> memref<14x22x128xf32, #tpu.memory_space<any>>
    tpu.wait_dma2 semaphore(%arg9 : memref<!tpu.dma_semaphore, #tpu.memory_space<semaphore_mem>>) src(%7 : memref<14x22x128xf32, #tpu.memory_space<any>>) dst(%arg7 : memref<14x22x128xf32, #tpu.memory_space<vmem>>)
    %c0 = arith.constant 0 : index
    %c0_1 = arith.constant 0 : index
    %c0_2 = arith.constant 0 : index
    %8 = vector.load %arg7[%c0, %c0_1, %c0_2] : memref<14x22x128xf32, #tpu.memory_space<vmem>>, vector<14x16x128xf32>
    %c0_3 = arith.constant 0 : index
    %c0_4 = arith.constant 0 : index
    %c0_5 = arith.constant 0 : index
    %9 = vector.load %arg8[%c0_3, %c0_4, %c0_5] : memref<98x16x128xf32, #tpu.memory_space<vmem>>, vector<14x16x128xf32>
    tpu.vector_store %arg8[%c0_3, %c0_4, %c0_5], %8 {strides = array<i32>} : memref<98x16x128xf32, #tpu.memory_space<vmem>>, vector<14x16x128xf32>,
    %c0_6 = arith.constant 0 : index
    %c1 = arith.constant 1 : index
    %c0_7 = arith.constant 0 : index
    %10 = vector.load %arg7[%c0_6, %c1, %c0_7] : memref<14x22x128xf32, #tpu.memory_space<vmem>>, vector<14x16x128xf32>
    %c14 = arith.constant 14 : index
    %c0_8 = arith.constant 0 : index
    %c0_9 = arith.constant 0 : index
    %11 = vector.load %arg8[%c14, %c0_8, %c0_9] : memref<98x16x128xf32, #tpu.memory_space<vmem>>, vector<14x16x128xf32>
    tpu.vector_store %arg8[%c14, %c0_8, %c0_9], %10 {strides = array<i32>} : memref<98x16x128xf32, #tpu.memory_space<vmem>>, vector<14x16x128xf32>,
    %c0_10 = arith.constant 0 : index
    %c2 = arith.constant 2 : index
    %c0_11 = arith.constant 0 : index
    %12 = vector.load %arg7[%c0_10, %c2, %c0_11] : memref<14x22x128xf32, #tpu.memory_space<vmem>>, vector<14x16x128xf32>
    %c28 = arith.constant 28 : index
    %c0_12 = arith.constant 0 : index
    %c0_13 = arith.constant 0 : index
    %13 = vector.load %arg8[%c28, %c0_12, %c0_13] : memref<98x16x128xf32, #tpu.memory_space<vmem>>, vector<14x16x128xf32>
    tpu.vector_store %arg8[%c28, %c0_12, %c0_13], %12 {strides = array<i32>} : memref<98x16x128xf32, #tpu.memory_space<vmem>>, vector<14x16x128xf32>,
    %c0_14 = arith.constant 0 : index
    %c3 = arith.constant 3 : index
    %c0_15 = arith.constant 0 : index
    %14 = vector.load %arg7[%c0_14, %c3, %c0_15] : memref<14x22x128xf32, #tpu.memory_space<vmem>>, vector<14x16x128xf32>
    %c42 = arith.constant 42 : index
    %c0_16 = arith.constant 0 : index
    %c0_17 = arith.constant 0 : index
    %15 = vector.load %arg8[%c42, %c0_16, %c0_17] : memref<98x16x128xf32, #tpu.memory_space<vmem>>, vector<14x16x128xf32>
    tpu.vector_store %arg8[%c42, %c0_16, %c0_17], %14 {strides = array<i32>} : memref<98x16x128xf32, #tpu.memory_space<vmem>>, vector<14x16x128xf32>,
    %c0_18 = arith.constant 0 : index
    %c4 = arith.constant 4 : index
    %c0_19 = arith.constant 0 : index
    %16 = vector.load %arg7[%c0_18, %c4, %c0_19] : memref<14x22x128xf32, #tpu.memory_space<vmem>>, vector<14x16x128xf32>
    %c56 = arith.constant 56 : index
    %c0_20 = arith.constant 0 : index
    %c0_21 = arith.constant 0 : index
    %17 = vector.load %arg8[%c56, %c0_20, %c0_21] : memref<98x16x128xf32, #tpu.memory_space<vmem>>, vector<14x16x128xf32>
    tpu.vector_store %arg8[%c56, %c0_20, %c0_21], %16 {strides = array<i32>} : memref<98x16x128xf32, #tpu.memory_space<vmem>>, vector<14x16x128xf32>,
    %c0_22 = arith.constant 0 : index
    %c5 = arith.constant 5 : index
    %c0_23 = arith.constant 0 : index
    %18 = vector.load %arg7[%c0_22, %c5, %c0_23] : memref<14x22x128xf32, #tpu.memory_space<vmem>>, vector<14x16x128xf32>
    %c70 = arith.constant 70 : index
    %c0_24 = arith.constant 0 : index
    %c0_25 = arith.constant 0 : index
    %19 = vector.load %arg8[%c70, %c0_24, %c0_25] : memref<98x16x128xf32, #tpu.memory_space<vmem>>, vector<14x16x128xf32>
    tpu.vector_store %arg8[%c70, %c0_24, %c0_25], %18 {strides = array<i32>} : memref<98x16x128xf32, #tpu.memory_space<vmem>>, vector<14x16x128xf32>,
    %c0_26 = arith.constant 0 : index
    %c6 = arith.constant 6 : index
    %c0_27 = arith.constant 0 : index
    %20 = vector.load %arg7[%c0_26, %c6, %c0_27] : memref<14x22x128xf32, #tpu.memory_space<vmem>>, vector<14x16x128xf32>
    %c84 = arith.constant 84 : index
    %c0_28 = arith.constant 0 : index
    %c0_29 = arith.constant 0 : index
    %21 = vector.load %arg8[%c84, %c0_28, %c0_29] : memref<98x16x128xf32, #tpu.memory_space<vmem>>, vector<14x16x128xf32>
    tpu.vector_store %arg8[%c84, %c0_28, %c0_29], %20 {strides = array<i32>} : memref<98x16x128xf32, #tpu.memory_space<vmem>>, vector<14x16x128xf32>,
    %c0_30 = arith.constant 0 : index
    %c0_31 = arith.constant 0 : index
    %22 = vector.load %arg4[%c0_30, %c0_31] : memref<49x128xf32, #tpu.memory_space<vmem>>, vector<49x128xf32>
    %c0_32 = arith.constant 0 : index
    %c0_33 = arith.constant 0 : index
    %23 = vector.load %arg5[%c0_32, %c0_33] : memref<1x128xf32, #tpu.memory_space<vmem>>, vector<1x128xf32>
    %c0_i32_34 = arith.constant 0 : i32
    %c8_i32_35 = arith.constant 8 : i32
    %24 = arith.addi %c0_i32_34, %c8_i32_35 : i32
    %c1_i32 = arith.constant 1 : i32
    scf.for %arg10 = %c0_i32_34 to %24 step %c1_i32  : i32 {
      %cst = arith.constant 0.000000e+00 : f32
      %25 = vector.broadcast %cst : f32 to vector<16x128xf32>
      %c0_i32_37 = arith.constant 0 : i32
      %26 = arith.addi %arg10, %c0_i32_37 : i32
      %c0_i32_38 = arith.constant 0 : i32
      %27 = arith.addi %c0_i32_38, %26 : i32
      %28 = arith.index_cast %27 : i32 to index
      %c0_39 = arith.constant 0 : index
      %c0_40 = arith.constant 0 : index
      %29 = vector.load %arg8[%28, %c0_39, %c0_40] : memref<98x16x128xf32, #tpu.memory_space<vmem>>, vector<1x16x128xf32>
      %30 = vector.shape_cast %29 : vector<1x16x128xf32> to vector<16x128xf32>
      %31 = vector.extract_strided_slice %22 {offsets = [0, 0], sizes = [1, 128], strides = [1, 1]} : vector<49x128xf32> to vector<1x128xf32>
      %32 = vector.broadcast %31 : vector<1x128xf32> to vector<16x128xf32>
      %33 = arith.mulf %30, %32 : vector<16x128xf32>
      %34 = arith.addf %25, %33 : vector<16x128xf32>
      %c14_i32 = arith.constant 14 : i32
      %35 = arith.addi %c14_i32, %26 : i32
      %36 = arith.index_cast %35 : i32 to index
      %c0_41 = arith.constant 0 : index
      %c0_42 = arith.constant 0 : index
      %37 = vector.load %arg8[%36, %c0_41, %c0_42] : memref<98x16x128xf32, #tpu.memory_space<vmem>>, vector<1x16x128xf32>
      %38 = vector.shape_cast %37 : vector<1x16x128xf32> to vector<16x128xf32>
      %39 = vector.extract_strided_slice %22 {offsets = [1, 0], sizes = [1, 128], strides = [1, 1]} : vector<49x128xf32> to vector<1x128xf32>
      %40 = vector.broadcast %39 : vector<1x128xf32> to vector<16x128xf32>
      %41 = arith.mulf %38, %40 : vector<16x128xf32>
      %42 = arith.addf %34, %41 : vector<16x128xf32>
      %c28_i32 = arith.constant 28 : i32
      %43 = arith.addi %c28_i32, %26 : i32
      %44 = arith.index_cast %43 : i32 to index
      %c0_43 = arith.constant 0 : index
      %c0_44 = arith.constant 0 : index
      %45 = vector.load %arg8[%44, %c0_43, %c0_44] : memref<98x16x128xf32, #tpu.memory_space<vmem>>, vector<1x16x128xf32>
      %46 = vector.shape_cast %45 : vector<1x16x128xf32> to vector<16x128xf32>
      %47 = vector.extract_strided_slice %22 {offsets = [2, 0], sizes = [1, 128], strides = [1, 1]} : vector<49x128xf32> to vector<1x128xf32>
      %48 = vector.broadcast %47 : vector<1x128xf32> to vector<16x128xf32>
      %49 = arith.mulf %46, %48 : vector<16x128xf32>
      %50 = arith.addf %42, %49 : vector<16x128xf32>
      %c42_i32 = arith.constant 42 : i32
      %51 = arith.addi %c42_i32, %26 : i32
      %52 = arith.index_cast %51 : i32 to index
      %c0_45 = arith.constant 0 : index
      %c0_46 = arith.constant 0 : index
      %53 = vector.load %arg8[%52, %c0_45, %c0_46] : memref<98x16x128xf32, #tpu.memory_space<vmem>>, vector<1x16x128xf32>
      %54 = vector.shape_cast %53 : vector<1x16x128xf32> to vector<16x128xf32>
      %55 = vector.extract_strided_slice %22 {offsets = [3, 0], sizes = [1, 128], strides = [1, 1]} : vector<49x128xf32> to vector<1x128xf32>
      %56 = vector.broadcast %55 : vector<1x128xf32> to vector<16x128xf32>
      %57 = arith.mulf %54, %56 : vector<16x128xf32>
      %58 = arith.addf %50, %57 : vector<16x128xf32>
      %c56_i32 = arith.constant 56 : i32
      %59 = arith.addi %c56_i32, %26 : i32
      %60 = arith.index_cast %59 : i32 to index
      %c0_47 = arith.constant 0 : index
      %c0_48 = arith.constant 0 : index
      %61 = vector.load %arg8[%60, %c0_47, %c0_48] : memref<98x16x128xf32, #tpu.memory_space<vmem>>, vector<1x16x128xf32>
      %62 = vector.shape_cast %61 : vector<1x16x128xf32> to vector<16x128xf32>
      %63 = vector.extract_strided_slice %22 {offsets = [4, 0], sizes = [1, 128], strides = [1, 1]} : vector<49x128xf32> to vector<1x128xf32>
      %64 = vector.broadcast %63 : vector<1x128xf32> to vector<16x128xf32>
      %65 = arith.mulf %62, %64 : vector<16x128xf32>
      %66 = arith.addf %58, %65 : vector<16x128xf32>
      %c70_i32 = arith.constant 70 : i32
      %67 = arith.addi %c70_i32, %26 : i32
      %68 = arith.index_cast %67 : i32 to index
      %c0_49 = arith.constant 0 : index
      %c0_50 = arith.constant 0 : index
      %69 = vector.load %arg8[%68, %c0_49, %c0_50] : memref<98x16x128xf32, #tpu.memory_space<vmem>>, vector<1x16x128xf32>
      %70 = vector.shape_cast %69 : vector<1x16x128xf32> to vector<16x128xf32>
      %71 = vector.extract_strided_slice %22 {offsets = [5, 0], sizes = [1, 128], strides = [1, 1]} : vector<49x128xf32> to vector<1x128xf32>
      %72 = vector.broadcast %71 : vector<1x128xf32> to vector<16x128xf32>
      %73 = arith.mulf %70, %72 : vector<16x128xf32>
      %74 = arith.addf %66, %73 : vector<16x128xf32>
      %c84_i32 = arith.constant 84 : i32
      %75 = arith.addi %c84_i32, %26 : i32
      %76 = arith.index_cast %75 : i32 to index
      %c0_51 = arith.constant 0 : index
      %c0_52 = arith.constant 0 : index
      %77 = vector.load %arg8[%76, %c0_51, %c0_52] : memref<98x16x128xf32, #tpu.memory_space<vmem>>, vector<1x16x128xf32>
      %78 = vector.shape_cast %77 : vector<1x16x128xf32> to vector<16x128xf32>
      %79 = vector.extract_strided_slice %22 {offsets = [6, 0], sizes = [1, 128], strides = [1, 1]} : vector<49x128xf32> to vector<1x128xf32>
      %80 = vector.broadcast %79 : vector<1x128xf32> to vector<16x128xf32>
      %81 = arith.mulf %78, %80 : vector<16x128xf32>
      %82 = arith.addf %74, %81 : vector<16x128xf32>
      %c1_i32_53 = arith.constant 1 : i32
      %83 = arith.addi %arg10, %c1_i32_53 : i32
      %c0_i32_54 = arith.constant 0 : i32
      %84 = arith.addi %c0_i32_54, %83 : i32
      %85 = arith.index_cast %84 : i32 to index
      %c0_55 = arith.constant 0 : index
      %c0_56 = arith.constant 0 : index
      %86 = vector.load %arg8[%85, %c0_55, %c0_56] : memref<98x16x128xf32, #tpu.memory_space<vmem>>, vector<1x16x128xf32>
      %87 = vector.shape_cast %86 : vector<1x16x128xf32> to vector<16x128xf32>
      %88 = vector.extract_strided_slice %22 {offsets = [7, 0], sizes = [1, 128], strides = [1, 1]} : vector<49x128xf32> to vector<1x128xf32>
      %89 = vector.broadcast %88 : vector<1x128xf32> to vector<16x128xf32>
      %90 = arith.mulf %87, %89 : vector<16x128xf32>
      %91 = arith.addf %82, %90 : vector<16x128xf32>
      %c14_i32_57 = arith.constant 14 : i32
      %92 = arith.addi %c14_i32_57, %83 : i32
      %93 = arith.index_cast %92 : i32 to index
      %c0_58 = arith.constant 0 : index
      %c0_59 = arith.constant 0 : index
      %94 = vector.load %arg8[%93, %c0_58, %c0_59] : memref<98x16x128xf32, #tpu.memory_space<vmem>>, vector<1x16x128xf32>
      %95 = vector.shape_cast %94 : vector<1x16x128xf32> to vector<16x128xf32>
      %96 = vector.extract_strided_slice %22 {offsets = [8, 0], sizes = [1, 128], strides = [1, 1]} : vector<49x128xf32> to vector<1x128xf32>
      %97 = vector.broadcast %96 : vector<1x128xf32> to vector<16x128xf32>
      %98 = arith.mulf %95, %97 : vector<16x128xf32>
      %99 = arith.addf %91, %98 : vector<16x128xf32>
      %c28_i32_60 = arith.constant 28 : i32
      %100 = arith.addi %c28_i32_60, %83 : i32
      %101 = arith.index_cast %100 : i32 to index
      %c0_61 = arith.constant 0 : index
      %c0_62 = arith.constant 0 : index
      %102 = vector.load %arg8[%101, %c0_61, %c0_62] : memref<98x16x128xf32, #tpu.memory_space<vmem>>, vector<1x16x128xf32>
      %103 = vector.shape_cast %102 : vector<1x16x128xf32> to vector<16x128xf32>
      %104 = vector.extract_strided_slice %22 {offsets = [9, 0], sizes = [1, 128], strides = [1, 1]} : vector<49x128xf32> to vector<1x128xf32>
      %105 = vector.broadcast %104 : vector<1x128xf32> to vector<16x128xf32>
      %106 = arith.mulf %103, %105 : vector<16x128xf32>
      %107 = arith.addf %99, %106 : vector<16x128xf32>
      %c42_i32_63 = arith.constant 42 : i32
      %108 = arith.addi %c42_i32_63, %83 : i32
      %109 = arith.index_cast %108 : i32 to index
      %c0_64 = arith.constant 0 : index
      %c0_65 = arith.constant 0 : index
      %110 = vector.load %arg8[%109, %c0_64, %c0_65] : memref<98x16x128xf32, #tpu.memory_space<vmem>>, vector<1x16x128xf32>
      %111 = vector.shape_cast %110 : vector<1x16x128xf32> to vector<16x128xf32>
      %112 = vector.extract_strided_slice %22 {offsets = [10, 0], sizes = [1, 128], strides = [1, 1]} : vector<49x128xf32> to vector<1x128xf32>
      %113 = vector.broadcast %112 : vector<1x128xf32> to vector<16x128xf32>
      %114 = arith.mulf %111, %113 : vector<16x128xf32>
      %115 = arith.addf %107, %114 : vector<16x128xf32>
      %c56_i32_66 = arith.constant 56 : i32
      %116 = arith.addi %c56_i32_66, %83 : i32
      %117 = arith.index_cast %116 : i32 to index
      %c0_67 = arith.constant 0 : index
      %c0_68 = arith.constant 0 : index
      %118 = vector.load %arg8[%117, %c0_67, %c0_68] : memref<98x16x128xf32, #tpu.memory_space<vmem>>, vector<1x16x128xf32>
      %119 = vector.shape_cast %118 : vector<1x16x128xf32> to vector<16x128xf32>
      %120 = vector.extract_strided_slice %22 {offsets = [11, 0], sizes = [1, 128], strides = [1, 1]} : vector<49x128xf32> to vector<1x128xf32>
      %121 = vector.broadcast %120 : vector<1x128xf32> to vector<16x128xf32>
      %122 = arith.mulf %119, %121 : vector<16x128xf32>
      %123 = arith.addf %115, %122 : vector<16x128xf32>
      %c70_i32_69 = arith.constant 70 : i32
      %124 = arith.addi %c70_i32_69, %83 : i32
      %125 = arith.index_cast %124 : i32 to index
      %c0_70 = arith.constant 0 : index
      %c0_71 = arith.constant 0 : index
      %126 = vector.load %arg8[%125, %c0_70, %c0_71] : memref<98x16x128xf32, #tpu.memory_space<vmem>>, vector<1x16x128xf32>
      %127 = vector.shape_cast %126 : vector<1x16x128xf32> to vector<16x128xf32>
      %128 = vector.extract_strided_slice %22 {offsets = [12, 0], sizes = [1, 128], strides = [1, 1]} : vector<49x128xf32> to vector<1x128xf32>
      %129 = vector.broadcast %128 : vector<1x128xf32> to vector<16x128xf32>
      %130 = arith.mulf %127, %129 : vector<16x128xf32>
      %131 = arith.addf %123, %130 : vector<16x128xf32>
      %c84_i32_72 = arith.constant 84 : i32
      %132 = arith.addi %c84_i32_72, %83 : i32
      %133 = arith.index_cast %132 : i32 to index
      %c0_73 = arith.constant 0 : index
      %c0_74 = arith.constant 0 : index
      %134 = vector.load %arg8[%133, %c0_73, %c0_74] : memref<98x16x128xf32, #tpu.memory_space<vmem>>, vector<1x16x128xf32>
      %135 = vector.shape_cast %134 : vector<1x16x128xf32> to vector<16x128xf32>
      %136 = vector.extract_strided_slice %22 {offsets = [13, 0], sizes = [1, 128], strides = [1, 1]} : vector<49x128xf32> to vector<1x128xf32>
      %137 = vector.broadcast %136 : vector<1x128xf32> to vector<16x128xf32>
      %138 = arith.mulf %135, %137 : vector<16x128xf32>
      %139 = arith.addf %131, %138 : vector<16x128xf32>
      %c2_i32 = arith.constant 2 : i32
      %140 = arith.addi %arg10, %c2_i32 : i32
      %c0_i32_75 = arith.constant 0 : i32
      %141 = arith.addi %c0_i32_75, %140 : i32
      %142 = arith.index_cast %141 : i32 to index
      %c0_76 = arith.constant 0 : index
      %c0_77 = arith.constant 0 : index
      %143 = vector.load %arg8[%142, %c0_76, %c0_77] : memref<98x16x128xf32, #tpu.memory_space<vmem>>, vector<1x16x128xf32>
      %144 = vector.shape_cast %143 : vector<1x16x128xf32> to vector<16x128xf32>
      %145 = vector.extract_strided_slice %22 {offsets = [14, 0], sizes = [1, 128], strides = [1, 1]} : vector<49x128xf32> to vector<1x128xf32>
      %146 = vector.broadcast %145 : vector<1x128xf32> to vector<16x128xf32>
      %147 = arith.mulf %144, %146 : vector<16x128xf32>
      %148 = arith.addf %139, %147 : vector<16x128xf32>
      %c14_i32_78 = arith.constant 14 : i32
      %149 = arith.addi %c14_i32_78, %140 : i32
      %150 = arith.index_cast %149 : i32 to index
      %c0_79 = arith.constant 0 : index
      %c0_80 = arith.constant 0 : index
      %151 = vector.load %arg8[%150, %c0_79, %c0_80] : memref<98x16x128xf32, #tpu.memory_space<vmem>>, vector<1x16x128xf32>
      %152 = vector.shape_cast %151 : vector<1x16x128xf32> to vector<16x128xf32>
      %153 = vector.extract_strided_slice %22 {offsets = [15, 0], sizes = [1, 128], strides = [1, 1]} : vector<49x128xf32> to vector<1x128xf32>
      %154 = vector.broadcast %153 : vector<1x128xf32> to vector<16x128xf32>
      %155 = arith.mulf %152, %154 : vector<16x128xf32>
      %156 = arith.addf %148, %155 : vector<16x128xf32>
      %c28_i32_81 = arith.constant 28 : i32
      %157 = arith.addi %c28_i32_81, %140 : i32
      %158 = arith.index_cast %157 : i32 to index
      %c0_82 = arith.constant 0 : index
      %c0_83 = arith.constant 0 : index
      %159 = vector.load %arg8[%158, %c0_82, %c0_83] : memref<98x16x128xf32, #tpu.memory_space<vmem>>, vector<1x16x128xf32>
      %160 = vector.shape_cast %159 : vector<1x16x128xf32> to vector<16x128xf32>
      %161 = vector.extract_strided_slice %22 {offsets = [16, 0], sizes = [1, 128], strides = [1, 1]} : vector<49x128xf32> to vector<1x128xf32>
      %162 = vector.broadcast %161 : vector<1x128xf32> to vector<16x128xf32>
      %163 = arith.mulf %160, %162 : vector<16x128xf32>
      %164 = arith.addf %156, %163 : vector<16x128xf32>
      %c42_i32_84 = arith.constant 42 : i32
      %165 = arith.addi %c42_i32_84, %140 : i32
      %166 = arith.index_cast %165 : i32 to index
      %c0_85 = arith.constant 0 : index
      %c0_86 = arith.constant 0 : index
      %167 = vector.load %arg8[%166, %c0_85, %c0_86] : memref<98x16x128xf32, #tpu.memory_space<vmem>>, vector<1x16x128xf32>
      %168 = vector.shape_cast %167 : vector<1x16x128xf32> to vector<16x128xf32>
      %169 = vector.extract_strided_slice %22 {offsets = [17, 0], sizes = [1, 128], strides = [1, 1]} : vector<49x128xf32> to vector<1x128xf32>
      %170 = vector.broadcast %169 : vector<1x128xf32> to vector<16x128xf32>
      %171 = arith.mulf %168, %170 : vector<16x128xf32>
      %172 = arith.addf %164, %171 : vector<16x128xf32>
      %c56_i32_87 = arith.constant 56 : i32
      %173 = arith.addi %c56_i32_87, %140 : i32
      %174 = arith.index_cast %173 : i32 to index
      %c0_88 = arith.constant 0 : index
      %c0_89 = arith.constant 0 : index
      %175 = vector.load %arg8[%174, %c0_88, %c0_89] : memref<98x16x128xf32, #tpu.memory_space<vmem>>, vector<1x16x128xf32>
      %176 = vector.shape_cast %175 : vector<1x16x128xf32> to vector<16x128xf32>
      %177 = vector.extract_strided_slice %22 {offsets = [18, 0], sizes = [1, 128], strides = [1, 1]} : vector<49x128xf32> to vector<1x128xf32>
      %178 = vector.broadcast %177 : vector<1x128xf32> to vector<16x128xf32>
      %179 = arith.mulf %176, %178 : vector<16x128xf32>
      %180 = arith.addf %172, %179 : vector<16x128xf32>
      %c70_i32_90 = arith.constant 70 : i32
      %181 = arith.addi %c70_i32_90, %140 : i32
      %182 = arith.index_cast %181 : i32 to index
      %c0_91 = arith.constant 0 : index
      %c0_92 = arith.constant 0 : index
      %183 = vector.load %arg8[%182, %c0_91, %c0_92] : memref<98x16x128xf32, #tpu.memory_space<vmem>>, vector<1x16x128xf32>
      %184 = vector.shape_cast %183 : vector<1x16x128xf32> to vector<16x128xf32>
      %185 = vector.extract_strided_slice %22 {offsets = [19, 0], sizes = [1, 128], strides = [1, 1]} : vector<49x128xf32> to vector<1x128xf32>
      %186 = vector.broadcast %185 : vector<1x128xf32> to vector<16x128xf32>
      %187 = arith.mulf %184, %186 : vector<16x128xf32>
      %188 = arith.addf %180, %187 : vector<16x128xf32>
      %c84_i32_93 = arith.constant 84 : i32
      %189 = arith.addi %c84_i32_93, %140 : i32
      %190 = arith.index_cast %189 : i32 to index
      %c0_94 = arith.constant 0 : index
      %c0_95 = arith.constant 0 : index
      %191 = vector.load %arg8[%190, %c0_94, %c0_95] : memref<98x16x128xf32, #tpu.memory_space<vmem>>, vector<1x16x128xf32>
      %192 = vector.shape_cast %191 : vector<1x16x128xf32> to vector<16x128xf32>
      %193 = vector.extract_strided_slice %22 {offsets = [20, 0], sizes = [1, 128], strides = [1, 1]} : vector<49x128xf32> to vector<1x128xf32>
      %194 = vector.broadcast %193 : vector<1x128xf32> to vector<16x128xf32>
      %195 = arith.mulf %192, %194 : vector<16x128xf32>
      %196 = arith.addf %188, %195 : vector<16x128xf32>
      %c3_i32 = arith.constant 3 : i32
      %197 = arith.addi %arg10, %c3_i32 : i32
      %c0_i32_96 = arith.constant 0 : i32
      %198 = arith.addi %c0_i32_96, %197 : i32
      %199 = arith.index_cast %198 : i32 to index
      %c0_97 = arith.constant 0 : index
      %c0_98 = arith.constant 0 : index
      %200 = vector.load %arg8[%199, %c0_97, %c0_98] : memref<98x16x128xf32, #tpu.memory_space<vmem>>, vector<1x16x128xf32>
      %201 = vector.shape_cast %200 : vector<1x16x128xf32> to vector<16x128xf32>
      %202 = vector.extract_strided_slice %22 {offsets = [21, 0], sizes = [1, 128], strides = [1, 1]} : vector<49x128xf32> to vector<1x128xf32>
      %203 = vector.broadcast %202 : vector<1x128xf32> to vector<16x128xf32>
      %204 = arith.mulf %201, %203 : vector<16x128xf32>
      %205 = arith.addf %196, %204 : vector<16x128xf32>
      %c14_i32_99 = arith.constant 14 : i32
      %206 = arith.addi %c14_i32_99, %197 : i32
      %207 = arith.index_cast %206 : i32 to index
      %c0_100 = arith.constant 0 : index
      %c0_101 = arith.constant 0 : index
      %208 = vector.load %arg8[%207, %c0_100, %c0_101] : memref<98x16x128xf32, #tpu.memory_space<vmem>>, vector<1x16x128xf32>
      %209 = vector.shape_cast %208 : vector<1x16x128xf32> to vector<16x128xf32>
      %210 = vector.extract_strided_slice %22 {offsets = [22, 0], sizes = [1, 128], strides = [1, 1]} : vector<49x128xf32> to vector<1x128xf32>
      %211 = vector.broadcast %210 : vector<1x128xf32> to vector<16x128xf32>
      %212 = arith.mulf %209, %211 : vector<16x128xf32>
      %213 = arith.addf %205, %212 : vector<16x128xf32>
      %c28_i32_102 = arith.constant 28 : i32
      %214 = arith.addi %c28_i32_102, %197 : i32
      %215 = arith.index_cast %214 : i32 to index
      %c0_103 = arith.constant 0 : index
      %c0_104 = arith.constant 0 : index
      %216 = vector.load %arg8[%215, %c0_103, %c0_104] : memref<98x16x128xf32, #tpu.memory_space<vmem>>, vector<1x16x128xf32>
      %217 = vector.shape_cast %216 : vector<1x16x128xf32> to vector<16x128xf32>
      %218 = vector.extract_strided_slice %22 {offsets = [23, 0], sizes = [1, 128], strides = [1, 1]} : vector<49x128xf32> to vector<1x128xf32>
      %219 = vector.broadcast %218 : vector<1x128xf32> to vector<16x128xf32>
      %220 = arith.mulf %217, %219 : vector<16x128xf32>
      %221 = arith.addf %213, %220 : vector<16x128xf32>
      %c42_i32_105 = arith.constant 42 : i32
      %222 = arith.addi %c42_i32_105, %197 : i32
      %223 = arith.index_cast %222 : i32 to index
      %c0_106 = arith.constant 0 : index
      %c0_107 = arith.constant 0 : index
      %224 = vector.load %arg8[%223, %c0_106, %c0_107] : memref<98x16x128xf32, #tpu.memory_space<vmem>>, vector<1x16x128xf32>
      %225 = vector.shape_cast %224 : vector<1x16x128xf32> to vector<16x128xf32>
      %226 = vector.extract_strided_slice %22 {offsets = [24, 0], sizes = [1, 128], strides = [1, 1]} : vector<49x128xf32> to vector<1x128xf32>
      %227 = vector.broadcast %226 : vector<1x128xf32> to vector<16x128xf32>
      %228 = arith.mulf %225, %227 : vector<16x128xf32>
      %229 = arith.addf %221, %228 : vector<16x128xf32>
      %c56_i32_108 = arith.constant 56 : i32
      %230 = arith.addi %c56_i32_108, %197 : i32
      %231 = arith.index_cast %230 : i32 to index
      %c0_109 = arith.constant 0 : index
      %c0_110 = arith.constant 0 : index
      %232 = vector.load %arg8[%231, %c0_109, %c0_110] : memref<98x16x128xf32, #tpu.memory_space<vmem>>, vector<1x16x128xf32>
      %233 = vector.shape_cast %232 : vector<1x16x128xf32> to vector<16x128xf32>
      %234 = vector.extract_strided_slice %22 {offsets = [25, 0], sizes = [1, 128], strides = [1, 1]} : vector<49x128xf32> to vector<1x128xf32>
      %235 = vector.broadcast %234 : vector<1x128xf32> to vector<16x128xf32>
      %236 = arith.mulf %233, %235 : vector<16x128xf32>
      %237 = arith.addf %229, %236 : vector<16x128xf32>
      %c70_i32_111 = arith.constant 70 : i32
      %238 = arith.addi %c70_i32_111, %197 : i32
      %239 = arith.index_cast %238 : i32 to index
      %c0_112 = arith.constant 0 : index
      %c0_113 = arith.constant 0 : index
      %240 = vector.load %arg8[%239, %c0_112, %c0_113] : memref<98x16x128xf32, #tpu.memory_space<vmem>>, vector<1x16x128xf32>
      %241 = vector.shape_cast %240 : vector<1x16x128xf32> to vector<16x128xf32>
      %242 = vector.extract_strided_slice %22 {offsets = [26, 0], sizes = [1, 128], strides = [1, 1]} : vector<49x128xf32> to vector<1x128xf32>
      %243 = vector.broadcast %242 : vector<1x128xf32> to vector<16x128xf32>
      %244 = arith.mulf %241, %243 : vector<16x128xf32>
      %245 = arith.addf %237, %244 : vector<16x128xf32>
      %c84_i32_114 = arith.constant 84 : i32
      %246 = arith.addi %c84_i32_114, %197 : i32
      %247 = arith.index_cast %246 : i32 to index
      %c0_115 = arith.constant 0 : index
      %c0_116 = arith.constant 0 : index
      %248 = vector.load %arg8[%247, %c0_115, %c0_116] : memref<98x16x128xf32, #tpu.memory_space<vmem>>, vector<1x16x128xf32>
      %249 = vector.shape_cast %248 : vector<1x16x128xf32> to vector<16x128xf32>
      %250 = vector.extract_strided_slice %22 {offsets = [27, 0], sizes = [1, 128], strides = [1, 1]} : vector<49x128xf32> to vector<1x128xf32>
      %251 = vector.broadcast %250 : vector<1x128xf32> to vector<16x128xf32>
      %252 = arith.mulf %249, %251 : vector<16x128xf32>
      %253 = arith.addf %245, %252 : vector<16x128xf32>
      %c4_i32 = arith.constant 4 : i32
      %254 = arith.addi %arg10, %c4_i32 : i32
      %c0_i32_117 = arith.constant 0 : i32
      %255 = arith.addi %c0_i32_117, %254 : i32
      %256 = arith.index_cast %255 : i32 to index
      %c0_118 = arith.constant 0 : index
      %c0_119 = arith.constant 0 : index
      %257 = vector.load %arg8[%256, %c0_118, %c0_119] : memref<98x16x128xf32, #tpu.memory_space<vmem>>, vector<1x16x128xf32>
      %258 = vector.shape_cast %257 : vector<1x16x128xf32> to vector<16x128xf32>
      %259 = vector.extract_strided_slice %22 {offsets = [28, 0], sizes = [1, 128], strides = [1, 1]} : vector<49x128xf32> to vector<1x128xf32>
      %260 = vector.broadcast %259 : vector<1x128xf32> to vector<16x128xf32>
      %261 = arith.mulf %258, %260 : vector<16x128xf32>
      %262 = arith.addf %253, %261 : vector<16x128xf32>
      %c14_i32_120 = arith.constant 14 : i32
      %263 = arith.addi %c14_i32_120, %254 : i32
      %264 = arith.index_cast %263 : i32 to index
      %c0_121 = arith.constant 0 : index
      %c0_122 = arith.constant 0 : index
      %265 = vector.load %arg8[%264, %c0_121, %c0_122] : memref<98x16x128xf32, #tpu.memory_space<vmem>>, vector<1x16x128xf32>
      %266 = vector.shape_cast %265 : vector<1x16x128xf32> to vector<16x128xf32>
      %267 = vector.extract_strided_slice %22 {offsets = [29, 0], sizes = [1, 128], strides = [1, 1]} : vector<49x128xf32> to vector<1x128xf32>
      %268 = vector.broadcast %267 : vector<1x128xf32> to vector<16x128xf32>
      %269 = arith.mulf %266, %268 : vector<16x128xf32>
      %270 = arith.addf %262, %269 : vector<16x128xf32>
      %c28_i32_123 = arith.constant 28 : i32
      %271 = arith.addi %c28_i32_123, %254 : i32
      %272 = arith.index_cast %271 : i32 to index
      %c0_124 = arith.constant 0 : index
      %c0_125 = arith.constant 0 : index
      %273 = vector.load %arg8[%272, %c0_124, %c0_125] : memref<98x16x128xf32, #tpu.memory_space<vmem>>, vector<1x16x128xf32>
      %274 = vector.shape_cast %273 : vector<1x16x128xf32> to vector<16x128xf32>
      %275 = vector.extract_strided_slice %22 {offsets = [30, 0], sizes = [1, 128], strides = [1, 1]} : vector<49x128xf32> to vector<1x128xf32>
      %276 = vector.broadcast %275 : vector<1x128xf32> to vector<16x128xf32>
      %277 = arith.mulf %274, %276 : vector<16x128xf32>
      %278 = arith.addf %270, %277 : vector<16x128xf32>
      %c42_i32_126 = arith.constant 42 : i32
      %279 = arith.addi %c42_i32_126, %254 : i32
      %280 = arith.index_cast %279 : i32 to index
      %c0_127 = arith.constant 0 : index
      %c0_128 = arith.constant 0 : index
      %281 = vector.load %arg8[%280, %c0_127, %c0_128] : memref<98x16x128xf32, #tpu.memory_space<vmem>>, vector<1x16x128xf32>
      %282 = vector.shape_cast %281 : vector<1x16x128xf32> to vector<16x128xf32>
      %283 = vector.extract_strided_slice %22 {offsets = [31, 0], sizes = [1, 128], strides = [1, 1]} : vector<49x128xf32> to vector<1x128xf32>
      %284 = vector.broadcast %283 : vector<1x128xf32> to vector<16x128xf32>
      %285 = arith.mulf %282, %284 : vector<16x128xf32>
      %286 = arith.addf %278, %285 : vector<16x128xf32>
      %c56_i32_129 = arith.constant 56 : i32
      %287 = arith.addi %c56_i32_129, %254 : i32
      %288 = arith.index_cast %287 : i32 to index
      %c0_130 = arith.constant 0 : index
      %c0_131 = arith.constant 0 : index
      %289 = vector.load %arg8[%288, %c0_130, %c0_131] : memref<98x16x128xf32, #tpu.memory_space<vmem>>, vector<1x16x128xf32>
      %290 = vector.shape_cast %289 : vector<1x16x128xf32> to vector<16x128xf32>
      %291 = vector.extract_strided_slice %22 {offsets = [32, 0], sizes = [1, 128], strides = [1, 1]} : vector<49x128xf32> to vector<1x128xf32>
      %292 = vector.broadcast %291 : vector<1x128xf32> to vector<16x128xf32>
      %293 = arith.mulf %290, %292 : vector<16x128xf32>
      %294 = arith.addf %286, %293 : vector<16x128xf32>
      %c70_i32_132 = arith.constant 70 : i32
      %295 = arith.addi %c70_i32_132, %254 : i32
      %296 = arith.index_cast %295 : i32 to index
      %c0_133 = arith.constant 0 : index
      %c0_134 = arith.constant 0 : index
      %297 = vector.load %arg8[%296, %c0_133, %c0_134] : memref<98x16x128xf32, #tpu.memory_space<vmem>>, vector<1x16x128xf32>
      %298 = vector.shape_cast %297 : vector<1x16x128xf32> to vector<16x128xf32>
      %299 = vector.extract_strided_slice %22 {offsets = [33, 0], sizes = [1, 128], strides = [1, 1]} : vector<49x128xf32> to vector<1x128xf32>
      %300 = vector.broadcast %299 : vector<1x128xf32> to vector<16x128xf32>
      %301 = arith.mulf %298, %300 : vector<16x128xf32>
      %302 = arith.addf %294, %301 : vector<16x128xf32>
      %c84_i32_135 = arith.constant 84 : i32
      %303 = arith.addi %c84_i32_135, %254 : i32
      %304 = arith.index_cast %303 : i32 to index
      %c0_136 = arith.constant 0 : index
      %c0_137 = arith.constant 0 : index
      %305 = vector.load %arg8[%304, %c0_136, %c0_137] : memref<98x16x128xf32, #tpu.memory_space<vmem>>, vector<1x16x128xf32>
      %306 = vector.shape_cast %305 : vector<1x16x128xf32> to vector<16x128xf32>
      %307 = vector.extract_strided_slice %22 {offsets = [34, 0], sizes = [1, 128], strides = [1, 1]} : vector<49x128xf32> to vector<1x128xf32>
      %308 = vector.broadcast %307 : vector<1x128xf32> to vector<16x128xf32>
      %309 = arith.mulf %306, %308 : vector<16x128xf32>
      %310 = arith.addf %302, %309 : vector<16x128xf32>
      %c5_i32 = arith.constant 5 : i32
      %311 = arith.addi %arg10, %c5_i32 : i32
      %c0_i32_138 = arith.constant 0 : i32
      %312 = arith.addi %c0_i32_138, %311 : i32
      %313 = arith.index_cast %312 : i32 to index
      %c0_139 = arith.constant 0 : index
      %c0_140 = arith.constant 0 : index
      %314 = vector.load %arg8[%313, %c0_139, %c0_140] : memref<98x16x128xf32, #tpu.memory_space<vmem>>, vector<1x16x128xf32>
      %315 = vector.shape_cast %314 : vector<1x16x128xf32> to vector<16x128xf32>
      %316 = vector.extract_strided_slice %22 {offsets = [35, 0], sizes = [1, 128], strides = [1, 1]} : vector<49x128xf32> to vector<1x128xf32>
      %317 = vector.broadcast %316 : vector<1x128xf32> to vector<16x128xf32>
      %318 = arith.mulf %315, %317 : vector<16x128xf32>
      %319 = arith.addf %310, %318 : vector<16x128xf32>
      %c14_i32_141 = arith.constant 14 : i32
      %320 = arith.addi %c14_i32_141, %311 : i32
      %321 = arith.index_cast %320 : i32 to index
      %c0_142 = arith.constant 0 : index
      %c0_143 = arith.constant 0 : index
      %322 = vector.load %arg8[%321, %c0_142, %c0_143] : memref<98x16x128xf32, #tpu.memory_space<vmem>>, vector<1x16x128xf32>
      %323 = vector.shape_cast %322 : vector<1x16x128xf32> to vector<16x128xf32>
      %324 = vector.extract_strided_slice %22 {offsets = [36, 0], sizes = [1, 128], strides = [1, 1]} : vector<49x128xf32> to vector<1x128xf32>
      %325 = vector.broadcast %324 : vector<1x128xf32> to vector<16x128xf32>
      %326 = arith.mulf %323, %325 : vector<16x128xf32>
      %327 = arith.addf %319, %326 : vector<16x128xf32>
      %c28_i32_144 = arith.constant 28 : i32
      %328 = arith.addi %c28_i32_144, %311 : i32
      %329 = arith.index_cast %328 : i32 to index
      %c0_145 = arith.constant 0 : index
      %c0_146 = arith.constant 0 : index
      %330 = vector.load %arg8[%329, %c0_145, %c0_146] : memref<98x16x128xf32, #tpu.memory_space<vmem>>, vector<1x16x128xf32>
      %331 = vector.shape_cast %330 : vector<1x16x128xf32> to vector<16x128xf32>
      %332 = vector.extract_strided_slice %22 {offsets = [37, 0], sizes = [1, 128], strides = [1, 1]} : vector<49x128xf32> to vector<1x128xf32>
      %333 = vector.broadcast %332 : vector<1x128xf32> to vector<16x128xf32>
      %334 = arith.mulf %331, %333 : vector<16x128xf32>
      %335 = arith.addf %327, %334 : vector<16x128xf32>
      %c42_i32_147 = arith.constant 42 : i32
      %336 = arith.addi %c42_i32_147, %311 : i32
      %337 = arith.index_cast %336 : i32 to index
      %c0_148 = arith.constant 0 : index
      %c0_149 = arith.constant 0 : index
      %338 = vector.load %arg8[%337, %c0_148, %c0_149] : memref<98x16x128xf32, #tpu.memory_space<vmem>>, vector<1x16x128xf32>
      %339 = vector.shape_cast %338 : vector<1x16x128xf32> to vector<16x128xf32>
      %340 = vector.extract_strided_slice %22 {offsets = [38, 0], sizes = [1, 128], strides = [1, 1]} : vector<49x128xf32> to vector<1x128xf32>
      %341 = vector.broadcast %340 : vector<1x128xf32> to vector<16x128xf32>
      %342 = arith.mulf %339, %341 : vector<16x128xf32>
      %343 = arith.addf %335, %342 : vector<16x128xf32>
      %c56_i32_150 = arith.constant 56 : i32
      %344 = arith.addi %c56_i32_150, %311 : i32
      %345 = arith.index_cast %344 : i32 to index
      %c0_151 = arith.constant 0 : index
      %c0_152 = arith.constant 0 : index
      %346 = vector.load %arg8[%345, %c0_151, %c0_152] : memref<98x16x128xf32, #tpu.memory_space<vmem>>, vector<1x16x128xf32>
      %347 = vector.shape_cast %346 : vector<1x16x128xf32> to vector<16x128xf32>
      %348 = vector.extract_strided_slice %22 {offsets = [39, 0], sizes = [1, 128], strides = [1, 1]} : vector<49x128xf32> to vector<1x128xf32>
      %349 = vector.broadcast %348 : vector<1x128xf32> to vector<16x128xf32>
      %350 = arith.mulf %347, %349 : vector<16x128xf32>
      %351 = arith.addf %343, %350 : vector<16x128xf32>
      %c70_i32_153 = arith.constant 70 : i32
      %352 = arith.addi %c70_i32_153, %311 : i32
      %353 = arith.index_cast %352 : i32 to index
      %c0_154 = arith.constant 0 : index
      %c0_155 = arith.constant 0 : index
      %354 = vector.load %arg8[%353, %c0_154, %c0_155] : memref<98x16x128xf32, #tpu.memory_space<vmem>>, vector<1x16x128xf32>
      %355 = vector.shape_cast %354 : vector<1x16x128xf32> to vector<16x128xf32>
      %356 = vector.extract_strided_slice %22 {offsets = [40, 0], sizes = [1, 128], strides = [1, 1]} : vector<49x128xf32> to vector<1x128xf32>
      %357 = vector.broadcast %356 : vector<1x128xf32> to vector<16x128xf32>
      %358 = arith.mulf %355, %357 : vector<16x128xf32>
      %359 = arith.addf %351, %358 : vector<16x128xf32>
      %c84_i32_156 = arith.constant 84 : i32
      %360 = arith.addi %c84_i32_156, %311 : i32
      %361 = arith.index_cast %360 : i32 to index
      %c0_157 = arith.constant 0 : index
      %c0_158 = arith.constant 0 : index
      %362 = vector.load %arg8[%361, %c0_157, %c0_158] : memref<98x16x128xf32, #tpu.memory_space<vmem>>, vector<1x16x128xf32>
      %363 = vector.shape_cast %362 : vector<1x16x128xf32> to vector<16x128xf32>
      %364 = vector.extract_strided_slice %22 {offsets = [41, 0], sizes = [1, 128], strides = [1, 1]} : vector<49x128xf32> to vector<1x128xf32>
      %365 = vector.broadcast %364 : vector<1x128xf32> to vector<16x128xf32>
      %366 = arith.mulf %363, %365 : vector<16x128xf32>
      %367 = arith.addf %359, %366 : vector<16x128xf32>
      %c6_i32 = arith.constant 6 : i32
      %368 = arith.addi %arg10, %c6_i32 : i32
      %c0_i32_159 = arith.constant 0 : i32
      %369 = arith.addi %c0_i32_159, %368 : i32
      %370 = arith.index_cast %369 : i32 to index
      %c0_160 = arith.constant 0 : index
      %c0_161 = arith.constant 0 : index
      %371 = vector.load %arg8[%370, %c0_160, %c0_161] : memref<98x16x128xf32, #tpu.memory_space<vmem>>, vector<1x16x128xf32>
      %372 = vector.shape_cast %371 : vector<1x16x128xf32> to vector<16x128xf32>
      %373 = vector.extract_strided_slice %22 {offsets = [42, 0], sizes = [1, 128], strides = [1, 1]} : vector<49x128xf32> to vector<1x128xf32>
      %374 = vector.broadcast %373 : vector<1x128xf32> to vector<16x128xf32>
      %375 = arith.mulf %372, %374 : vector<16x128xf32>
      %376 = arith.addf %367, %375 : vector<16x128xf32>
      %c14_i32_162 = arith.constant 14 : i32
      %377 = arith.addi %c14_i32_162, %368 : i32
      %378 = arith.index_cast %377 : i32 to index
      %c0_163 = arith.constant 0 : index
      %c0_164 = arith.constant 0 : index
      %379 = vector.load %arg8[%378, %c0_163, %c0_164] : memref<98x16x128xf32, #tpu.memory_space<vmem>>, vector<1x16x128xf32>
      %380 = vector.shape_cast %379 : vector<1x16x128xf32> to vector<16x128xf32>
      %381 = vector.extract_strided_slice %22 {offsets = [43, 0], sizes = [1, 128], strides = [1, 1]} : vector<49x128xf32> to vector<1x128xf32>
      %382 = vector.broadcast %381 : vector<1x128xf32> to vector<16x128xf32>
      %383 = arith.mulf %380, %382 : vector<16x128xf32>
      %384 = arith.addf %376, %383 : vector<16x128xf32>
      %c28_i32_165 = arith.constant 28 : i32
      %385 = arith.addi %c28_i32_165, %368 : i32
      %386 = arith.index_cast %385 : i32 to index
      %c0_166 = arith.constant 0 : index
      %c0_167 = arith.constant 0 : index
      %387 = vector.load %arg8[%386, %c0_166, %c0_167] : memref<98x16x128xf32, #tpu.memory_space<vmem>>, vector<1x16x128xf32>
      %388 = vector.shape_cast %387 : vector<1x16x128xf32> to vector<16x128xf32>
      %389 = vector.extract_strided_slice %22 {offsets = [44, 0], sizes = [1, 128], strides = [1, 1]} : vector<49x128xf32> to vector<1x128xf32>
      %390 = vector.broadcast %389 : vector<1x128xf32> to vector<16x128xf32>
      %391 = arith.mulf %388, %390 : vector<16x128xf32>
      %392 = arith.addf %384, %391 : vector<16x128xf32>
      %c42_i32_168 = arith.constant 42 : i32
      %393 = arith.addi %c42_i32_168, %368 : i32
      %394 = arith.index_cast %393 : i32 to index
      %c0_169 = arith.constant 0 : index
      %c0_170 = arith.constant 0 : index
      %395 = vector.load %arg8[%394, %c0_169, %c0_170] : memref<98x16x128xf32, #tpu.memory_space<vmem>>, vector<1x16x128xf32>
      %396 = vector.shape_cast %395 : vector<1x16x128xf32> to vector<16x128xf32>
      %397 = vector.extract_strided_slice %22 {offsets = [45, 0], sizes = [1, 128], strides = [1, 1]} : vector<49x128xf32> to vector<1x128xf32>
      %398 = vector.broadcast %397 : vector<1x128xf32> to vector<16x128xf32>
      %399 = arith.mulf %396, %398 : vector<16x128xf32>
      %400 = arith.addf %392, %399 : vector<16x128xf32>
      %c56_i32_171 = arith.constant 56 : i32
      %401 = arith.addi %c56_i32_171, %368 : i32
      %402 = arith.index_cast %401 : i32 to index
      %c0_172 = arith.constant 0 : index
      %c0_173 = arith.constant 0 : index
      %403 = vector.load %arg8[%402, %c0_172, %c0_173] : memref<98x16x128xf32, #tpu.memory_space<vmem>>, vector<1x16x128xf32>
      %404 = vector.shape_cast %403 : vector<1x16x128xf32> to vector<16x128xf32>
      %405 = vector.extract_strided_slice %22 {offsets = [46, 0], sizes = [1, 128], strides = [1, 1]} : vector<49x128xf32> to vector<1x128xf32>
      %406 = vector.broadcast %405 : vector<1x128xf32> to vector<16x128xf32>
      %407 = arith.mulf %404, %406 : vector<16x128xf32>
      %408 = arith.addf %400, %407 : vector<16x128xf32>
      %c70_i32_174 = arith.constant 70 : i32
      %409 = arith.addi %c70_i32_174, %368 : i32
      %410 = arith.index_cast %409 : i32 to index
      %c0_175 = arith.constant 0 : index
      %c0_176 = arith.constant 0 : index
      %411 = vector.load %arg8[%410, %c0_175, %c0_176] : memref<98x16x128xf32, #tpu.memory_space<vmem>>, vector<1x16x128xf32>
      %412 = vector.shape_cast %411 : vector<1x16x128xf32> to vector<16x128xf32>
      %413 = vector.extract_strided_slice %22 {offsets = [47, 0], sizes = [1, 128], strides = [1, 1]} : vector<49x128xf32> to vector<1x128xf32>
      %414 = vector.broadcast %413 : vector<1x128xf32> to vector<16x128xf32>
      %415 = arith.mulf %412, %414 : vector<16x128xf32>
      %416 = arith.addf %408, %415 : vector<16x128xf32>
      %c84_i32_177 = arith.constant 84 : i32
      %417 = arith.addi %c84_i32_177, %368 : i32
      %418 = arith.index_cast %417 : i32 to index
      %c0_178 = arith.constant 0 : index
      %c0_179 = arith.constant 0 : index
      %419 = vector.load %arg8[%418, %c0_178, %c0_179] : memref<98x16x128xf32, #tpu.memory_space<vmem>>, vector<1x16x128xf32>
      %420 = vector.shape_cast %419 : vector<1x16x128xf32> to vector<16x128xf32>
      %421 = vector.extract_strided_slice %22 {offsets = [48, 0], sizes = [1, 128], strides = [1, 1]} : vector<49x128xf32> to vector<1x128xf32>
      %422 = vector.broadcast %421 : vector<1x128xf32> to vector<16x128xf32>
      %423 = arith.mulf %420, %422 : vector<16x128xf32>
      %424 = arith.addf %416, %423 : vector<16x128xf32>
      %425 = vector.broadcast %23 : vector<1x128xf32> to vector<16x128xf32>
      %426 = arith.addf %424, %425 : vector<16x128xf32>
      %c0_180 = arith.constant 0 : index
      %427 = arith.index_cast %arg10 : i32 to index
      %c0_181 = arith.constant 0 : index
      %c0_182 = arith.constant 0 : index
      %428 = vector.load %arg6[%c0_180, %427, %c0_181, %c0_182] : memref<1x8x16x128xf32, #tpu.memory_space<vmem>>, vector<1x1x16x128xf32>
      %429 = vector.shape_cast %428 : vector<1x1x16x128xf32> to vector<16x128xf32>
      %430 = vector.shape_cast %426 : vector<16x128xf32> to vector<1x1x16x128xf32>
      tpu.vector_store %arg6[%c0_180, %427, %c0_181, %c0_182], %430 {strides = array<i32>} : memref<1x8x16x128xf32, #tpu.memory_space<vmem>>, vector<1x1x16x128xf32>,
    }
    %c8_i32_36 = arith.constant 8 : i32
    return
  }
  func.func @transform_1(%arg0: i32, %arg1: i32, %arg2: i32) -> (i32, i32) {
    %c0_i32 = arith.constant 0 : i32
    %c0_i32_0 = arith.constant 0 : i32
    return %c0_i32, %arg2 : i32, i32
  }
  func.func @transform_2(%arg0: i32, %arg1: i32, %arg2: i32) -> (i32, i32) {
    %c0_i32 = arith.constant 0 : i32
    %c0_i32_0 = arith.constant 0 : i32
    return %c0_i32, %arg2 : i32, i32
  }
  func.func @transform_3(%arg0: i32, %arg1: i32, %arg2: i32) -> (i32, i32, i32, i32) {
    %c0_i32 = arith.constant 0 : i32
    %c0_i32_0 = arith.constant 0 : i32
    return %arg0, %arg1, %c0_i32, %arg2 : i32, i32, i32, i32
  }
}

</mosaic_0001>

<llo_original>
// kernel: gnconv_forward.3
$region0: #{gnconv_forward.3}
  #allocation0 [shape = 'u32[]', space=smem, size = 0x4, offset = 0x4, fixed_abs, tag = 'smem constant byte address 0x4 - core index']
  #allocation1 [shape = 'u32[72,128]{1,0:T(1,128)}', space=vmem, size = 0x9000, scoped, tag = 'internal scratch']
  %s0 = inlined_call_operand.hbm [shape: f32[512,32], index: 0, kind: input, shape index: {}]
  %s1 = inlined_call_operand.hbm [shape: f32[32,128], index: 1, kind: input, shape index: {}]
  %s2 = inlined_call_operand.vmem [shape: f32[1,128], index: 2, kind: input, shape index: {}]
  %s3 = inlined_call_operand.hbm [shape: f32[32,128], index: 3, kind: input, shape index: {}]
  %s4 = inlined_call_operand.hbm [shape: f32[1,128], index: 4, kind: input, shape index: {}]
  %s5 = inlined_call_operand.vmem [shape: f32[512,128], index: 5, kind: output, shape index: {0}]
  %s6 = inlined_call_operand.vmem [shape: f32[512,128], index: 6, kind: output, shape index: {1}]
  %7 = xla_tuple %s5, %s6
  %s8 = sld [smem:[#allocation0]]
  $region54: #{gnconv_forward.3} parent=0
    _
  %s10 = ssub.s32 1, %s8
  %s11 = scalar_select 0, %s10, %s8
  $region1: #{gnconv_forward.3} parent=0
    #allocation2 [shape = 'u8[262144]{0}', space=vmem, size = 0x40000, scoped, tag = 'input window, operand 0, single buffered']
    #allocation3 [shape = 's32[1]{0}', space=sflag, size = 0x4, scoped, tag = 'scoped memory for gnconv_forward.3']
    #allocation4 [shape = 'u8[16384]{0}', space=vmem, size = 0x4000, scoped, tag = 'input window, operand 1, single buffered']
    #allocation5 [shape = 's32[1]{0}', space=sflag, size = 0x4, scoped, tag = 'scoped memory for gnconv_forward.3']
    #allocation6 [shape = 'u8[16384]{0}', space=vmem, size = 0x4000, scoped, tag = 'input window, operand 3, single buffered']
    #allocation7 [shape = 'u8[512]{0}', space=vmem, size = 0x400, scoped, tag = 'input window, operand 4, single buffered']
    #allocation8 [shape = 's32[1]{0}', space=sflag, size = 0x4, scoped, tag = 'scoped memory for gnconv_forward.3']
    %12 = vsyncpa [#allocation3], 0
    %13 = vsyncpa [#allocation5], 0
    %14 = vsyncpa [#allocation8], 0
    // Predicated region
    $region2: #{gnconv_forward.3} parent=1 // pred_check
      _
    $region3: #{gnconv_forward.3} parent=1 // pred_check_branch
      %16 = sbr.rel (0) target = $region5
    $region4: #{gnconv_forward.3} parent=1 // pred_region
      %18 = vsyncadd [#allocation3], 0
      %s19 = sshll.u32 %s0, 4
      %s20 = int_to_ptr.hbm [resolvable:$true] %s19
      %s21 = sshll.u32 [#allocation2], 4
      %s22 = int_to_ptr.vmem [resolvable:$true] %s21
      %27 = dma.hbm_to_vmem [thread:$0]  %s20, 8192, %s22, [#allocation3], 128, 128, 8
    $region5: #{gnconv_forward.3} parent=1 // pred_fallthru
      _
    // Predicated region
    $region6: #{gnconv_forward.3} parent=1 // pred_check
      _
    $region7: #{gnconv_forward.3} parent=1 // pred_check_branch
      %29 = sbr.rel (0) target = $region9
    $region8: #{gnconv_forward.3} parent=1 // pred_region
      %31 = vsyncadd [#allocation5], 0
      %s32 = sshll.u32 %s1, 4
      %s33 = int_to_ptr.hbm [resolvable:$true] %s32
      %s34 = sshll.u32 [#allocation4], 4
      %s35 = int_to_ptr.vmem [resolvable:$true] %s34
      %40 = dma.hbm_to_vmem [thread:$0]  %s33, 512, %s35, [#allocation5], 128, 128, 8
    $region9: #{gnconv_forward.3} parent=1 // pred_fallthru
      _
    // Predicated region
    $region10: #{gnconv_forward.3} parent=1 // pred_check
      _
    $region11: #{gnconv_forward.3} parent=1 // pred_check_branch
      %42 = sbr.rel (0) target = $region13
    $region12: #{gnconv_forward.3} parent=1 // pred_region
      _
    $region13: #{gnconv_forward.3} parent=1 // pred_fallthru
      _
    // Predicated region
    $region14: #{gnconv_forward.3} parent=1 // pred_check
      _
    $region15: #{gnconv_forward.3} parent=1 // pred_check_branch
      %44 = sbr.rel (0) target = $region17
    $region16: #{gnconv_forward.3} parent=1 // pred_region
      %46 = vsyncadd [#allocation5], 0
      %s47 = sshll.u32 %s3, 4
      %s48 = int_to_ptr.hbm [resolvable:$true] %s47
      %s49 = sshll.u32 [#allocation6], 4
      %s50 = int_to_ptr.vmem [resolvable:$true] %s49
      %55 = dma.hbm_to_vmem [thread:$0]  %s48, 512, %s50, [#allocation5], 128, 128, 8
    $region17: #{gnconv_forward.3} parent=1 // pred_fallthru
      _
    // Predicated region
    $region18: #{gnconv_forward.3} parent=1 // pred_check
      _
    $region19: #{gnconv_forward.3} parent=1 // pred_check_branch
      %57 = sbr.rel (0) target = $region21
    $region20: #{gnconv_forward.3} parent=1 // pred_region
      %59 = vsyncadd [#allocation8], 0
      %s61 = sshll.u32 %s4, 4
      %s62 = int_to_ptr.hbm [resolvable:$true] %s61
      %s63 = sshll.u32 [#allocation7], 4
      %s64 = int_to_ptr.vmem [resolvable:$true] %s63
      %66 = dma.hbm_to_vmem [thread:$0]  %s62, 16, %s64, [#allocation8]
    $region21: #{gnconv_forward.3} parent=1 // pred_fallthru
      _
    // Predicated region
    $region22: #{gnconv_forward.3} parent=1 // pred_check
      _
    $region23: #{gnconv_forward.3} parent=1 // pred_check_branch
      %68 = sbr.rel (0) target = $region25
    $region24: #{gnconv_forward.3} parent=1 // pred_region
      %70 = dma.done [#allocation3], 8192
    $region25: #{gnconv_forward.3} parent=1 // pred_fallthru
      _
    // Predicated region
    $region26: #{gnconv_forward.3} parent=1 // pred_check
      _
    $region27: #{gnconv_forward.3} parent=1 // pred_check_branch
      %72 = sbr.rel (0) target = $region29
    $region28: #{gnconv_forward.3} parent=1 // pred_region
      %74 = dma.done [#allocation5], 512
    $region29: #{gnconv_forward.3} parent=1 // pred_fallthru
      _
    // Predicated region
    $region30: #{gnconv_forward.3} parent=1 // pred_check
      _
    $region31: #{gnconv_forward.3} parent=1 // pred_check_branch
      %76 = sbr.rel (0) target = $region33
    $region32: #{gnconv_forward.3} parent=1 // pred_region
      %78 = dma.done [#allocation5], 512
    $region33: #{gnconv_forward.3} parent=1 // pred_fallthru
      _
    // Predicated region
    $region34: #{gnconv_forward.3} parent=1 // pred_check
      _
    $region35: #{gnconv_forward.3} parent=1 // pred_check_branch
      %80 = sbr.rel (0) target = $region37
    $region36: #{gnconv_forward.3} parent=1 // pred_region
      %82 = dma.done [#allocation8], 16
    $region37: #{gnconv_forward.3} parent=1 // pred_fallthru
      _
    %v83 = vld [vmem:[#allocation2] sm:$0xff]
    %v84 = vld [vmem:[#allocation2 + $0x8] sm:$0xff]
    %v85 = vld [vmem:[#allocation2 + $0x10] sm:$0xff]
    %v86 = vld [vmem:[#allocation2 + $0x18] sm:$0xff]
    %v87 = vld [vmem:[#allocation2 + $0x20] sm:$0xff]
    %v88 = vld [vmem:[#allocation2 + $0x28] sm:$0xff]
    %v89 = vld [vmem:[#allocation2 + $0x30] sm:$0xff]
    %v90 = vld [vmem:[#allocation2 + $0x38] sm:$0xff]
    %v91 = vld [vmem:[#allocation2 + $0x40] sm:$0xff]
    %v92 = vld [vmem:[#allocation2 + $0x48] sm:$0xff]
    %v93 = vld [vmem:[#allocation2 + $0x50] sm:$0xff]
    %v94 = vld [vmem:[#allocation2 + $0x58] sm:$0xff]
    %v95 = vld [vmem:[#allocation2 + $0x60] sm:$0xff]
    %v96 = vld [vmem:[#allocation2 + $0x68] sm:$0xff]
    %v97 = vld [vmem:[#allocation2 + $0x70] sm:$0xff]
    %v98 = vld [vmem:[#allocation2 + $0x78] sm:$0xff]
    %v99 = vld [vmem:[#allocation2 + $0x80] sm:$0xff]
    %v100 = vld [vmem:[#allocation2 + $0x88] sm:$0xff]
    %v101 = vld [vmem:[#allocation2 + $0x90] sm:$0xff]
    %v102 = vld [vmem:[#allocation2 + $0x98] sm:$0xff]
    %v103 = vld [vmem:[#allocation2 + $0xa0] sm:$0xff]
    %v104 = vld [vmem:[#allocation2 + $0xa8] sm:$0xff]
    %v105 = vld [vmem:[#allocation2 + $0xb0] sm:$0xff]
    %v106 = vld [vmem:[#allocation2 + $0xb8] sm:$0xff]
    %v107 = vld [vmem:[#allocation2 + $0xc0] sm:$0xff]
    %v108 = vld [vmem:[#allocation2 + $0xc8] sm:$0xff]
    %v109 = vld [vmem:[#allocation2 + $0xd0] sm:$0xff]
    %v110 = vld [vmem:[#allocation2 + $0xd8] sm:$0xff]
    %v111 = vld [vmem:[#allocation2 + $0xe0] sm:$0xff]
    %v112 = vld [vmem:[#allocation2 + $0xe8] sm:$0xff]
    %v113 = vld [vmem:[#allocation2 + $0xf0] sm:$0xff]
    %v114 = vld [vmem:[#allocation2 + $0xf8] sm:$0xff]
    %v115 = vld [vmem:[#allocation2 + $0x100] sm:$0xff]
    %v116 = vld [vmem:[#allocation2 + $0x108] sm:$0xff]
    %v117 = vld [vmem:[#allocation2 + $0x110] sm:$0xff]
    %v118 = vld [vmem:[#allocation2 + $0x118] sm:$0xff]
    %v119 = vld [vmem:[#allocation2 + $0x120] sm:$0xff]
    %v120 = vld [vmem:[#allocation2 + $0x128] sm:$0xff]
    %v121 = vld [vmem:[#allocation2 + $0x130] sm:$0xff]
    %v122 = vld [vmem:[#allocation2 + $0x138] sm:$0xff]
    %v123 = vld [vmem:[#allocation2 + $0x140] sm:$0xff]
    %v124 = vld [vmem:[#allocation2 + $0x148] sm:$0xff]
    %v125 = vld [vmem:[#allocation2 + $0x150] sm:$0xff]
    %v126 = vld [vmem:[#allocation2 + $0x158] sm:$0xff]
    %v127 = vld [vmem:[#allocation2 + $0x160] sm:$0xff]
    %v128 = vld [vmem:[#allocation2 + $0x168] sm:$0xff]
    %v129 = vld [vmem:[#allocation2 + $0x170] sm:$0xff]
    %v130 = vld [vmem:[#allocation2 + $0x178] sm:$0xff]
    %v131 = vld [vmem:[#allocation2 + $0x180] sm:$0xff]
    %v132 = vld [vmem:[#allocation2 + $0x188] sm:$0xff]
    %v133 = vld [vmem:[#allocation2 + $0x190] sm:$0xff]
    %v134 = vld [vmem:[#allocation2 + $0x198] sm:$0xff]
    %v135 = vld [vmem:[#allocation2 + $0x1a0] sm:$0xff]
    %v136 = vld [vmem:[#allocation2 + $0x1a8] sm:$0xff]
    %v137 = vld [vmem:[#allocation2 + $0x1b0] sm:$0xff]
    %v138 = vld [vmem:[#allocation2 + $0x1b8] sm:$0xff]
    %v139 = vld [vmem:[#allocation2 + $0x1c0] sm:$0xff]
    %v140 = vld [vmem:[#allocation2 + $0x1c8] sm:$0xff]
    %v141 = vld [vmem:[#allocation2 + $0x1d0] sm:$0xff]
    %v142 = vld [vmem:[#allocation2 + $0x1d8] sm:$0xff]
    %v143 = vld [vmem:[#allocation2 + $0x1e0] sm:$0xff]
    %v144 = vld [vmem:[#allocation2 + $0x1e8] sm:$0xff]
    %v145 = vld [vmem:[#allocation2 + $0x1f0] sm:$0xff]
    %v146 = vld [vmem:[#allocation2 + $0x1f8] sm:$0xff]
    %v147 = vld [vmem:[#allocation4] sm:$0xff]
    %v148 = vld [vmem:[#allocation4 + $0x8] sm:$0xff]
    %v149 = vld [vmem:[#allocation4 + $0x10] sm:$0xff]
    %v150 = vld [vmem:[#allocation4 + $0x18] sm:$0xff]
    %v151 = vld [vmem:[%s2] sm:$0x1]
    %v153 = vperm.slane %v151, 0
    %vm155 = vcmask 261120
    %v157 = vsel %vm155, %v83, 0
    %v160 = vsel %vm155, %v84, 0
    %v163 = vsel %vm155, %v85, 0
    %v166 = vsel %vm155, %v86, 0
    %v169 = vsel %vm155, %v87, 0
    %v172 = vsel %vm155, %v88, 0
    %v175 = vsel %vm155, %v89, 0
    %v178 = vsel %vm155, %v90, 0
    %v181 = vsel %vm155, %v91, 0
    %v184 = vsel %vm155, %v92, 0
    %v187 = vsel %vm155, %v93, 0
    %v190 = vsel %vm155, %v94, 0
    %v193 = vsel %vm155, %v95, 0
    %v196 = vsel %vm155, %v96, 0
    %v199 = vsel %vm155, %v97, 0
    %v202 = vsel %vm155, %v98, 0
    %v205 = vsel %vm155, %v99, 0
    %v208 = vsel %vm155, %v100, 0
    %v211 = vsel %vm155, %v101, 0
    %v214 = vsel %vm155, %v102, 0
    %v217 = vsel %vm155, %v103, 0
    %v220 = vsel %vm155, %v104, 0
    %v223 = vsel %vm155, %v105, 0
    %v226 = vsel %vm155, %v106, 0
    %v229 = vsel %vm155, %v107, 0
    %v232 = vsel %vm155, %v108, 0
    %v235 = vsel %vm155, %v109, 0
    %v238 = vsel %vm155, %v110, 0
    %v241 = vsel %vm155, %v111, 0
    %v244 = vsel %vm155, %v112, 0
    %v247 = vsel %vm155, %v113, 0
    %v250 = vsel %vm155, %v114, 0
    %v253 = vsel %vm155, %v115, 0
    %v256 = vsel %vm155, %v116, 0
    %v259 = vsel %vm155, %v117, 0
    %v262 = vsel %vm155, %v118, 0
    %v265 = vsel %vm155, %v119, 0
    %v268 = vsel %vm155, %v120, 0
    %v271 = vsel %vm155, %v121, 0
    %v274 = vsel %vm155, %v122, 0
    %v277 = vsel %vm155, %v123, 0
    %v280 = vsel %vm155, %v124, 0
    %v283 = vsel %vm155, %v125, 0
    %v286 = vsel %vm155, %v126, 0
    %v289 = vsel %vm155, %v127, 0
    %v292 = vsel %vm155, %v128, 0
    %v295 = vsel %vm155, %v129, 0
    %v298 = vsel %vm155, %v130, 0
    %v301 = vsel %vm155, %v131, 0
    %v304 = vsel %vm155, %v132, 0
    %v307 = vsel %vm155, %v133, 0
    %v310 = vsel %vm155, %v134, 0
    %v313 = vsel %vm155, %v135, 0
    %v316 = vsel %vm155, %v136, 0
    %v319 = vsel %vm155, %v137, 0
    %v322 = vsel %vm155, %v138, 0
    %v325 = vsel %vm155, %v139, 0
    %v328 = vsel %vm155, %v140, 0
    %v331 = vsel %vm155, %v141, 0
    %v334 = vsel %vm155, %v142, 0
    %v337 = vsel %vm155, %v143, 0
    %v340 = vsel %vm155, %v144, 0
    %v343 = vsel %vm155, %v145, 0
    %v346 = vsel %vm155, %v146, 0
    %348 = vmatpush.msra.mxu0 0.0
    %349 = vmatpush.msra.mxu0 0.0
    %350 = vmatpush.msra.mxu0 0.0
    %351 = vmatpush.msra.mxu0 0.0
    %352 = vmatpush.msra.mxu0 0.0
    %353 = vmatpush.msra.mxu0 0.0
    %354 = vmatpush.msra.mxu0 0.0
    %355 = vmatpush.msra.mxu0 0.0
    %356 = vmatpush.msra.mxu0 0.0
    %357 = vmatpush.msra.mxu0 0.0
    %358 = vmatpush.msra.mxu0 0.0
    %359 = vmatpush.msra.mxu0 0.0
    %360 = vmatpush.msra.mxu0 %v150
    %361 = vmatpush.msra.mxu0 %v149
    %362 = vmatpush.msra.mxu0 %v148
    %363 = vmatpush.msra.mxu0 %v147
    %364 = vmatmul.f32.gmra.mxu0 %v157
    %v365 = vpop.f32.mrf.mxu0
    %v366 = vadd.f32 %v153, %v365
    %367 = vmatmul.f32.gmra.mxu0 %v160
    %v368 = vpop.f32.mrf.mxu0
    %v369 = vadd.f32 %v153, %v368
    %370 = vmatmul.f32.gmra.mxu0 %v163
    %v371 = vpop.f32.mrf.mxu0
    %v372 = vadd.f32 %v153, %v371
    %373 = vmatmul.f32.gmra.mxu0 %v166
    %v374 = vpop.f32.mrf.mxu0
    %v375 = vadd.f32 %v153, %v374
    %376 = vmatmul.f32.gmra.mxu0 %v169
    %v377 = vpop.f32.mrf.mxu0
    %v378 = vadd.f32 %v153, %v377
    %379 = vmatmul.f32.gmra.mxu0 %v172
    %v380 = vpop.f32.mrf.mxu0
    %v381 = vadd.f32 %v153, %v380
    %382 = vmatmul.f32.gmra.mxu0 %v175
    %v383 = vpop.f32.mrf.mxu0
    %v384 = vadd.f32 %v153, %v383
    %385 = vmatmul.f32.gmra.mxu0 %v178
    %v386 = vpop.f32.mrf.mxu0
    %v387 = vadd.f32 %v153, %v386
    %388 = vmatmul.f32.gmra.mxu0 %v181
    %v389 = vpop.f32.mrf.mxu0
    %v390 = vadd.f32 %v153, %v389
    %391 = vmatmul.f32.gmra.mxu0 %v184
    %v392 = vpop.f32.mrf.mxu0
    %v393 = vadd.f32 %v153, %v392
    %394 = vmatmul.f32.gmra.mxu0 %v187
    %v395 = vpop.f32.mrf.mxu0
    %v396 = vadd.f32 %v153, %v395
    %397 = vmatmul.f32.gmra.mxu0 %v190
    %v398 = vpop.f32.mrf.mxu0
    %v399 = vadd.f32 %v153, %v398
    %400 = vmatmul.f32.gmra.mxu0 %v193
    %v401 = vpop.f32.mrf.mxu0
    %v402 = vadd.f32 %v153, %v401
    %403 = vmatmul.f32.gmra.mxu0 %v196
    %v404 = vpop.f32.mrf.mxu0
    %v405 = vadd.f32 %v153, %v404
    %406 = vmatmul.f32.gmra.mxu0 %v199
    %v407 = vpop.f32.mrf.mxu0
    %v408 = vadd.f32 %v153, %v407
    %409 = vmatmul.f32.gmra.mxu0 %v202
    %v410 = vpop.f32.mrf.mxu0
    %v411 = vadd.f32 %v153, %v410
    %412 = vmatmul.f32.gmra.mxu0 %v205
    %v413 = vpop.f32.mrf.mxu0
    %v414 = vadd.f32 %v153, %v413
    %415 = vmatmul.f32.gmra.mxu0 %v208
    %v416 = vpop.f32.mrf.mxu0
    %v417 = vadd.f32 %v153, %v416
    %418 = vmatmul.f32.gmra.mxu0 %v211
    %v419 = vpop.f32.mrf.mxu0
    %v420 = vadd.f32 %v153, %v419
    %421 = vmatmul.f32.gmra.mxu0 %v214
    %v422 = vpop.f32.mrf.mxu0
    %v423 = vadd.f32 %v153, %v422
    %424 = vmatmul.f32.gmra.mxu0 %v217
    %v425 = vpop.f32.mrf.mxu0
    %v426 = vadd.f32 %v153, %v425
    %427 = vmatmul.f32.gmra.mxu0 %v220
    %v428 = vpop.f32.mrf.mxu0
    %v429 = vadd.f32 %v153, %v428
    %430 = vmatmul.f32.gmra.mxu0 %v223
    %v431 = vpop.f32.mrf.mxu0
    %v432 = vadd.f32 %v153, %v431
    %433 = vmatmul.f32.gmra.mxu0 %v226
    %v434 = vpop.f32.mrf.mxu0
    %v435 = vadd.f32 %v153, %v434
    %436 = vmatmul.f32.gmra.mxu0 %v229
    %v437 = vpop.f32.mrf.mxu0
    %v438 = vadd.f32 %v153, %v437
    %439 = vmatmul.f32.gmra.mxu0 %v232
    %v440 = vpop.f32.mrf.mxu0
    %v441 = vadd.f32 %v153, %v440
    %442 = vmatmul.f32.gmra.mxu0 %v235
    %v443 = vpop.f32.mrf.mxu0
    %v444 = vadd.f32 %v153, %v443
    %445 = vmatmul.f32.gmra.mxu0 %v238
    %v446 = vpop.f32.mrf.mxu0
    %v447 = vadd.f32 %v153, %v446
    %448 = vmatmul.f32.gmra.mxu0 %v241
    %v449 = vpop.f32.mrf.mxu0
    %v450 = vadd.f32 %v153, %v449
    %451 = vmatmul.f32.gmra.mxu0 %v244
    %v452 = vpop.f32.mrf.mxu0
    %v453 = vadd.f32 %v153, %v452
    %454 = vmatmul.f32.gmra.mxu0 %v247
    %v455 = vpop.f32.mrf.mxu0
    %v456 = vadd.f32 %v153, %v455
    %457 = vmatmul.f32.gmra.mxu0 %v250
    %v458 = vpop.f32.mrf.mxu0
    %v459 = vadd.f32 %v153, %v458
    %460 = vmatmul.f32.gmra.mxu0 %v253
    %v461 = vpop.f32.mrf.mxu0
    %v462 = vadd.f32 %v153, %v461
    %463 = vmatmul.f32.gmra.mxu0 %v256
    %v464 = vpop.f32.mrf.mxu0
    %v465 = vadd.f32 %v153, %v464
    %466 = vmatmul.f32.gmra.mxu0 %v259
    %v467 = vpop.f32.mrf.mxu0
    %v468 = vadd.f32 %v153, %v467
    %469 = vmatmul.f32.gmra.mxu0 %v262
    %v470 = vpop.f32.mrf.mxu0
    %v471 = vadd.f32 %v153, %v470
    %472 = vmatmul.f32.gmra.mxu0 %v265
    %v473 = vpop.f32.mrf.mxu0
    %v474 = vadd.f32 %v153, %v473
    %475 = vmatmul.f32.gmra.mxu0 %v268
    %v476 = vpop.f32.mrf.mxu0
    %v477 = vadd.f32 %v153, %v476
    %478 = vmatmul.f32.gmra.mxu0 %v271
    %v479 = vpop.f32.mrf.mxu0
    %v480 = vadd.f32 %v153, %v479
    %481 = vmatmul.f32.gmra.mxu0 %v274
    %v482 = vpop.f32.mrf.mxu0
    %v483 = vadd.f32 %v153, %v482
    %484 = vmatmul.f32.gmra.mxu0 %v277
    %v485 = vpop.f32.mrf.mxu0
    %v486 = vadd.f32 %v153, %v485
    %487 = vmatmul.f32.gmra.mxu0 %v280
    %v488 = vpop.f32.mrf.mxu0
    %v489 = vadd.f32 %v153, %v488
    %490 = vmatmul.f32.gmra.mxu0 %v283
    %v491 = vpop.f32.mrf.mxu0
    %v492 = vadd.f32 %v153, %v491
    %493 = vmatmul.f32.gmra.mxu0 %v286
    %v494 = vpop.f32.mrf.mxu0
    %v495 = vadd.f32 %v153, %v494
    %496 = vmatmul.f32.gmra.mxu0 %v289
    %v497 = vpop.f32.mrf.mxu0
    %v498 = vadd.f32 %v153, %v497
    %499 = vmatmul.f32.gmra.mxu0 %v292
    %v500 = vpop.f32.mrf.mxu0
    %v501 = vadd.f32 %v153, %v500
    %502 = vmatmul.f32.gmra.mxu0 %v295
    %v503 = vpop.f32.mrf.mxu0
    %v504 = vadd.f32 %v153, %v503
    %505 = vmatmul.f32.gmra.mxu0 %v298
    %v506 = vpop.f32.mrf.mxu0
    %v507 = vadd.f32 %v153, %v506
    %508 = vmatmul.f32.gmra.mxu0 %v301
    %v509 = vpop.f32.mrf.mxu0
    %v510 = vadd.f32 %v153, %v509
    %511 = vmatmul.f32.gmra.mxu0 %v304
    %v512 = vpop.f32.mrf.mxu0
    %v513 = vadd.f32 %v153, %v512
    %514 = vmatmul.f32.gmra.mxu0 %v307
    %v515 = vpop.f32.mrf.mxu0
    %v516 = vadd.f32 %v153, %v515
    %517 = vmatmul.f32.gmra.mxu0 %v310
    %v518 = vpop.f32.mrf.mxu0
    %v519 = vadd.f32 %v153, %v518
    %520 = vmatmul.f32.gmra.mxu0 %v313
    %v521 = vpop.f32.mrf.mxu0
    %v522 = vadd.f32 %v153, %v521
    %523 = vmatmul.f32.gmra.mxu0 %v316
    %v524 = vpop.f32.mrf.mxu0
    %v525 = vadd.f32 %v153, %v524
    %526 = vmatmul.f32.gmra.mxu0 %v319
    %v527 = vpop.f32.mrf.mxu0
    %v528 = vadd.f32 %v153, %v527
    %529 = vmatmul.f32.gmra.mxu0 %v322
    %v530 = vpop.f32.mrf.mxu0
    %v531 = vadd.f32 %v153, %v530
    %532 = vmatmul.f32.gmra.mxu0 %v325
    %v533 = vpop.f32.mrf.mxu0
    %v534 = vadd.f32 %v153, %v533
    %535 = vmatmul.f32.gmra.mxu0 %v328
    %v536 = vpop.f32.mrf.mxu0
    %v537 = vadd.f32 %v153, %v536
    %538 = vmatmul.f32.gmra.mxu0 %v331
    %v539 = vpop.f32.mrf.mxu0
    %v540 = vadd.f32 %v153, %v539
    %541 = vmatmul.f32.gmra.mxu0 %v334
    %v542 = vpop.f32.mrf.mxu0
    %v543 = vadd.f32 %v153, %v542
    %544 = vmatmul.f32.gmra.mxu0 %v337
    %v545 = vpop.f32.mrf.mxu0
    %v546 = vadd.f32 %v153, %v545
    %547 = vmatmul.f32.gmra.mxu0 %v340
    %v548 = vpop.f32.mrf.mxu0
    %v549 = vadd.f32 %v153, %v548
    %550 = vmatmul.f32.gmra.mxu0 %v343
    %v551 = vpop.f32.mrf.mxu0
    %v552 = vadd.f32 %v153, %v551
    %553 = vmatmul.f32.gmra.mxu0 %v346
    %v554 = vpop.f32.mrf.mxu0
    %v555 = vadd.f32 %v153, %v554
    %556 = vdwg.mxu0
    %v557 = vld [vmem:[#allocation6] sm:$0xff]
    %v558 = vld [vmem:[#allocation6 + $0x8] sm:$0xff]
    %v559 = vld [vmem:[#allocation6 + $0x10] sm:$0xff]
    %v560 = vld [vmem:[#allocation6 + $0x18] sm:$0xff]
    %v561 = vld [vmem:[#allocation7] sm:$0x1]
    %v563 = vperm.slane %v561, 0
    %565 = vmatpush.msra.mxu0 0.0
    %566 = vmatpush.msra.mxu0 0.0
    %567 = vmatpush.msra.mxu0 0.0
    %568 = vmatpush.msra.mxu0 0.0
    %569 = vmatpush.msra.mxu0 0.0
    %570 = vmatpush.msra.mxu0 0.0
    %571 = vmatpush.msra.mxu0 0.0
    %572 = vmatpush.msra.mxu0 0.0
    %573 = vmatpush.msra.mxu0 0.0
    %574 = vmatpush.msra.mxu0 0.0
    %575 = vmatpush.msra.mxu0 0.0
    %576 = vmatpush.msra.mxu0 0.0
    %577 = vmatpush.msra.mxu0 %v560
    %578 = vmatpush.msra.mxu0 %v559
    %579 = vmatpush.msra.mxu0 %v558
    %580 = vmatpush.msra.mxu0 %v557
    %581 = vmatmul.f32.gmra.mxu0 %v157
    %v582 = vpop.f32.mrf.mxu0
    %v583 = vadd.f32 %v563, %v582
    %584 = vmatmul.f32.gmra.mxu0 %v160
    %v585 = vpop.f32.mrf.mxu0
    %v586 = vadd.f32 %v563, %v585
    %587 = vmatmul.f32.gmra.mxu0 %v163
    %v588 = vpop.f32.mrf.mxu0
    %v589 = vadd.f32 %v563, %v588
    %590 = vmatmul.f32.gmra.mxu0 %v166
    %v591 = vpop.f32.mrf.mxu0
    %v592 = vadd.f32 %v563, %v591
    %593 = vmatmul.f32.gmra.mxu0 %v169
    %v594 = vpop.f32.mrf.mxu0
    %v595 = vadd.f32 %v563, %v594
    %596 = vmatmul.f32.gmra.mxu0 %v172
    %v597 = vpop.f32.mrf.mxu0
    %v598 = vadd.f32 %v563, %v597
    %599 = vmatmul.f32.gmra.mxu0 %v175
    %v600 = vpop.f32.mrf.mxu0
    %v601 = vadd.f32 %v563, %v600
    %602 = vmatmul.f32.gmra.mxu0 %v178
    %v603 = vpop.f32.mrf.mxu0
    %v604 = vadd.f32 %v563, %v603
    %605 = vmatmul.f32.gmra.mxu0 %v181
    %v606 = vpop.f32.mrf.mxu0
    %v607 = vadd.f32 %v563, %v606
    %608 = vmatmul.f32.gmra.mxu0 %v184
    %v609 = vpop.f32.mrf.mxu0
    %v610 = vadd.f32 %v563, %v609
    %611 = vmatmul.f32.gmra.mxu0 %v187
    %v612 = vpop.f32.mrf.mxu0
    %v613 = vadd.f32 %v563, %v612
    %614 = vmatmul.f32.gmra.mxu0 %v190
    %v615 = vpop.f32.mrf.mxu0
    %v616 = vadd.f32 %v563, %v615
    %617 = vmatmul.f32.gmra.mxu0 %v193
    %v618 = vpop.f32.mrf.mxu0
    %v619 = vadd.f32 %v563, %v618
    %620 = vmatmul.f32.gmra.mxu0 %v196
    %v621 = vpop.f32.mrf.mxu0
    %v622 = vadd.f32 %v563, %v621
    %623 = vmatmul.f32.gmra.mxu0 %v199
    %v624 = vpop.f32.mrf.mxu0
    %v625 = vadd.f32 %v563, %v624
    %626 = vmatmul.f32.gmra.mxu0 %v202
    %v627 = vpop.f32.mrf.mxu0
    %v628 = vadd.f32 %v563, %v627
    %629 = vmatmul.f32.gmra.mxu0 %v205
    %v630 = vpop.f32.mrf.mxu0
    %v631 = vadd.f32 %v563, %v630
    %632 = vmatmul.f32.gmra.mxu0 %v208
    %v633 = vpop.f32.mrf.mxu0
    %v634 = vadd.f32 %v563, %v633
    %635 = vmatmul.f32.gmra.mxu0 %v211
    %v636 = vpop.f32.mrf.mxu0
    %v637 = vadd.f32 %v563, %v636
    %638 = vmatmul.f32.gmra.mxu0 %v214
    %v639 = vpop.f32.mrf.mxu0
    %v640 = vadd.f32 %v563, %v639
    %641 = vmatmul.f32.gmra.mxu0 %v217
    %v642 = vpop.f32.mrf.mxu0
    %v643 = vadd.f32 %v563, %v642
    %644 = vmatmul.f32.gmra.mxu0 %v220
    %v645 = vpop.f32.mrf.mxu0
    %v646 = vadd.f32 %v563, %v645
    %647 = vmatmul.f32.gmra.mxu0 %v223
    %v648 = vpop.f32.mrf.mxu0
    %v649 = vadd.f32 %v563, %v648
    %650 = vmatmul.f32.gmra.mxu0 %v226
    %v651 = vpop.f32.mrf.mxu0
    %v652 = vadd.f32 %v563, %v651
    %653 = vmatmul.f32.gmra.mxu0 %v229
    %v654 = vpop.f32.mrf.mxu0
    %v655 = vadd.f32 %v563, %v654
    %656 = vmatmul.f32.gmra.mxu0 %v232
    %v657 = vpop.f32.mrf.mxu0
    %v658 = vadd.f32 %v563, %v657
    %659 = vmatmul.f32.gmra.mxu0 %v235
    %v660 = vpop.f32.mrf.mxu0
    %v661 = vadd.f32 %v563, %v660
    %662 = vmatmul.f32.gmra.mxu0 %v238
    %v663 = vpop.f32.mrf.mxu0
    %v664 = vadd.f32 %v563, %v663
    %665 = vmatmul.f32.gmra.mxu0 %v241
    %v666 = vpop.f32.mrf.mxu0
    %v667 = vadd.f32 %v563, %v666
    %668 = vmatmul.f32.gmra.mxu0 %v244
    %v669 = vpop.f32.mrf.mxu0
    %v670 = vadd.f32 %v563, %v669
    %671 = vmatmul.f32.gmra.mxu0 %v247
    %v672 = vpop.f32.mrf.mxu0
    %v673 = vadd.f32 %v563, %v672
    %674 = vmatmul.f32.gmra.mxu0 %v250
    %v675 = vpop.f32.mrf.mxu0
    %v676 = vadd.f32 %v563, %v675
    %677 = vmatmul.f32.gmra.mxu0 %v253
    %v678 = vpop.f32.mrf.mxu0
    %v679 = vadd.f32 %v563, %v678
    %680 = vmatmul.f32.gmra.mxu0 %v256
    %v681 = vpop.f32.mrf.mxu0
    %v682 = vadd.f32 %v563, %v681
    %683 = vmatmul.f32.gmra.mxu0 %v259
    %v684 = vpop.f32.mrf.mxu0
    %v685 = vadd.f32 %v563, %v684
    %686 = vmatmul.f32.gmra.mxu0 %v262
    %v687 = vpop.f32.mrf.mxu0
    %v688 = vadd.f32 %v563, %v687
    %689 = vmatmul.f32.gmra.mxu0 %v265
    %v690 = vpop.f32.mrf.mxu0
    %v691 = vadd.f32 %v563, %v690
    %692 = vmatmul.f32.gmra.mxu0 %v268
    %v693 = vpop.f32.mrf.mxu0
    %v694 = vadd.f32 %v563, %v693
    %695 = vmatmul.f32.gmra.mxu0 %v271
    %v696 = vpop.f32.mrf.mxu0
    %v697 = vadd.f32 %v563, %v696
    %698 = vmatmul.f32.gmra.mxu0 %v274
    %v699 = vpop.f32.mrf.mxu0
    %v700 = vadd.f32 %v563, %v699
    %701 = vmatmul.f32.gmra.mxu0 %v277
    %v702 = vpop.f32.mrf.mxu0
    %v703 = vadd.f32 %v563, %v702
    %704 = vmatmul.f32.gmra.mxu0 %v280
    %v705 = vpop.f32.mrf.mxu0
    %v706 = vadd.f32 %v563, %v705
    %707 = vmatmul.f32.gmra.mxu0 %v283
    %v708 = vpop.f32.mrf.mxu0
    %v709 = vadd.f32 %v563, %v708
    %710 = vmatmul.f32.gmra.mxu0 %v286
    %v711 = vpop.f32.mrf.mxu0
    %v712 = vadd.f32 %v563, %v711
    %713 = vmatmul.f32.gmra.mxu0 %v289
    %v714 = vpop.f32.mrf.mxu0
    %v715 = vadd.f32 %v563, %v714
    %716 = vmatmul.f32.gmra.mxu0 %v292
    %v717 = vpop.f32.mrf.mxu0
    %v718 = vadd.f32 %v563, %v717
    %719 = vmatmul.f32.gmra.mxu0 %v295
    %v720 = vpop.f32.mrf.mxu0
    %v721 = vadd.f32 %v563, %v720
    %722 = vmatmul.f32.gmra.mxu0 %v298
    %v723 = vpop.f32.mrf.mxu0
    %v724 = vadd.f32 %v563, %v723
    %725 = vmatmul.f32.gmra.mxu0 %v301
    %v726 = vpop.f32.mrf.mxu0
    %v727 = vadd.f32 %v563, %v726
    %728 = vmatmul.f32.gmra.mxu0 %v304
    %v729 = vpop.f32.mrf.mxu0
    %v730 = vadd.f32 %v563, %v729
    %731 = vmatmul.f32.gmra.mxu0 %v307
    %v732 = vpop.f32.mrf.mxu0
    %v733 = vadd.f32 %v563, %v732
    %734 = vmatmul.f32.gmra.mxu0 %v310
    %v735 = vpop.f32.mrf.mxu0
    %v736 = vadd.f32 %v563, %v735
    %737 = vmatmul.f32.gmra.mxu0 %v313
    %v738 = vpop.f32.mrf.mxu0
    %v739 = vadd.f32 %v563, %v738
    %740 = vmatmul.f32.gmra.mxu0 %v316
    %v741 = vpop.f32.mrf.mxu0
    %v742 = vadd.f32 %v563, %v741
    %743 = vmatmul.f32.gmra.mxu0 %v319
    %v744 = vpop.f32.mrf.mxu0
    %v745 = vadd.f32 %v563, %v744
    %746 = vmatmul.f32.gmra.mxu0 %v322
    %v747 = vpop.f32.mrf.mxu0
    %v748 = vadd.f32 %v563, %v747
    %749 = vmatmul.f32.gmra.mxu0 %v325
    %v750 = vpop.f32.mrf.mxu0
    %v751 = vadd.f32 %v563, %v750
    %752 = vmatmul.f32.gmra.mxu0 %v328
    %v753 = vpop.f32.mrf.mxu0
    %v754 = vadd.f32 %v563, %v753
    %755 = vmatmul.f32.gmra.mxu0 %v331
    %v756 = vpop.f32.mrf.mxu0
    %v757 = vadd.f32 %v563, %v756
    %758 = vmatmul.f32.gmra.mxu0 %v334
    %v759 = vpop.f32.mrf.mxu0
    %v760 = vadd.f32 %v563, %v759
    %761 = vmatmul.f32.gmra.mxu0 %v337
    %v762 = vpop.f32.mrf.mxu0
    %v763 = vadd.f32 %v563, %v762
    %764 = vmatmul.f32.gmra.mxu0 %v340
    %v765 = vpop.f32.mrf.mxu0
    %v766 = vadd.f32 %v563, %v765
    %767 = vmatmul.f32.gmra.mxu0 %v343
    %v768 = vpop.f32.mrf.mxu0
    %v769 = vadd.f32 %v563, %v768
    %770 = vmatmul.f32.gmra.mxu0 %v346
    %v771 = vpop.f32.mrf.mxu0
    %v772 = vadd.f32 %v563, %v771
    %773 = vdwg.mxu0
    %774 = vst [vmem:[%s5] sm:$0xff] %v366
    %775 = vst [vmem:[%s5 + $0x8] sm:$0xff] %v369
    %776 = vst [vmem:[%s5 + $0x10] sm:$0xff] %v372
    %777 = vst [vmem:[%s5 + $0x18] sm:$0xff] %v375
    %778 = vst [vmem:[%s5 + $0x20] sm:$0xff] %v378
    %779 = vst [vmem:[%s5 + $0x28] sm:$0xff] %v381
    %780 = vst [vmem:[%s5 + $0x30] sm:$0xff] %v384
    %781 = vst [vmem:[%s5 + $0x38] sm:$0xff] %v387
    %782 = vst [vmem:[%s5 + $0x40] sm:$0xff] %v390
    %783 = vst [vmem:[%s5 + $0x48] sm:$0xff] %v393
    %784 = vst [vmem:[%s5 + $0x50] sm:$0xff] %v396
    %785 = vst [vmem:[%s5 + $0x58] sm:$0xff] %v399
    %786 = vst [vmem:[%s5 + $0x60] sm:$0xff] %v402
    %787 = vst [vmem:[%s5 + $0x68] sm:$0xff] %v405
    %788 = vst [vmem:[%s5 + $0x70] sm:$0xff] %v408
    %789 = vst [vmem:[%s5 + $0x78] sm:$0xff] %v411
    %790 = vst [vmem:[%s5 + $0x80] sm:$0xff] %v414
    %791 = vst [vmem:[%s5 + $0x88] sm:$0xff] %v417
    %792 = vst [vmem:[%s5 + $0x90] sm:$0xff] %v420
    %793 = vst [vmem:[%s5 + $0x98] sm:$0xff] %v423
    %794 = vst [vmem:[%s5 + $0xa0] sm:$0xff] %v426
    %795 = vst [vmem:[%s5 + $0xa8] sm:$0xff] %v429
    %796 = vst [vmem:[%s5 + $0xb0] sm:$0xff] %v432
    %797 = vst [vmem:[%s5 + $0xb8] sm:$0xff] %v435
    %798 = vst [vmem:[%s5 + $0xc0] sm:$0xff] %v438
    %799 = vst [vmem:[%s5 + $0xc8] sm:$0xff] %v441
    %800 = vst [vmem:[%s5 + $0xd0] sm:$0xff] %v444
    %801 = vst [vmem:[%s5 + $0xd8] sm:$0xff] %v447
    %802 = vst [vmem:[%s5 + $0xe0] sm:$0xff] %v450
    %803 = vst [vmem:[%s5 + $0xe8] sm:$0xff] %v453
    %804 = vst [vmem:[%s5 + $0xf0] sm:$0xff] %v456
    %805 = vst [vmem:[%s5 + $0xf8] sm:$0xff] %v459
    %806 = vst [vmem:[%s5 + $0x100] sm:$0xff] %v462
    %807 = vst [vmem:[%s5 + $0x108] sm:$0xff] %v465
    %808 = vst [vmem:[%s5 + $0x110] sm:$0xff] %v468
    %809 = vst [vmem:[%s5 + $0x118] sm:$0xff] %v471
    %810 = vst [vmem:[%s5 + $0x120] sm:$0xff] %v474
    %811 = vst [vmem:[%s5 + $0x128] sm:$0xff] %v477
    %812 = vst [vmem:[%s5 + $0x130] sm:$0xff] %v480
    %813 = vst [vmem:[%s5 + $0x138] sm:$0xff] %v483
    %814 = vst [vmem:[%s5 + $0x140] sm:$0xff] %v486
    %815 = vst [vmem:[%s5 + $0x148] sm:$0xff] %v489
    %816 = vst [vmem:[%s5 + $0x150] sm:$0xff] %v492
    %817 = vst [vmem:[%s5 + $0x158] sm:$0xff] %v495
    %818 = vst [vmem:[%s5 + $0x160] sm:$0xff] %v498
    %819 = vst [vmem:[%s5 + $0x168] sm:$0xff] %v501
    %820 = vst [vmem:[%s5 + $0x170] sm:$0xff] %v504
    %821 = vst [vmem:[%s5 + $0x178] sm:$0xff] %v507
    %822 = vst [vmem:[%s5 + $0x180] sm:$0xff] %v510
    %823 = vst [vmem:[%s5 + $0x188] sm:$0xff] %v513
    %824 = vst [vmem:[%s5 + $0x190] sm:$0xff] %v516
    %825 = vst [vmem:[%s5 + $0x198] sm:$0xff] %v519
    %826 = vst [vmem:[%s5 + $0x1a0] sm:$0xff] %v522
    %827 = vst [vmem:[%s5 + $0x1a8] sm:$0xff] %v525
    %828 = vst [vmem:[%s5 + $0x1b0] sm:$0xff] %v528
    %829 = vst [vmem:[%s5 + $0x1b8] sm:$0xff] %v531
    %830 = vst [vmem:[%s5 + $0x1c0] sm:$0xff] %v534
    %831 = vst [vmem:[%s5 + $0x1c8] sm:$0xff] %v537
    %832 = vst [vmem:[%s5 + $0x1d0] sm:$0xff] %v540
    %833 = vst [vmem:[%s5 + $0x1d8] sm:$0xff] %v543
    %834 = vst [vmem:[%s5 + $0x1e0] sm:$0xff] %v546
    %835 = vst [vmem:[%s5 + $0x1e8] sm:$0xff] %v549
    %836 = vst [vmem:[%s5 + $0x1f0] sm:$0xff] %v552
    %837 = vst [vmem:[%s5 + $0x1f8] sm:$0xff] %v555
    %838 = vst [vmem:[%s6] sm:$0xff] %v583
    %839 = vst [vmem:[%s6 + $0x8] sm:$0xff] %v586
    %840 = vst [vmem:[%s6 + $0x10] sm:$0xff] %v589
    %841 = vst [vmem:[%s6 + $0x18] sm:$0xff] %v592
    %842 = vst [vmem:[%s6 + $0x20] sm:$0xff] %v595
    %843 = vst [vmem:[%s6 + $0x28] sm:$0xff] %v598
    %844 = vst [vmem:[%s6 + $0x30] sm:$0xff] %v601
    %845 = vst [vmem:[%s6 + $0x38] sm:$0xff] %v604
    %846 = vst [vmem:[%s6 + $0x40] sm:$0xff] %v607
    %847 = vst [vmem:[%s6 + $0x48] sm:$0xff] %v610
    %848 = vst [vmem:[%s6 + $0x50] sm:$0xff] %v613
    %849 = vst [vmem:[%s6 + $0x58] sm:$0xff] %v616
    %850 = vst [vmem:[%s6 + $0x60] sm:$0xff] %v619
    %851 = vst [vmem:[%s6 + $0x68] sm:$0xff] %v622
    %852 = vst [vmem:[%s6 + $0x70] sm:$0xff] %v625
    %853 = vst [vmem:[%s6 + $0x78] sm:$0xff] %v628
    %854 = vst [vmem:[%s6 + $0x80] sm:$0xff] %v631
    %855 = vst [vmem:[%s6 + $0x88] sm:$0xff] %v634
    %856 = vst [vmem:[%s6 + $0x90] sm:$0xff] %v637
    %857 = vst [vmem:[%s6 + $0x98] sm:$0xff] %v640
    %858 = vst [vmem:[%s6 + $0xa0] sm:$0xff] %v643
    %859 = vst [vmem:[%s6 + $0xa8] sm:$0xff] %v646
    %860 = vst [vmem:[%s6 + $0xb0] sm:$0xff] %v649
    %861 = vst [vmem:[%s6 + $0xb8] sm:$0xff] %v652
    %862 = vst [vmem:[%s6 + $0xc0] sm:$0xff] %v655
    %863 = vst [vmem:[%s6 + $0xc8] sm:$0xff] %v658
    %864 = vst [vmem:[%s6 + $0xd0] sm:$0xff] %v661
    %865 = vst [vmem:[%s6 + $0xd8] sm:$0xff] %v664
    %866 = vst [vmem:[%s6 + $0xe0] sm:$0xff] %v667
    %867 = vst [vmem:[%s6 + $0xe8] sm:$0xff] %v670
    %868 = vst [vmem:[%s6 + $0xf0] sm:$0xff] %v673
    %869 = vst [vmem:[%s6 + $0xf8] sm:$0xff] %v676
    %870 = vst [vmem:[%s6 + $0x100] sm:$0xff] %v679
    %871 = vst [vmem:[%s6 + $0x108] sm:$0xff] %v682
    %872 = vst [vmem:[%s6 + $0x110] sm:$0xff] %v685
    %873 = vst [vmem:[%s6 + $0x118] sm:$0xff] %v688
    %874 = vst [vmem:[%s6 + $0x120] sm:$0xff] %v691
    %875 = vst [vmem:[%s6 + $0x128] sm:$0xff] %v694
    %876 = vst [vmem:[%s6 + $0x130] sm:$0xff] %v697
    %877 = vst [vmem:[%s6 + $0x138] sm:$0xff] %v700
    %878 = vst [vmem:[%s6 + $0x140] sm:$0xff] %v703
    %879 = vst [vmem:[%s6 + $0x148] sm:$0xff] %v706
    %880 = vst [vmem:[%s6 + $0x150] sm:$0xff] %v709
    %881 = vst [vmem:[%s6 + $0x158] sm:$0xff] %v712
    %882 = vst [vmem:[%s6 + $0x160] sm:$0xff] %v715
    %883 = vst [vmem:[%s6 + $0x168] sm:$0xff] %v718
    %884 = vst [vmem:[%s6 + $0x170] sm:$0xff] %v721
    %885 = vst [vmem:[%s6 + $0x178] sm:$0xff] %v724
    %886 = vst [vmem:[%s6 + $0x180] sm:$0xff] %v727
    %887 = vst [vmem:[%s6 + $0x188] sm:$0xff] %v730
    %888 = vst [vmem:[%s6 + $0x190] sm:$0xff] %v733
    %889 = vst [vmem:[%s6 + $0x198] sm:$0xff] %v736
    %890 = vst [vmem:[%s6 + $0x1a0] sm:$0xff] %v739
    %891 = vst [vmem:[%s6 + $0x1a8] sm:$0xff] %v742
    %892 = vst [vmem:[%s6 + $0x1b0] sm:$0xff] %v745
    %893 = vst [vmem:[%s6 + $0x1b8] sm:$0xff] %v748
    %894 = vst [vmem:[%s6 + $0x1c0] sm:$0xff] %v751
    %895 = vst [vmem:[%s6 + $0x1c8] sm:$0xff] %v754
    %896 = vst [vmem:[%s6 + $0x1d0] sm:$0xff] %v757
    %897 = vst [vmem:[%s6 + $0x1d8] sm:$0xff] %v760
    %898 = vst [vmem:[%s6 + $0x1e0] sm:$0xff] %v763
    %899 = vst [vmem:[%s6 + $0x1e8] sm:$0xff] %v766
    %900 = vst [vmem:[%s6 + $0x1f0] sm:$0xff] %v769
    %901 = vst [vmem:[%s6 + $0x1f8] sm:$0xff] %v772
    // Predicated region
    $region38: #{gnconv_forward.3} parent=1 // pred_check
      _
    $region39: #{gnconv_forward.3} parent=1 // pred_check_branch
      %903 = sbr.rel (0) target = $region41
    $region40: #{gnconv_forward.3} parent=1 // pred_region
      _
    $region41: #{gnconv_forward.3} parent=1 // pred_fallthru
      _
    // Predicated region
    $region42: #{gnconv_forward.3} parent=1 // pred_check
      _
    $region43: #{gnconv_forward.3} parent=1 // pred_check_branch
      %905 = sbr.rel (0) target = $region45
    $region44: #{gnconv_forward.3} parent=1 // pred_region
      _
    $region45: #{gnconv_forward.3} parent=1 // pred_fallthru
      _
    // Predicated region
    $region46: #{gnconv_forward.3} parent=1 // pred_check
      _
    $region47: #{gnconv_forward.3} parent=1 // pred_check_branch
      %907 = sbr.rel (0) target = $region49
    $region48: #{gnconv_forward.3} parent=1 // pred_region
      _
    $region49: #{gnconv_forward.3} parent=1 // pred_fallthru
      _
    // Predicated region
    $region50: #{gnconv_forward.3} parent=1 // pred_check
      _
    $region51: #{gnconv_forward.3} parent=1 // pred_check_branch
      %909 = sbr.rel (0) target = $region53
    $region52: #{gnconv_forward.3} parent=1 // pred_region
      _
    $region53: #{gnconv_forward.3} parent=1 // pred_fallthru
      _
    %910 = vsyncpa [#allocation3], 1
    %911 = vsyncpa [#allocation5], 1
    %912 = vsyncpa [#allocation8], 1

// kernel: gnconv_forward.5
$region0: #{gnconv_forward.5}
  #allocation0 [shape = 'u32[]', space=smem, size = 0x4, offset = 0x4, fixed_abs, tag = 'smem constant byte address 0x4 - core index']
  #allocation1 [shape = 'u32[72,128]{1,0:T(1,128)}', space=vmem, size = 0x9000, scoped, tag = 'internal scratch']
  %s0 = inlined_call_operand.vmem [shape: f32[512,128], index: 0, kind: input, shape index: {}]
  %s1 = inlined_call_operand.vmem [shape: f32[512,128], index: 1, kind: input, shape index: {}]
  %s2 = inlined_call_operand.vmem [shape: f32[2,4], index: 2, kind: input, shape index: {}]
  %s3 = inlined_call_operand.vmem [shape: f32[1,4], index: 3, kind: input, shape index: {}]
  %s4 = inlined_call_operand.vmem [shape: f32[4,8], index: 4, kind: input, shape index: {}]
  %s5 = inlined_call_operand.vmem [shape: f32[1,8], index: 5, kind: input, shape index: {}]
  %s6 = inlined_call_operand.vmem [shape: f32[8,16], index: 6, kind: input, shape index: {}]
  %s7 = inlined_call_operand.vmem [shape: f32[1,16], index: 7, kind: input, shape index: {}]
  %s8 = inlined_call_operand.vmem [shape: f32[16,32], index: 8, kind: input, shape index: {}]
  %s9 = inlined_call_operand.vmem [shape: f32[1,32], index: 9, kind: input, shape index: {}]
  %s10 = inlined_call_operand.vmem [shape: f32[32,32], index: 10, kind: input, shape index: {}]
  %s11 = inlined_call_operand.vmem [shape: f32[1,32], index: 11, kind: input, shape index: {}]
  %s12 = inlined_call_operand.hbm [shape: f32[512,32], index: 12, kind: output, shape index: {}]
  %s13 = sld [smem:[#allocation0]]
  $region58: #{gnconv_forward.5} parent=0
    _
  %s15 = ssub.s32 1, %s13
  %s16 = scalar_select 0, %s15, %s13
  $region1: #{gnconv_forward.5} parent=0
    #allocation2 [shape = 'u8[262144]{0}', space=vmem, size = 0x40000, scoped, tag = 'output window, operand 0, single buffered']
    #allocation3 [shape = 's32[1]{0}', space=sflag, size = 0x4, scoped, tag = 'scoped memory for gnconv_forward.5']
    %17 = vsyncpa [#allocation3], 0
    // Predicated region
    $region2: #{gnconv_forward.5} parent=1 // pred_check
      _
    $region3: #{gnconv_forward.5} parent=1 // pred_check_branch
      %19 = sbr.rel (0) target = $region5
    $region4: #{gnconv_forward.5} parent=1 // pred_region
      _
    $region5: #{gnconv_forward.5} parent=1 // pred_fallthru
      _
    // Predicated region
    $region6: #{gnconv_forward.5} parent=1 // pred_check
      _
    $region7: #{gnconv_forward.5} parent=1 // pred_check_branch
      %21 = sbr.rel (0) target = $region9
    $region8: #{gnconv_forward.5} parent=1 // pred_region
      _
    $region9: #{gnconv_forward.5} parent=1 // pred_fallthru
      _
    // Predicated region
    $region10: #{gnconv_forward.5} parent=1 // pred_check
      _
    $region11: #{gnconv_forward.5} parent=1 // pred_check_branch
      %23 = sbr.rel (0) target = $region13
    $region12: #{gnconv_forward.5} parent=1 // pred_region
      _
    $region13: #{gnconv_forward.5} parent=1 // pred_fallthru
      _
    // Predicated region
    $region14: #{gnconv_forward.5} parent=1 // pred_check
      _
    $region15: #{gnconv_forward.5} parent=1 // pred_check_branch
      %25 = sbr.rel (0) target = $region17
    $region16: #{gnconv_forward.5} parent=1 // pred_region
      _
    $region17: #{gnconv_forward.5} parent=1 // pred_fallthru
      _
    // Predicated region
    $region18: #{gnconv_forward.5} parent=1 // pred_check
      _
    $region19: #{gnconv_forward.5} parent=1 // pred_check_branch
      %27 = sbr.rel (0) target = $region21
    $region20: #{gnconv_forward.5} parent=1 // pred_region
      _
    $region21: #{gnconv_forward.5} parent=1 // pred_fallthru
      _
    // Predicated region
    $region22: #{gnconv_forward.5} parent=1 // pred_check
      _
    $region23: #{gnconv_forward.5} parent=1 // pred_check_branch
      %29 = sbr.rel (0) target = $region25
    $region24: #{gnconv_forward.5} parent=1 // pred_region
      _
    $region25: #{gnconv_forward.5} parent=1 // pred_fallthru
      _
    // Predicated region
    $region26: #{gnconv_forward.5} parent=1 // pred_check
      _
    $region27: #{gnconv_forward.5} parent=1 // pred_check_branch
      %31 = sbr.rel (0) target = $region29
    $region28: #{gnconv_forward.5} parent=1 // pred_region
      _
    $region29: #{gnconv_forward.5} parent=1 // pred_fallthru
      _
    // Predicated region
    $region30: #{gnconv_forward.5} parent=1 // pred_check
      _
    $region31: #{gnconv_forward.5} parent=1 // pred_check_branch
      %33 = sbr.rel (0) target = $region33
    $region32: #{gnconv_forward.5} parent=1 // pred_region
      _
    $region33: #{gnconv_forward.5} parent=1 // pred_fallthru
      _
    // Predicated region
    $region34: #{gnconv_forward.5} parent=1 // pred_check
      _
    $region35: #{gnconv_forward.5} parent=1 // pred_check_branch
      %35 = sbr.rel (0) target = $region37
    $region36: #{gnconv_forward.5} parent=1 // pred_region
      _
    $region37: #{gnconv_forward.5} parent=1 // pred_fallthru
      _
    // Predicated region
    $region38: #{gnconv_forward.5} parent=1 // pred_check
      _
    $region39: #{gnconv_forward.5} parent=1 // pred_check_branch
      %37 = sbr.rel (0) target = $region41
    $region40: #{gnconv_forward.5} parent=1 // pred_region
      _
    $region41: #{gnconv_forward.5} parent=1 // pred_fallthru
      _
    // Predicated region
    $region42: #{gnconv_forward.5} parent=1 // pred_check
      _
    $region43: #{gnconv_forward.5} parent=1 // pred_check_branch
      %39 = sbr.rel (0) target = $region45
    $region44: #{gnconv_forward.5} parent=1 // pred_region
      _
    $region45: #{gnconv_forward.5} parent=1 // pred_fallthru
      _
    // Predicated region
    $region46: #{gnconv_forward.5} parent=1 // pred_check
      _
    $region47: #{gnconv_forward.5} parent=1 // pred_check_branch
      %41 = sbr.rel (0) target = $region49
    $region48: #{gnconv_forward.5} parent=1 // pred_region
      _
    $region49: #{gnconv_forward.5} parent=1 // pred_fallthru
      _
    %v42 = vld [vmem:[%s1] sm:$0xff]
    %v43 = vld [vmem:[%s1 + $0x8] sm:$0xff]
    %v44 = vld [vmem:[%s1 + $0x10] sm:$0xff]
    %v45 = vld [vmem:[%s1 + $0x18] sm:$0xff]
    %v46 = vld [vmem:[%s1 + $0x20] sm:$0xff]
    %v47 = vld [vmem:[%s1 + $0x28] sm:$0xff]
    %v48 = vld [vmem:[%s1 + $0x30] sm:$0xff]
    %v49 = vld [vmem:[%s1 + $0x38] sm:$0xff]
    %v50 = vld [vmem:[%s1 + $0x40] sm:$0xff]
    %v51 = vld [vmem:[%s1 + $0x48] sm:$0xff]
    %v52 = vld [vmem:[%s1 + $0x50] sm:$0xff]
    %v53 = vld [vmem:[%s1 + $0x58] sm:$0xff]
    %v54 = vld [vmem:[%s1 + $0x60] sm:$0xff]
    %v55 = vld [vmem:[%s1 + $0x68] sm:$0xff]
    %v56 = vld [vmem:[%s1 + $0x70] sm:$0xff]
    %v57 = vld [vmem:[%s1 + $0x78] sm:$0xff]
    %v58 = vld [vmem:[%s1 + $0x80] sm:$0xff]
    %v59 = vld [vmem:[%s1 + $0x88] sm:$0xff]
    %v60 = vld [vmem:[%s1 + $0x90] sm:$0xff]
    %v61 = vld [vmem:[%s1 + $0x98] sm:$0xff]
    %v62 = vld [vmem:[%s1 + $0xa0] sm:$0xff]
    %v63 = vld [vmem:[%s1 + $0xa8] sm:$0xff]
    %v64 = vld [vmem:[%s1 + $0xb0] sm:$0xff]
    %v65 = vld [vmem:[%s1 + $0xb8] sm:$0xff]
    %v66 = vld [vmem:[%s1 + $0xc0] sm:$0xff]
    %v67 = vld [vmem:[%s1 + $0xc8] sm:$0xff]
    %v68 = vld [vmem:[%s1 + $0xd0] sm:$0xff]
    %v69 = vld [vmem:[%s1 + $0xd8] sm:$0xff]
    %v70 = vld [vmem:[%s1 + $0xe0] sm:$0xff]
    %v71 = vld [vmem:[%s1 + $0xe8] sm:$0xff]
    %v72 = vld [vmem:[%s1 + $0xf0] sm:$0xff]
    %v73 = vld [vmem:[%s1 + $0xf8] sm:$0xff]
    %v74 = vld [vmem:[%s1 + $0x100] sm:$0xff]
    %v75 = vld [vmem:[%s1 + $0x108] sm:$0xff]
    %v76 = vld [vmem:[%s1 + $0x110] sm:$0xff]
    %v77 = vld [vmem:[%s1 + $0x118] sm:$0xff]
    %v78 = vld [vmem:[%s1 + $0x120] sm:$0xff]
    %v79 = vld [vmem:[%s1 + $0x128] sm:$0xff]
    %v80 = vld [vmem:[%s1 + $0x130] sm:$0xff]
    %v81 = vld [vmem:[%s1 + $0x138] sm:$0xff]
    %v82 = vld [vmem:[%s1 + $0x140] sm:$0xff]
    %v83 = vld [vmem:[%s1 + $0x148] sm:$0xff]
    %v84 = vld [vmem:[%s1 + $0x150] sm:$0xff]
    %v85 = vld [vmem:[%s1 + $0x158] sm:$0xff]
    %v86 = vld [vmem:[%s1 + $0x160] sm:$0xff]
    %v87 = vld [vmem:[%s1 + $0x168] sm:$0xff]
    %v88 = vld [vmem:[%s1 + $0x170] sm:$0xff]
    %v89 = vld [vmem:[%s1 + $0x178] sm:$0xff]
    %v90 = vld [vmem:[%s1 + $0x180] sm:$0xff]
    %v91 = vld [vmem:[%s1 + $0x188] sm:$0xff]
    %v92 = vld [vmem:[%s1 + $0x190] sm:$0xff]
    %v93 = vld [vmem:[%s1 + $0x198] sm:$0xff]
    %v94 = vld [vmem:[%s1 + $0x1a0] sm:$0xff]
    %v95 = vld [vmem:[%s1 + $0x1a8] sm:$0xff]
    %v96 = vld [vmem:[%s1 + $0x1b0] sm:$0xff]
    %v97 = vld [vmem:[%s1 + $0x1b8] sm:$0xff]
    %v98 = vld [vmem:[%s1 + $0x1c0] sm:$0xff]
    %v99 = vld [vmem:[%s1 + $0x1c8] sm:$0xff]
    %v100 = vld [vmem:[%s1 + $0x1d0] sm:$0xff]
    %v101 = vld [vmem:[%s1 + $0x1d8] sm:$0xff]
    %v102 = vld [vmem:[%s1 + $0x1e0] sm:$0xff]
    %v103 = vld [vmem:[%s1 + $0x1e8] sm:$0xff]
    %v104 = vld [vmem:[%s1 + $0x1f0] sm:$0xff]
    %v105 = vld [vmem:[%s1 + $0x1f8] sm:$0xff]
    %v106 = vld [vmem:[%s0] sm:$0xff]
    %v107 = vld [vmem:[%s0 + $0x8] sm:$0xff]
    %v108 = vld [vmem:[%s0 + $0x10] sm:$0xff]
    %v109 = vld [vmem:[%s0 + $0x18] sm:$0xff]
    %v110 = vld [vmem:[%s0 + $0x20] sm:$0xff]
    %v111 = vld [vmem:[%s0 + $0x28] sm:$0xff]
    %v112 = vld [vmem:[%s0 + $0x30] sm:$0xff]
    %v113 = vld [vmem:[%s0 + $0x38] sm:$0xff]
    %v114 = vld [vmem:[%s0 + $0x40] sm:$0xff]
    %v115 = vld [vmem:[%s0 + $0x48] sm:$0xff]
    %v116 = vld [vmem:[%s0 + $0x50] sm:$0xff]
    %v117 = vld [vmem:[%s0 + $0x58] sm:$0xff]
    %v118 = vld [vmem:[%s0 + $0x60] sm:$0xff]
    %v119 = vld [vmem:[%s0 + $0x68] sm:$0xff]
    %v120 = vld [vmem:[%s0 + $0x70] sm:$0xff]
    %v121 = vld [vmem:[%s0 + $0x78] sm:$0xff]
    %v122 = vld [vmem:[%s0 + $0x80] sm:$0xff]
    %v123 = vld [vmem:[%s0 + $0x88] sm:$0xff]
    %v124 = vld [vmem:[%s0 + $0x90] sm:$0xff]
    %v125 = vld [vmem:[%s0 + $0x98] sm:$0xff]
    %v126 = vld [vmem:[%s0 + $0xa0] sm:$0xff]
    %v127 = vld [vmem:[%s0 + $0xa8] sm:$0xff]
    %v128 = vld [vmem:[%s0 + $0xb0] sm:$0xff]
    %v129 = vld [vmem:[%s0 + $0xb8] sm:$0xff]
    %v130 = vld [vmem:[%s0 + $0xc0] sm:$0xff]
    %v131 = vld [vmem:[%s0 + $0xc8] sm:$0xff]
    %v132 = vld [vmem:[%s0 + $0xd0] sm:$0xff]
    %v133 = vld [vmem:[%s0 + $0xd8] sm:$0xff]
    %v134 = vld [vmem:[%s0 + $0xe0] sm:$0xff]
    %v135 = vld [vmem:[%s0 + $0xe8] sm:$0xff]
    %v136 = vld [vmem:[%s0 + $0xf0] sm:$0xff]
    %v137 = vld [vmem:[%s0 + $0xf8] sm:$0xff]
    %v138 = vld [vmem:[%s0 + $0x100] sm:$0xff]
    %v139 = vld [vmem:[%s0 + $0x108] sm:$0xff]
    %v140 = vld [vmem:[%s0 + $0x110] sm:$0xff]
    %v141 = vld [vmem:[%s0 + $0x118] sm:$0xff]
    %v142 = vld [vmem:[%s0 + $0x120] sm:$0xff]
    %v143 = vld [vmem:[%s0 + $0x128] sm:$0xff]
    %v144 = vld [vmem:[%s0 + $0x130] sm:$0xff]
    %v145 = vld [vmem:[%s0 + $0x138] sm:$0xff]
    %v146 = vld [vmem:[%s0 + $0x140] sm:$0xff]
    %v147 = vld [vmem:[%s0 + $0x148] sm:$0xff]
    %v148 = vld [vmem:[%s0 + $0x150] sm:$0xff]
    %v149 = vld [vmem:[%s0 + $0x158] sm:$0xff]
    %v150 = vld [vmem:[%s0 + $0x160] sm:$0xff]
    %v151 = vld [vmem:[%s0 + $0x168] sm:$0xff]
    %v152 = vld [vmem:[%s0 + $0x170] sm:$0xff]
    %v153 = vld [vmem:[%s0 + $0x178] sm:$0xff]
    %v154 = vld [vmem:[%s0 + $0x180] sm:$0xff]
    %v155 = vld [vmem:[%s0 + $0x188] sm:$0xff]
    %v156 = vld [vmem:[%s0 + $0x190] sm:$0xff]
    %v157 = vld [vmem:[%s0 + $0x198] sm:$0xff]
    %v158 = vld [vmem:[%s0 + $0x1a0] sm:$0xff]
    %v159 = vld [vmem:[%s0 + $0x1a8] sm:$0xff]
    %v160 = vld [vmem:[%s0 + $0x1b0] sm:$0xff]
    %v161 = vld [vmem:[%s0 + $0x1b8] sm:$0xff]
    %v162 = vld [vmem:[%s0 + $0x1c0] sm:$0xff]
    %v163 = vld [vmem:[%s0 + $0x1c8] sm:$0xff]
    %v164 = vld [vmem:[%s0 + $0x1d0] sm:$0xff]
    %v165 = vld [vmem:[%s0 + $0x1d8] sm:$0xff]
    %v166 = vld [vmem:[%s0 + $0x1e0] sm:$0xff]
    %v167 = vld [vmem:[%s0 + $0x1e8] sm:$0xff]
    %v168 = vld [vmem:[%s0 + $0x1f0] sm:$0xff]
    %v169 = vld [vmem:[%s0 + $0x1f8] sm:$0xff]
    %v170 = vmul.f32 %v106, %v42
    %v171 = vmul.f32 %v107, %v43
    %v172 = vmul.f32 %v108, %v44
    %v173 = vmul.f32 %v109, %v45
    %v174 = vmul.f32 %v110, %v46
    %v175 = vmul.f32 %v111, %v47
    %v176 = vmul.f32 %v112, %v48
    %v177 = vmul.f32 %v113, %v49
    %v178 = vmul.f32 %v114, %v50
    %v179 = vmul.f32 %v115, %v51
    %v180 = vmul.f32 %v116, %v52
    %v181 = vmul.f32 %v117, %v53
    %v182 = vmul.f32 %v118, %v54
    %v183 = vmul.f32 %v119, %v55
    %v184 = vmul.f32 %v120, %v56
    %v185 = vmul.f32 %v121, %v57
    %v186 = vmul.f32 %v122, %v58
    %v187 = vmul.f32 %v123, %v59
    %v188 = vmul.f32 %v124, %v60
    %v189 = vmul.f32 %v125, %v61
    %v190 = vmul.f32 %v126, %v62
    %v191 = vmul.f32 %v127, %v63
    %v192 = vmul.f32 %v128, %v64
    %v193 = vmul.f32 %v129, %v65
    %v194 = vmul.f32 %v130, %v66
    %v195 = vmul.f32 %v131, %v67
    %v196 = vmul.f32 %v132, %v68
    %v197 = vmul.f32 %v133, %v69
    %v198 = vmul.f32 %v134, %v70
    %v199 = vmul.f32 %v135, %v71
    %v200 = vmul.f32 %v136, %v72
    %v201 = vmul.f32 %v137, %v73
    %v202 = vmul.f32 %v138, %v74
    %v203 = vmul.f32 %v139, %v75
    %v204 = vmul.f32 %v140, %v76
    %v205 = vmul.f32 %v141, %v77
    %v206 = vmul.f32 %v142, %v78
    %v207 = vmul.f32 %v143, %v79
    %v208 = vmul.f32 %v144, %v80
    %v209 = vmul.f32 %v145, %v81
    %v210 = vmul.f32 %v146, %v82
    %v211 = vmul.f32 %v147, %v83
    %v212 = vmul.f32 %v148, %v84
    %v213 = vmul.f32 %v149, %v85
    %v214 = vmul.f32 %v150, %v86
    %v215 = vmul.f32 %v151, %v87
    %v216 = vmul.f32 %v152, %v88
    %v217 = vmul.f32 %v153, %v89
    %v218 = vmul.f32 %v154, %v90
    %v219 = vmul.f32 %v155, %v91
    %v220 = vmul.f32 %v156, %v92
    %v221 = vmul.f32 %v157, %v93
    %v222 = vmul.f32 %v158, %v94
    %v223 = vmul.f32 %v159, %v95
    %v224 = vmul.f32 %v160, %v96
    %v225 = vmul.f32 %v161, %v97
    %v226 = vmul.f32 %v162, %v98
    %v227 = vmul.f32 %v163, %v99
    %v228 = vmul.f32 %v164, %v100
    %v229 = vmul.f32 %v165, %v101
    %v230 = vmul.f32 %v166, %v102
    %v231 = vmul.f32 %v167, %v103
    %v232 = vmul.f32 %v168, %v104
    %v233 = vmul.f32 %v169, %v105
    %v234 = vld [vmem:[%s2] sm:$0x3]
    %v235 = vld [vmem:[%s3] sm:$0x1]
    %v237 = vperm.slane %v235, 0
    %vm239 = vcmask 15360
    %v241 = vsel %vm239, %v170, 0
    %v244 = vsel %vm239, %v171, 0
    %v247 = vsel %vm239, %v172, 0
    %v250 = vsel %vm239, %v173, 0
    %v253 = vsel %vm239, %v174, 0
    %v256 = vsel %vm239, %v175, 0
    %v259 = vsel %vm239, %v176, 0
    %v262 = vsel %vm239, %v177, 0
    %v265 = vsel %vm239, %v178, 0
    %v268 = vsel %vm239, %v179, 0
    %v271 = vsel %vm239, %v180, 0
    %v274 = vsel %vm239, %v181, 0
    %v277 = vsel %vm239, %v182, 0
    %v280 = vsel %vm239, %v183, 0
    %v283 = vsel %vm239, %v184, 0
    %v286 = vsel %vm239, %v185, 0
    %v289 = vsel %vm239, %v186, 0
    %v292 = vsel %vm239, %v187, 0
    %v295 = vsel %vm239, %v188, 0
    %v298 = vsel %vm239, %v189, 0
    %v301 = vsel %vm239, %v190, 0
    %v304 = vsel %vm239, %v191, 0
    %v307 = vsel %vm239, %v192, 0
    %v310 = vsel %vm239, %v193, 0
    %v313 = vsel %vm239, %v194, 0
    %v316 = vsel %vm239, %v195, 0
    %v319 = vsel %vm239, %v196, 0
    %v322 = vsel %vm239, %v197, 0
    %v325 = vsel %vm239, %v198, 0
    %v328 = vsel %vm239, %v199, 0
    %v331 = vsel %vm239, %v200, 0
    %v334 = vsel %vm239, %v201, 0
    %v337 = vsel %vm239, %v202, 0
    %v340 = vsel %vm239, %v203, 0
    %v343 = vsel %vm239, %v204, 0
    %v346 = vsel %vm239, %v205, 0
    %v349 = vsel %vm239, %v206, 0
    %v352 = vsel %vm239, %v207, 0
    %v355 = vsel %vm239, %v208, 0
    %v358 = vsel %vm239, %v209, 0
    %v361 = vsel %vm239, %v210, 0
    %v364 = vsel %vm239, %v211, 0
    %v367 = vsel %vm239, %v212, 0
    %v370 = vsel %vm239, %v213, 0
    %v373 = vsel %vm239, %v214, 0
    %v376 = vsel %vm239, %v215, 0
    %v379 = vsel %vm239, %v216, 0
    %v382 = vsel %vm239, %v217, 0
    %v385 = vsel %vm239, %v218, 0
    %v388 = vsel %vm239, %v219, 0
    %v391 = vsel %vm239, %v220, 0
    %v394 = vsel %vm239, %v221, 0
    %v397 = vsel %vm239, %v222, 0
    %v400 = vsel %vm239, %v223, 0
    %v403 = vsel %vm239, %v224, 0
    %v406 = vsel %vm239, %v225, 0
    %v409 = vsel %vm239, %v226, 0
    %v412 = vsel %vm239, %v227, 0
    %v415 = vsel %vm239, %v228, 0
    %v418 = vsel %vm239, %v229, 0
    %v421 = vsel %vm239, %v230, 0
    %v424 = vsel %vm239, %v231, 0
    %v427 = vsel %vm239, %v232, 0
    %v430 = vsel %vm239, %v233, 0
    %vm432 = vcmask 1041408
    %v434 = vsel %vm432, %v234, 0
    %436 = vmatpush.msra.mxu0 0.0
    %437 = vmatpush.msra.mxu0 0.0
    %438 = vmatpush.msra.mxu0 0.0
    %439 = vmatpush.msra.mxu0 0.0
    %440 = vmatpush.msra.mxu0 0.0
    %441 = vmatpush.msra.mxu0 0.0
    %442 = vmatpush.msra.mxu0 0.0
    %443 = vmatpush.msra.mxu0 0.0
    %444 = vmatpush.msra.mxu0 0.0
    %445 = vmatpush.msra.mxu0 0.0
    %446 = vmatpush.msra.mxu0 0.0
    %447 = vmatpush.msra.mxu0 0.0
    %448 = vmatpush.msra.mxu0 0.0
    %449 = vmatpush.msra.mxu0 0.0
    %450 = vmatpush.msra.mxu0 0.0
    %451 = vmatpush.msra.mxu0 %v434
    %452 = vmatmul.f32.gmra.mxu0 %v241
    %v453 = vpop.f32.mrf.mxu0
    %v454 = vadd.f32 %v237, %v453
    %455 = vmatmul.f32.gmra.mxu0 %v244
    %v456 = vpop.f32.mrf.mxu0
    %v457 = vadd.f32 %v237, %v456
    %458 = vmatmul.f32.gmra.mxu0 %v247
    %v459 = vpop.f32.mrf.mxu0
    %v460 = vadd.f32 %v237, %v459
    %461 = vmatmul.f32.gmra.mxu0 %v250
    %v462 = vpop.f32.mrf.mxu0
    %v463 = vadd.f32 %v237, %v462
    %464 = vmatmul.f32.gmra.mxu0 %v253
    %v465 = vpop.f32.mrf.mxu0
    %v466 = vadd.f32 %v237, %v465
    %467 = vmatmul.f32.gmra.mxu0 %v256
    %v468 = vpop.f32.mrf.mxu0
    %v469 = vadd.f32 %v237, %v468
    %470 = vmatmul.f32.gmra.mxu0 %v259
    %v471 = vpop.f32.mrf.mxu0
    %v472 = vadd.f32 %v237, %v471
    %473 = vmatmul.f32.gmra.mxu0 %v262
    %v474 = vpop.f32.mrf.mxu0
    %v475 = vadd.f32 %v237, %v474
    %476 = vmatmul.f32.gmra.mxu0 %v265
    %v477 = vpop.f32.mrf.mxu0
    %v478 = vadd.f32 %v237, %v477
    %479 = vmatmul.f32.gmra.mxu0 %v268
    %v480 = vpop.f32.mrf.mxu0
    %v481 = vadd.f32 %v237, %v480
    %482 = vmatmul.f32.gmra.mxu0 %v271
    %v483 = vpop.f32.mrf.mxu0
    %v484 = vadd.f32 %v237, %v483
    %485 = vmatmul.f32.gmra.mxu0 %v274
    %v486 = vpop.f32.mrf.mxu0
    %v487 = vadd.f32 %v237, %v486
    %488 = vmatmul.f32.gmra.mxu0 %v277
    %v489 = vpop.f32.mrf.mxu0
    %v490 = vadd.f32 %v237, %v489
    %491 = vmatmul.f32.gmra.mxu0 %v280
    %v492 = vpop.f32.mrf.mxu0
    %v493 = vadd.f32 %v237, %v492
    %494 = vmatmul.f32.gmra.mxu0 %v283
    %v495 = vpop.f32.mrf.mxu0
    %v496 = vadd.f32 %v237, %v495
    %497 = vmatmul.f32.gmra.mxu0 %v286
    %v498 = vpop.f32.mrf.mxu0
    %v499 = vadd.f32 %v237, %v498
    %500 = vmatmul.f32.gmra.mxu0 %v289
    %v501 = vpop.f32.mrf.mxu0
    %v502 = vadd.f32 %v237, %v501
    %503 = vmatmul.f32.gmra.mxu0 %v292
    %v504 = vpop.f32.mrf.mxu0
    %v505 = vadd.f32 %v237, %v504
    %506 = vmatmul.f32.gmra.mxu0 %v295
    %v507 = vpop.f32.mrf.mxu0
    %v508 = vadd.f32 %v237, %v507
    %509 = vmatmul.f32.gmra.mxu0 %v298
    %v510 = vpop.f32.mrf.mxu0
    %v511 = vadd.f32 %v237, %v510
    %512 = vmatmul.f32.gmra.mxu0 %v301
    %v513 = vpop.f32.mrf.mxu0
    %v514 = vadd.f32 %v237, %v513
    %515 = vmatmul.f32.gmra.mxu0 %v304
    %v516 = vpop.f32.mrf.mxu0
    %v517 = vadd.f32 %v237, %v516
    %518 = vmatmul.f32.gmra.mxu0 %v307
    %v519 = vpop.f32.mrf.mxu0
    %v520 = vadd.f32 %v237, %v519
    %521 = vmatmul.f32.gmra.mxu0 %v310
    %v522 = vpop.f32.mrf.mxu0
    %v523 = vadd.f32 %v237, %v522
    %524 = vmatmul.f32.gmra.mxu0 %v313
    %v525 = vpop.f32.mrf.mxu0
    %v526 = vadd.f32 %v237, %v525
    %527 = vmatmul.f32.gmra.mxu0 %v316
    %v528 = vpop.f32.mrf.mxu0
    %v529 = vadd.f32 %v237, %v528
    %530 = vmatmul.f32.gmra.mxu0 %v319
    %v531 = vpop.f32.mrf.mxu0
    %v532 = vadd.f32 %v237, %v531
    %533 = vmatmul.f32.gmra.mxu0 %v322
    %v534 = vpop.f32.mrf.mxu0
    %v535 = vadd.f32 %v237, %v534
    %536 = vmatmul.f32.gmra.mxu0 %v325
    %v537 = vpop.f32.mrf.mxu0
    %v538 = vadd.f32 %v237, %v537
    %539 = vmatmul.f32.gmra.mxu0 %v328
    %v540 = vpop.f32.mrf.mxu0
    %v541 = vadd.f32 %v237, %v540
    %542 = vmatmul.f32.gmra.mxu0 %v331
    %v543 = vpop.f32.mrf.mxu0
    %v544 = vadd.f32 %v237, %v543
    %545 = vmatmul.f32.gmra.mxu0 %v334
    %v546 = vpop.f32.mrf.mxu0
    %v547 = vadd.f32 %v237, %v546
    %548 = vmatmul.f32.gmra.mxu0 %v337
    %v549 = vpop.f32.mrf.mxu0
    %v550 = vadd.f32 %v237, %v549
    %551 = vmatmul.f32.gmra.mxu0 %v340
    %v552 = vpop.f32.mrf.mxu0
    %v553 = vadd.f32 %v237, %v552
    %554 = vmatmul.f32.gmra.mxu0 %v343
    %v555 = vpop.f32.mrf.mxu0
    %v556 = vadd.f32 %v237, %v555
    %557 = vmatmul.f32.gmra.mxu0 %v346
    %v558 = vpop.f32.mrf.mxu0
    %v559 = vadd.f32 %v237, %v558
    %560 = vmatmul.f32.gmra.mxu0 %v349
    %v561 = vpop.f32.mrf.mxu0
    %v562 = vadd.f32 %v237, %v561
    %563 = vmatmul.f32.gmra.mxu0 %v352
    %v564 = vpop.f32.mrf.mxu0
    %v565 = vadd.f32 %v237, %v564
    %566 = vmatmul.f32.gmra.mxu0 %v355
    %v567 = vpop.f32.mrf.mxu0
    %v568 = vadd.f32 %v237, %v567
    %569 = vmatmul.f32.gmra.mxu0 %v358
    %v570 = vpop.f32.mrf.mxu0
    %v571 = vadd.f32 %v237, %v570
    %572 = vmatmul.f32.gmra.mxu0 %v361
    %v573 = vpop.f32.mrf.mxu0
    %v574 = vadd.f32 %v237, %v573
    %575 = vmatmul.f32.gmra.mxu0 %v364
    %v576 = vpop.f32.mrf.mxu0
    %v577 = vadd.f32 %v237, %v576
    %578 = vmatmul.f32.gmra.mxu0 %v367
    %v579 = vpop.f32.mrf.mxu0
    %v580 = vadd.f32 %v237, %v579
    %581 = vmatmul.f32.gmra.mxu0 %v370
    %v582 = vpop.f32.mrf.mxu0
    %v583 = vadd.f32 %v237, %v582
    %584 = vmatmul.f32.gmra.mxu0 %v373
    %v585 = vpop.f32.mrf.mxu0
    %v586 = vadd.f32 %v237, %v585
    %587 = vmatmul.f32.gmra.mxu0 %v376
    %v588 = vpop.f32.mrf.mxu0
    %v589 = vadd.f32 %v237, %v588
    %590 = vmatmul.f32.gmra.mxu0 %v379
    %v591 = vpop.f32.mrf.mxu0
    %v592 = vadd.f32 %v237, %v591
    %593 = vmatmul.f32.gmra.mxu0 %v382
    %v594 = vpop.f32.mrf.mxu0
    %v595 = vadd.f32 %v237, %v594
    %596 = vmatmul.f32.gmra.mxu0 %v385
    %v597 = vpop.f32.mrf.mxu0
    %v598 = vadd.f32 %v237, %v597
    %599 = vmatmul.f32.gmra.mxu0 %v388
    %v600 = vpop.f32.mrf.mxu0
    %v601 = vadd.f32 %v237, %v600
    %602 = vmatmul.f32.gmra.mxu0 %v391
    %v603 = vpop.f32.mrf.mxu0
    %v604 = vadd.f32 %v237, %v603
    %605 = vmatmul.f32.gmra.mxu0 %v394
    %v606 = vpop.f32.mrf.mxu0
    %v607 = vadd.f32 %v237, %v606
    %608 = vmatmul.f32.gmra.mxu0 %v397
    %v609 = vpop.f32.mrf.mxu0
    %v610 = vadd.f32 %v237, %v609
    %611 = vmatmul.f32.gmra.mxu0 %v400
    %v612 = vpop.f32.mrf.mxu0
    %v613 = vadd.f32 %v237, %v612
    %614 = vmatmul.f32.gmra.mxu0 %v403
    %v615 = vpop.f32.mrf.mxu0
    %v616 = vadd.f32 %v237, %v615
    %617 = vmatmul.f32.gmra.mxu0 %v406
    %v618 = vpop.f32.mrf.mxu0
    %v619 = vadd.f32 %v237, %v618
    %620 = vmatmul.f32.gmra.mxu0 %v409
    %v621 = vpop.f32.mrf.mxu0
    %v622 = vadd.f32 %v237, %v621
    %623 = vmatmul.f32.gmra.mxu0 %v412
    %v624 = vpop.f32.mrf.mxu0
    %v625 = vadd.f32 %v237, %v624
    %626 = vmatmul.f32.gmra.mxu0 %v415
    %v627 = vpop.f32.mrf.mxu0
    %v628 = vadd.f32 %v237, %v627
    %629 = vmatmul.f32.gmra.mxu0 %v418
    %v630 = vpop.f32.mrf.mxu0
    %v631 = vadd.f32 %v237, %v630
    %632 = vmatmul.f32.gmra.mxu0 %v421
    %v633 = vpop.f32.mrf.mxu0
    %v634 = vadd.f32 %v237, %v633
    %635 = vmatmul.f32.gmra.mxu0 %v424
    %v636 = vpop.f32.mrf.mxu0
    %v637 = vadd.f32 %v237, %v636
    %638 = vmatmul.f32.gmra.mxu0 %v427
    %v639 = vpop.f32.mrf.mxu0
    %v640 = vadd.f32 %v237, %v639
    %641 = vmatmul.f32.gmra.mxu0 %v430
    %v642 = vpop.f32.mrf.mxu0
    %v643 = vadd.f32 %v237, %v642
    %644 = vdwg.mxu0
    %709 = vrot.lane.b32.xlu0 %v42, 126
    %v710 = vpop.permute.xlu0 %709
    %711 = vrot.lane.b32.xlu0 %v43, 126
    %v712 = vpop.permute.xlu0 %711
    %713 = vrot.lane.b32.xlu0 %v44, 126
    %v714 = vpop.permute.xlu0 %713
    %715 = vrot.lane.b32.xlu0 %v45, 126
    %v716 = vpop.permute.xlu0 %715
    %717 = vrot.lane.b32.xlu0 %v46, 126
    %v718 = vpop.permute.xlu0 %717
    %719 = vrot.lane.b32.xlu0 %v47, 126
    %v720 = vpop.permute.xlu0 %719
    %721 = vrot.lane.b32.xlu0 %v48, 126
    %v722 = vpop.permute.xlu0 %721
    %723 = vrot.lane.b32.xlu0 %v49, 126
    %v724 = vpop.permute.xlu0 %723
    %725 = vrot.lane.b32.xlu0 %v50, 126
    %v726 = vpop.permute.xlu0 %725
    %727 = vrot.lane.b32.xlu0 %v51, 126
    %v728 = vpop.permute.xlu0 %727
    %729 = vrot.lane.b32.xlu0 %v52, 126
    %v730 = vpop.permute.xlu0 %729
    %731 = vrot.lane.b32.xlu0 %v53, 126
    %v732 = vpop.permute.xlu0 %731
    %733 = vrot.lane.b32.xlu0 %v54, 126
    %v734 = vpop.permute.xlu0 %733
    %735 = vrot.lane.b32.xlu0 %v55, 126
    %v736 = vpop.permute.xlu0 %735
    %737 = vrot.lane.b32.xlu0 %v56, 126
    %v738 = vpop.permute.xlu0 %737
    %739 = vrot.lane.b32.xlu0 %v57, 126
    %v740 = vpop.permute.xlu0 %739
    %741 = vrot.lane.b32.xlu0 %v58, 126
    %v742 = vpop.permute.xlu0 %741
    %743 = vrot.lane.b32.xlu0 %v59, 126
    %v744 = vpop.permute.xlu0 %743
    %745 = vrot.lane.b32.xlu0 %v60, 126
    %v746 = vpop.permute.xlu0 %745
    %747 = vrot.lane.b32.xlu0 %v61, 126
    %v748 = vpop.permute.xlu0 %747
    %749 = vrot.lane.b32.xlu0 %v62, 126
    %v750 = vpop.permute.xlu0 %749
    %751 = vrot.lane.b32.xlu0 %v63, 126
    %v752 = vpop.permute.xlu0 %751
    %753 = vrot.lane.b32.xlu0 %v64, 126
    %v754 = vpop.permute.xlu0 %753
    %755 = vrot.lane.b32.xlu0 %v65, 126
    %v756 = vpop.permute.xlu0 %755
    %757 = vrot.lane.b32.xlu0 %v66, 126
    %v758 = vpop.permute.xlu0 %757
    %759 = vrot.lane.b32.xlu0 %v67, 126
    %v760 = vpop.permute.xlu0 %759
    %761 = vrot.lane.b32.xlu0 %v68, 126
    %v762 = vpop.permute.xlu0 %761
    %763 = vrot.lane.b32.xlu0 %v69, 126
    %v764 = vpop.permute.xlu0 %763
    %765 = vrot.lane.b32.xlu0 %v70, 126
    %v766 = vpop.permute.xlu0 %765
    %767 = vrot.lane.b32.xlu0 %v71, 126
    %v768 = vpop.permute.xlu0 %767
    %769 = vrot.lane.b32.xlu0 %v72, 126
    %v770 = vpop.permute.xlu0 %769
    %771 = vrot.lane.b32.xlu0 %v73, 126
    %v772 = vpop.permute.xlu0 %771
    %773 = vrot.lane.b32.xlu0 %v74, 126
    %v774 = vpop.permute.xlu0 %773
    %775 = vrot.lane.b32.xlu0 %v75, 126
    %v776 = vpop.permute.xlu0 %775
    %777 = vrot.lane.b32.xlu0 %v76, 126
    %v778 = vpop.permute.xlu0 %777
    %779 = vrot.lane.b32.xlu0 %v77, 126
    %v780 = vpop.permute.xlu0 %779
    %781 = vrot.lane.b32.xlu0 %v78, 126
    %v782 = vpop.permute.xlu0 %781
    %783 = vrot.lane.b32.xlu0 %v79, 126
    %v784 = vpop.permute.xlu0 %783
    %785 = vrot.lane.b32.xlu0 %v80, 126
    %v786 = vpop.permute.xlu0 %785
    %787 = vrot.lane.b32.xlu0 %v81, 126
    %v788 = vpop.permute.xlu0 %787
    %789 = vrot.lane.b32.xlu0 %v82, 126
    %v790 = vpop.permute.xlu0 %789
    %791 = vrot.lane.b32.xlu0 %v83, 126
    %v792 = vpop.permute.xlu0 %791
    %793 = vrot.lane.b32.xlu0 %v84, 126
    %v794 = vpop.permute.xlu0 %793
    %795 = vrot.lane.b32.xlu0 %v85, 126
    %v796 = vpop.permute.xlu0 %795
    %797 = vrot.lane.b32.xlu0 %v86, 126
    %v798 = vpop.permute.xlu0 %797
    %799 = vrot.lane.b32.xlu0 %v87, 126
    %v800 = vpop.permute.xlu0 %799
    %801 = vrot.lane.b32.xlu0 %v88, 126
    %v802 = vpop.permute.xlu0 %801
    %803 = vrot.lane.b32.xlu0 %v89, 126
    %v804 = vpop.permute.xlu0 %803
    %805 = vrot.lane.b32.xlu0 %v90, 126
    %v806 = vpop.permute.xlu0 %805
    %807 = vrot.lane.b32.xlu0 %v91, 126
    %v808 = vpop.permute.xlu0 %807
    %809 = vrot.lane.b32.xlu0 %v92, 126
    %v810 = vpop.permute.xlu0 %809
    %811 = vrot.lane.b32.xlu0 %v93, 126
    %v812 = vpop.permute.xlu0 %811
    %813 = vrot.lane.b32.xlu0 %v94, 126
    %v814 = vpop.permute.xlu0 %813
    %815 = vrot.lane.b32.xlu0 %v95, 126
    %v816 = vpop.permute.xlu0 %815
    %817 = vrot.lane.b32.xlu0 %v96, 126
    %v818 = vpop.permute.xlu0 %817
    %819 = vrot.lane.b32.xlu0 %v97, 126
    %v820 = vpop.permute.xlu0 %819
    %821 = vrot.lane.b32.xlu0 %v98, 126
    %v822 = vpop.permute.xlu0 %821
    %823 = vrot.lane.b32.xlu0 %v99, 126
    %v824 = vpop.permute.xlu0 %823
    %825 = vrot.lane.b32.xlu0 %v100, 126
    %v826 = vpop.permute.xlu0 %825
    %827 = vrot.lane.b32.xlu0 %v101, 126
    %v828 = vpop.permute.xlu0 %827
    %829 = vrot.lane.b32.xlu0 %v102, 126
    %v830 = vpop.permute.xlu0 %829
    %831 = vrot.lane.b32.xlu0 %v103, 126
    %v832 = vpop.permute.xlu0 %831
    %833 = vrot.lane.b32.xlu0 %v104, 126
    %v834 = vpop.permute.xlu0 %833
    %835 = vrot.lane.b32.xlu0 %v105, 126
    %v836 = vpop.permute.xlu0 %835
    %v901 = vmul.f32 %v454, %v710
    %v902 = vmul.f32 %v457, %v712
    %v903 = vmul.f32 %v460, %v714
    %v904 = vmul.f32 %v463, %v716
    %v905 = vmul.f32 %v466, %v718
    %v906 = vmul.f32 %v469, %v720
    %v907 = vmul.f32 %v472, %v722
    %v908 = vmul.f32 %v475, %v724
    %v909 = vmul.f32 %v478, %v726
    %v910 = vmul.f32 %v481, %v728
    %v911 = vmul.f32 %v484, %v730
    %v912 = vmul.f32 %v487, %v732
    %v913 = vmul.f32 %v490, %v734
    %v914 = vmul.f32 %v493, %v736
    %v915 = vmul.f32 %v496, %v738
    %v916 = vmul.f32 %v499, %v740
    %v917 = vmul.f32 %v502, %v742
    %v918 = vmul.f32 %v505, %v744
    %v919 = vmul.f32 %v508, %v746
    %v920 = vmul.f32 %v511, %v748
    %v921 = vmul.f32 %v514, %v750
    %v922 = vmul.f32 %v517, %v752
    %v923 = vmul.f32 %v520, %v754
    %v924 = vmul.f32 %v523, %v756
    %v925 = vmul.f32 %v526, %v758
    %v926 = vmul.f32 %v529, %v760
    %v927 = vmul.f32 %v532, %v762
    %v928 = vmul.f32 %v535, %v764
    %v929 = vmul.f32 %v538, %v766
    %v930 = vmul.f32 %v541, %v768
    %v931 = vmul.f32 %v544, %v770
    %v932 = vmul.f32 %v547, %v772
    %v933 = vmul.f32 %v550, %v774
    %v934 = vmul.f32 %v553, %v776
    %v935 = vmul.f32 %v556, %v778
    %v936 = vmul.f32 %v559, %v780
    %v937 = vmul.f32 %v562, %v782
    %v938 = vmul.f32 %v565, %v784
    %v939 = vmul.f32 %v568, %v786
    %v940 = vmul.f32 %v571, %v788
    %v941 = vmul.f32 %v574, %v790
    %v942 = vmul.f32 %v577, %v792
    %v943 = vmul.f32 %v580, %v794
    %v944 = vmul.f32 %v583, %v796
    %v945 = vmul.f32 %v586, %v798
    %v946 = vmul.f32 %v589, %v800
    %v947 = vmul.f32 %v592, %v802
    %v948 = vmul.f32 %v595, %v804
    %v949 = vmul.f32 %v598, %v806
    %v950 = vmul.f32 %v601, %v808
    %v951 = vmul.f32 %v604, %v810
    %v952 = vmul.f32 %v607, %v812
    %v953 = vmul.f32 %v610, %v814
    %v954 = vmul.f32 %v613, %v816
    %v955 = vmul.f32 %v616, %v818
    %v956 = vmul.f32 %v619, %v820
    %v957 = vmul.f32 %v622, %v822
    %v958 = vmul.f32 %v625, %v824
    %v959 = vmul.f32 %v628, %v826
    %v960 = vmul.f32 %v631, %v828
    %v961 = vmul.f32 %v634, %v830
    %v962 = vmul.f32 %v637, %v832
    %v963 = vmul.f32 %v640, %v834
    %v964 = vmul.f32 %v643, %v836
    %v965 = vld [vmem:[%s4] sm:$0xf]
    %v966 = vld [vmem:[%s5] sm:$0x1]
    %v968 = vperm.slane %v966, 0
    %vm970 = vcmask 31744
    %v972 = vsel %vm970, %v901, 0
    %v975 = vsel %vm970, %v902, 0
    %v978 = vsel %vm970, %v903, 0
    %v981 = vsel %vm970, %v904, 0
    %v984 = vsel %vm970, %v905, 0
    %v987 = vsel %vm970, %v906, 0
    %v990 = vsel %vm970, %v907, 0
    %v993 = vsel %vm970, %v908, 0
    %v996 = vsel %vm970, %v909, 0
    %v999 = vsel %vm970, %v910, 0
    %v1002 = vsel %vm970, %v911, 0
    %v1005 = vsel %vm970, %v912, 0
    %v1008 = vsel %vm970, %v913, 0
    %v1011 = vsel %vm970, %v914, 0
    %v1014 = vsel %vm970, %v915, 0
    %v1017 = vsel %vm970, %v916, 0
    %v1020 = vsel %vm970, %v917, 0
    %v1023 = vsel %vm970, %v918, 0
    %v1026 = vsel %vm970, %v919, 0
    %v1029 = vsel %vm970, %v920, 0
    %v1032 = vsel %vm970, %v921, 0
    %v1035 = vsel %vm970, %v922, 0
    %v1038 = vsel %vm970, %v923, 0
    %v1041 = vsel %vm970, %v924, 0
    %v1044 = vsel %vm970, %v925, 0
    %v1047 = vsel %vm970, %v926, 0
    %v1050 = vsel %vm970, %v927, 0
    %v1053 = vsel %vm970, %v928, 0
    %v1056 = vsel %vm970, %v929, 0
    %v1059 = vsel %vm970, %v930, 0
    %v1062 = vsel %vm970, %v931, 0
    %v1065 = vsel %vm970, %v932, 0
    %v1068 = vsel %vm970, %v933, 0
    %v1071 = vsel %vm970, %v934, 0
    %v1074 = vsel %vm970, %v935, 0
    %v1077 = vsel %vm970, %v936, 0
    %v1080 = vsel %vm970, %v937, 0
    %v1083 = vsel %vm970, %v938, 0
    %v1086 = vsel %vm970, %v939, 0
    %v1089 = vsel %vm970, %v940, 0
    %v1092 = vsel %vm970, %v941, 0
    %v1095 = vsel %vm970, %v942, 0
    %v1098 = vsel %vm970, %v943, 0
    %v1101 = vsel %vm970, %v944, 0
    %v1104 = vsel %vm970, %v945, 0
    %v1107 = vsel %vm970, %v946, 0
    %v1110 = vsel %vm970, %v947, 0
    %v1113 = vsel %vm970, %v948, 0
    %v1116 = vsel %vm970, %v949, 0
    %v1119 = vsel %vm970, %v950, 0
    %v1122 = vsel %vm970, %v951, 0
    %v1125 = vsel %vm970, %v952, 0
    %v1128 = vsel %vm970, %v953, 0
    %v1131 = vsel %vm970, %v954, 0
    %v1134 = vsel %vm970, %v955, 0
    %v1137 = vsel %vm970, %v956, 0
    %v1140 = vsel %vm970, %v957, 0
    %v1143 = vsel %vm970, %v958, 0
    %v1146 = vsel %vm970, %v959, 0
    %v1149 = vsel %vm970, %v960, 0
    %v1152 = vsel %vm970, %v961, 0
    %v1155 = vsel %vm970, %v962, 0
    %v1158 = vsel %vm970, %v963, 0
    %v1161 = vsel %vm970, %v964, 0
    %vm1163 = vcmask 1043456
    %v1165 = vsel %vm1163, %v965, 0
    %1167 = vmatpush.msra.mxu0 0.0
    %1168 = vmatpush.msra.mxu0 0.0
    %1169 = vmatpush.msra.mxu0 0.0
    %1170 = vmatpush.msra.mxu0 0.0
    %1171 = vmatpush.msra.mxu0 0.0
    %1172 = vmatpush.msra.mxu0 0.0
    %1173 = vmatpush.msra.mxu0 0.0
    %1174 = vmatpush.msra.mxu0 0.0
    %1175 = vmatpush.msra.mxu0 0.0
    %1176 = vmatpush.msra.mxu0 0.0
    %1177 = vmatpush.msra.mxu0 0.0
    %1178 = vmatpush.msra.mxu0 0.0
    %1179 = vmatpush.msra.mxu0 0.0
    %1180 = vmatpush.msra.mxu0 0.0
    %1181 = vmatpush.msra.mxu0 0.0
    %1182 = vmatpush.msra.mxu0 %v1165
    %1183 = vmatmul.f32.gmra.mxu0 %v972
    %v1184 = vpop.f32.mrf.mxu0
    %v1185 = vadd.f32 %v968, %v1184
    %1186 = vmatmul.f32.gmra.mxu0 %v975
    %v1187 = vpop.f32.mrf.mxu0
    %v1188 = vadd.f32 %v968, %v1187
    %1189 = vmatmul.f32.gmra.mxu0 %v978
    %v1190 = vpop.f32.mrf.mxu0
    %v1191 = vadd.f32 %v968, %v1190
    %1192 = vmatmul.f32.gmra.mxu0 %v981
    %v1193 = vpop.f32.mrf.mxu0
    %v1194 = vadd.f32 %v968, %v1193
    %1195 = vmatmul.f32.gmra.mxu0 %v984
    %v1196 = vpop.f32.mrf.mxu0
    %v1197 = vadd.f32 %v968, %v1196
    %1198 = vmatmul.f32.gmra.mxu0 %v987
    %v1199 = vpop.f32.mrf.mxu0
    %v1200 = vadd.f32 %v968, %v1199
    %1201 = vmatmul.f32.gmra.mxu0 %v990
    %v1202 = vpop.f32.mrf.mxu0
    %v1203 = vadd.f32 %v968, %v1202
    %1204 = vmatmul.f32.gmra.mxu0 %v993
    %v1205 = vpop.f32.mrf.mxu0
    %v1206 = vadd.f32 %v968, %v1205
    %1207 = vmatmul.f32.gmra.mxu0 %v996
    %v1208 = vpop.f32.mrf.mxu0
    %v1209 = vadd.f32 %v968, %v1208
    %1210 = vmatmul.f32.gmra.mxu0 %v999
    %v1211 = vpop.f32.mrf.mxu0
    %v1212 = vadd.f32 %v968, %v1211
    %1213 = vmatmul.f32.gmra.mxu0 %v1002
    %v1214 = vpop.f32.mrf.mxu0
    %v1215 = vadd.f32 %v968, %v1214
    %1216 = vmatmul.f32.gmra.mxu0 %v1005
    %v1217 = vpop.f32.mrf.mxu0
    %v1218 = vadd.f32 %v968, %v1217
    %1219 = vmatmul.f32.gmra.mxu0 %v1008
    %v1220 = vpop.f32.mrf.mxu0
    %v1221 = vadd.f32 %v968, %v1220
    %1222 = vmatmul.f32.gmra.mxu0 %v1011
    %v1223 = vpop.f32.mrf.mxu0
    %v1224 = vadd.f32 %v968, %v1223
    %1225 = vmatmul.f32.gmra.mxu0 %v1014
    %v1226 = vpop.f32.mrf.mxu0
    %v1227 = vadd.f32 %v968, %v1226
    %1228 = vmatmul.f32.gmra.mxu0 %v1017
    %v1229 = vpop.f32.mrf.mxu0
    %v1230 = vadd.f32 %v968, %v1229
    %1231 = vmatmul.f32.gmra.mxu0 %v1020
    %v1232 = vpop.f32.mrf.mxu0
    %v1233 = vadd.f32 %v968, %v1232
    %1234 = vmatmul.f32.gmra.mxu0 %v1023
    %v1235 = vpop.f32.mrf.mxu0
    %v1236 = vadd.f32 %v968, %v1235
    %1237 = vmatmul.f32.gmra.mxu0 %v1026
    %v1238 = vpop.f32.mrf.mxu0
    %v1239 = vadd.f32 %v968, %v1238
    %1240 = vmatmul.f32.gmra.mxu0 %v1029
    %v1241 = vpop.f32.mrf.mxu0
    %v1242 = vadd.f32 %v968, %v1241
    %1243 = vmatmul.f32.gmra.mxu0 %v1032
    %v1244 = vpop.f32.mrf.mxu0
    %v1245 = vadd.f32 %v968, %v1244
    %1246 = vmatmul.f32.gmra.mxu0 %v1035
    %v1247 = vpop.f32.mrf.mxu0
    %v1248 = vadd.f32 %v968, %v1247
    %1249 = vmatmul.f32.gmra.mxu0 %v1038
    %v1250 = vpop.f32.mrf.mxu0
    %v1251 = vadd.f32 %v968, %v1250
    %1252 = vmatmul.f32.gmra.mxu0 %v1041
    %v1253 = vpop.f32.mrf.mxu0
    %v1254 = vadd.f32 %v968, %v1253
    %1255 = vmatmul.f32.gmra.mxu0 %v1044
    %v1256 = vpop.f32.mrf.mxu0
    %v1257 = vadd.f32 %v968, %v1256
    %1258 = vmatmul.f32.gmra.mxu0 %v1047
    %v1259 = vpop.f32.mrf.mxu0
    %v1260 = vadd.f32 %v968, %v1259
    %1261 = vmatmul.f32.gmra.mxu0 %v1050
    %v1262 = vpop.f32.mrf.mxu0
    %v1263 = vadd.f32 %v968, %v1262
    %1264 = vmatmul.f32.gmra.mxu0 %v1053
    %v1265 = vpop.f32.mrf.mxu0
    %v1266 = vadd.f32 %v968, %v1265
    %1267 = vmatmul.f32.gmra.mxu0 %v1056
    %v1268 = vpop.f32.mrf.mxu0
    %v1269 = vadd.f32 %v968, %v1268
    %1270 = vmatmul.f32.gmra.mxu0 %v1059
    %v1271 = vpop.f32.mrf.mxu0
    %v1272 = vadd.f32 %v968, %v1271
    %1273 = vmatmul.f32.gmra.mxu0 %v1062
    %v1274 = vpop.f32.mrf.mxu0
    %v1275 = vadd.f32 %v968, %v1274
    %1276 = vmatmul.f32.gmra.mxu0 %v1065
    %v1277 = vpop.f32.mrf.mxu0
    %v1278 = vadd.f32 %v968, %v1277
    %1279 = vmatmul.f32.gmra.mxu0 %v1068
    %v1280 = vpop.f32.mrf.mxu0
    %v1281 = vadd.f32 %v968, %v1280
    %1282 = vmatmul.f32.gmra.mxu0 %v1071
    %v1283 = vpop.f32.mrf.mxu0
    %v1284 = vadd.f32 %v968, %v1283
    %1285 = vmatmul.f32.gmra.mxu0 %v1074
    %v1286 = vpop.f32.mrf.mxu0
    %v1287 = vadd.f32 %v968, %v1286
    %1288 = vmatmul.f32.gmra.mxu0 %v1077
    %v1289 = vpop.f32.mrf.mxu0
    %v1290 = vadd.f32 %v968, %v1289
    %1291 = vmatmul.f32.gmra.mxu0 %v1080
    %v1292 = vpop.f32.mrf.mxu0
    %v1293 = vadd.f32 %v968, %v1292
    %1294 = vmatmul.f32.gmra.mxu0 %v1083
    %v1295 = vpop.f32.mrf.mxu0
    %v1296 = vadd.f32 %v968, %v1295
    %1297 = vmatmul.f32.gmra.mxu0 %v1086
    %v1298 = vpop.f32.mrf.mxu0
    %v1299 = vadd.f32 %v968, %v1298
    %1300 = vmatmul.f32.gmra.mxu0 %v1089
    %v1301 = vpop.f32.mrf.mxu0
    %v1302 = vadd.f32 %v968, %v1301
    %1303 = vmatmul.f32.gmra.mxu0 %v1092
    %v1304 = vpop.f32.mrf.mxu0
    %v1305 = vadd.f32 %v968, %v1304
    %1306 = vmatmul.f32.gmra.mxu0 %v1095
    %v1307 = vpop.f32.mrf.mxu0
    %v1308 = vadd.f32 %v968, %v1307
    %1309 = vmatmul.f32.gmra.mxu0 %v1098
    %v1310 = vpop.f32.mrf.mxu0
    %v1311 = vadd.f32 %v968, %v1310
    %1312 = vmatmul.f32.gmra.mxu0 %v1101
    %v1313 = vpop.f32.mrf.mxu0
    %v1314 = vadd.f32 %v968, %v1313
    %1315 = vmatmul.f32.gmra.mxu0 %v1104
    %v1316 = vpop.f32.mrf.mxu0
    %v1317 = vadd.f32 %v968, %v1316
    %1318 = vmatmul.f32.gmra.mxu0 %v1107
    %v1319 = vpop.f32.mrf.mxu0
    %v1320 = vadd.f32 %v968, %v1319
    %1321 = vmatmul.f32.gmra.mxu0 %v1110
    %v1322 = vpop.f32.mrf.mxu0
    %v1323 = vadd.f32 %v968, %v1322
    %1324 = vmatmul.f32.gmra.mxu0 %v1113
    %v1325 = vpop.f32.mrf.mxu0
    %v1326 = vadd.f32 %v968, %v1325
    %1327 = vmatmul.f32.gmra.mxu0 %v1116
    %v1328 = vpop.f32.mrf.mxu0
    %v1329 = vadd.f32 %v968, %v1328
    %1330 = vmatmul.f32.gmra.mxu0 %v1119
    %v1331 = vpop.f32.mrf.mxu0
    %v1332 = vadd.f32 %v968, %v1331
    %1333 = vmatmul.f32.gmra.mxu0 %v1122
    %v1334 = vpop.f32.mrf.mxu0
    %v1335 = vadd.f32 %v968, %v1334
    %1336 = vmatmul.f32.gmra.mxu0 %v1125
    %v1337 = vpop.f32.mrf.mxu0
    %v1338 = vadd.f32 %v968, %v1337
    %1339 = vmatmul.f32.gmra.mxu0 %v1128
    %v1340 = vpop.f32.mrf.mxu0
    %v1341 = vadd.f32 %v968, %v1340
    %1342 = vmatmul.f32.gmra.mxu0 %v1131
    %v1343 = vpop.f32.mrf.mxu0
    %v1344 = vadd.f32 %v968, %v1343
    %1345 = vmatmul.f32.gmra.mxu0 %v1134
    %v1346 = vpop.f32.mrf.mxu0
    %v1347 = vadd.f32 %v968, %v1346
    %1348 = vmatmul.f32.gmra.mxu0 %v1137
    %v1349 = vpop.f32.mrf.mxu0
    %v1350 = vadd.f32 %v968, %v1349
    %1351 = vmatmul.f32.gmra.mxu0 %v1140
    %v1352 = vpop.f32.mrf.mxu0
    %v1353 = vadd.f32 %v968, %v1352
    %1354 = vmatmul.f32.gmra.mxu0 %v1143
    %v1355 = vpop.f32.mrf.mxu0
    %v1356 = vadd.f32 %v968, %v1355
    %1357 = vmatmul.f32.gmra.mxu0 %v1146
    %v1358 = vpop.f32.mrf.mxu0
    %v1359 = vadd.f32 %v968, %v1358
    %1360 = vmatmul.f32.gmra.mxu0 %v1149
    %v1361 = vpop.f32.mrf.mxu0
    %v1362 = vadd.f32 %v968, %v1361
    %1363 = vmatmul.f32.gmra.mxu0 %v1152
    %v1364 = vpop.f32.mrf.mxu0
    %v1365 = vadd.f32 %v968, %v1364
    %1366 = vmatmul.f32.gmra.mxu0 %v1155
    %v1367 = vpop.f32.mrf.mxu0
    %v1368 = vadd.f32 %v968, %v1367
    %1369 = vmatmul.f32.gmra.mxu0 %v1158
    %v1370 = vpop.f32.mrf.mxu0
    %v1371 = vadd.f32 %v968, %v1370
    %1372 = vmatmul.f32.gmra.mxu0 %v1161
    %v1373 = vpop.f32.mrf.mxu0
    %v1374 = vadd.f32 %v968, %v1373
    %1375 = vdwg.mxu0
    %1376 = vrot.lane.b32.xlu0 %v42, 122
    %v1377 = vpop.permute.xlu0 %1376
    %1378 = vrot.lane.b32.xlu0 %v43, 122
    %v1379 = vpop.permute.xlu0 %1378
    %1380 = vrot.lane.b32.xlu0 %v44, 122
    %v1381 = vpop.permute.xlu0 %1380
    %1382 = vrot.lane.b32.xlu0 %v45, 122
    %v1383 = vpop.permute.xlu0 %1382
    %1384 = vrot.lane.b32.xlu0 %v46, 122
    %v1385 = vpop.permute.xlu0 %1384
    %1386 = vrot.lane.b32.xlu0 %v47, 122
    %v1387 = vpop.permute.xlu0 %1386
    %1388 = vrot.lane.b32.xlu0 %v48, 122
    %v1389 = vpop.permute.xlu0 %1388
    %1390 = vrot.lane.b32.xlu0 %v49, 122
    %v1391 = vpop.permute.xlu0 %1390
    %1392 = vrot.lane.b32.xlu0 %v50, 122
    %v1393 = vpop.permute.xlu0 %1392
    %1394 = vrot.lane.b32.xlu0 %v51, 122
    %v1395 = vpop.permute.xlu0 %1394
    %1396 = vrot.lane.b32.xlu0 %v52, 122
    %v1397 = vpop.permute.xlu0 %1396
    %1398 = vrot.lane.b32.xlu0 %v53, 122
    %v1399 = vpop.permute.xlu0 %1398
    %1400 = vrot.lane.b32.xlu0 %v54, 122
    %v1401 = vpop.permute.xlu0 %1400
    %1402 = vrot.lane.b32.xlu0 %v55, 122
    %v1403 = vpop.permute.xlu0 %1402
    %1404 = vrot.lane.b32.xlu0 %v56, 122
    %v1405 = vpop.permute.xlu0 %1404
    %1406 = vrot.lane.b32.xlu0 %v57, 122
    %v1407 = vpop.permute.xlu0 %1406
    %1408 = vrot.lane.b32.xlu0 %v58, 122
    %v1409 = vpop.permute.xlu0 %1408
    %1410 = vrot.lane.b32.xlu0 %v59, 122
    %v1411 = vpop.permute.xlu0 %1410
    %1412 = vrot.lane.b32.xlu0 %v60, 122
    %v1413 = vpop.permute.xlu0 %1412
    %1414 = vrot.lane.b32.xlu0 %v61, 122
    %v1415 = vpop.permute.xlu0 %1414
    %1416 = vrot.lane.b32.xlu0 %v62, 122
    %v1417 = vpop.permute.xlu0 %1416
    %1418 = vrot.lane.b32.xlu0 %v63, 122
    %v1419 = vpop.permute.xlu0 %1418
    %1420 = vrot.lane.b32.xlu0 %v64, 122
    %v1421 = vpop.permute.xlu0 %1420
    %1422 = vrot.lane.b32.xlu0 %v65, 122
    %v1423 = vpop.permute.xlu0 %1422
    %1424 = vrot.lane.b32.xlu0 %v66, 122
    %v1425 = vpop.permute.xlu0 %1424
    %1426 = vrot.lane.b32.xlu0 %v67, 122
    %v1427 = vpop.permute.xlu0 %1426
    %1428 = vrot.lane.b32.xlu0 %v68, 122
    %v1429 = vpop.permute.xlu0 %1428
    %1430 = vrot.lane.b32.xlu0 %v69, 122
    %v1431 = vpop.permute.xlu0 %1430
    %1432 = vrot.lane.b32.xlu0 %v70, 122
    %v1433 = vpop.permute.xlu0 %1432
    %1434 = vrot.lane.b32.xlu0 %v71, 122
    %v1435 = vpop.permute.xlu0 %1434
    %1436 = vrot.lane.b32.xlu0 %v72, 122
    %v1437 = vpop.permute.xlu0 %1436
    %1438 = vrot.lane.b32.xlu0 %v73, 122
    %v1439 = vpop.permute.xlu0 %1438
    %1440 = vrot.lane.b32.xlu0 %v74, 122
    %v1441 = vpop.permute.xlu0 %1440
    %1442 = vrot.lane.b32.xlu0 %v75, 122
    %v1443 = vpop.permute.xlu0 %1442
    %1444 = vrot.lane.b32.xlu0 %v76, 122
    %v1445 = vpop.permute.xlu0 %1444
    %1446 = vrot.lane.b32.xlu0 %v77, 122
    %v1447 = vpop.permute.xlu0 %1446
    %1448 = vrot.lane.b32.xlu0 %v78, 122
    %v1449 = vpop.permute.xlu0 %1448
    %1450 = vrot.lane.b32.xlu0 %v79, 122
    %v1451 = vpop.permute.xlu0 %1450
    %1452 = vrot.lane.b32.xlu0 %v80, 122
    %v1453 = vpop.permute.xlu0 %1452
    %1454 = vrot.lane.b32.xlu0 %v81, 122
    %v1455 = vpop.permute.xlu0 %1454
    %1456 = vrot.lane.b32.xlu0 %v82, 122
    %v1457 = vpop.permute.xlu0 %1456
    %1458 = vrot.lane.b32.xlu0 %v83, 122
    %v1459 = vpop.permute.xlu0 %1458
    %1460 = vrot.lane.b32.xlu0 %v84, 122
    %v1461 = vpop.permute.xlu0 %1460
    %1462 = vrot.lane.b32.xlu0 %v85, 122
    %v1463 = vpop.permute.xlu0 %1462
    %1464 = vrot.lane.b32.xlu0 %v86, 122
    %v1465 = vpop.permute.xlu0 %1464
    %1466 = vrot.lane.b32.xlu0 %v87, 122
    %v1467 = vpop.permute.xlu0 %1466
    %1468 = vrot.lane.b32.xlu0 %v88, 122
    %v1469 = vpop.permute.xlu0 %1468
    %1470 = vrot.lane.b32.xlu0 %v89, 122
    %v1471 = vpop.permute.xlu0 %1470
    %1472 = vrot.lane.b32.xlu0 %v90, 122
    %v1473 = vpop.permute.xlu0 %1472
    %1474 = vrot.lane.b32.xlu0 %v91, 122
    %v1475 = vpop.permute.xlu0 %1474
    %1476 = vrot.lane.b32.xlu0 %v92, 122
    %v1477 = vpop.permute.xlu0 %1476
    %1478 = vrot.lane.b32.xlu0 %v93, 122
    %v1479 = vpop.permute.xlu0 %1478
    %1480 = vrot.lane.b32.xlu0 %v94, 122
    %v1481 = vpop.permute.xlu0 %1480
    %1482 = vrot.lane.b32.xlu0 %v95, 122
    %v1483 = vpop.permute.xlu0 %1482
    %1484 = vrot.lane.b32.xlu0 %v96, 122
    %v1485 = vpop.permute.xlu0 %1484
    %1486 = vrot.lane.b32.xlu0 %v97, 122
    %v1487 = vpop.permute.xlu0 %1486
    %1488 = vrot.lane.b32.xlu0 %v98, 122
    %v1489 = vpop.permute.xlu0 %1488
    %1490 = vrot.lane.b32.xlu0 %v99, 122
    %v1491 = vpop.permute.xlu0 %1490
    %1492 = vrot.lane.b32.xlu0 %v100, 122
    %v1493 = vpop.permute.xlu0 %1492
    %1494 = vrot.lane.b32.xlu0 %v101, 122
    %v1495 = vpop.permute.xlu0 %1494
    %1496 = vrot.lane.b32.xlu0 %v102, 122
    %v1497 = vpop.permute.xlu0 %1496
    %1498 = vrot.lane.b32.xlu0 %v103, 122
    %v1499 = vpop.permute.xlu0 %1498
    %1500 = vrot.lane.b32.xlu0 %v104, 122
    %v1501 = vpop.permute.xlu0 %1500
    %1502 = vrot.lane.b32.xlu0 %v105, 122
    %v1503 = vpop.permute.xlu0 %1502
    %v1568 = vmul.f32 %v1185, %v1377
    %v1569 = vmul.f32 %v1188, %v1379
    %v1570 = vmul.f32 %v1191, %v1381
    %v1571 = vmul.f32 %v1194, %v1383
    %v1572 = vmul.f32 %v1197, %v1385
    %v1573 = vmul.f32 %v1200, %v1387
    %v1574 = vmul.f32 %v1203, %v1389
    %v1575 = vmul.f32 %v1206, %v1391
    %v1576 = vmul.f32 %v1209, %v1393
    %v1577 = vmul.f32 %v1212, %v1395
    %v1578 = vmul.f32 %v1215, %v1397
    %v1579 = vmul.f32 %v1218, %v1399
    %v1580 = vmul.f32 %v1221, %v1401
    %v1581 = vmul.f32 %v1224, %v1403
    %v1582 = vmul.f32 %v1227, %v1405
    %v1583 = vmul.f32 %v1230, %v1407
    %v1584 = vmul.f32 %v1233, %v1409
    %v1585 = vmul.f32 %v1236, %v1411
    %v1586 = vmul.f32 %v1239, %v1413
    %v1587 = vmul.f32 %v1242, %v1415
    %v1588 = vmul.f32 %v1245, %v1417
    %v1589 = vmul.f32 %v1248, %v1419
    %v1590 = vmul.f32 %v1251, %v1421
    %v1591 = vmul.f32 %v1254, %v1423
    %v1592 = vmul.f32 %v1257, %v1425
    %v1593 = vmul.f32 %v1260, %v1427
    %v1594 = vmul.f32 %v1263, %v1429
    %v1595 = vmul.f32 %v1266, %v1431
    %v1596 = vmul.f32 %v1269, %v1433
    %v1597 = vmul.f32 %v1272, %v1435
    %v1598 = vmul.f32 %v1275, %v1437
    %v1599 = vmul.f32 %v1278, %v1439
    %v1600 = vmul.f32 %v1281, %v1441
    %v1601 = vmul.f32 %v1284, %v1443
    %v1602 = vmul.f32 %v1287, %v1445
    %v1603 = vmul.f32 %v1290, %v1447
    %v1604 = vmul.f32 %v1293, %v1449
    %v1605 = vmul.f32 %v1296, %v1451
    %v1606 = vmul.f32 %v1299, %v1453
    %v1607 = vmul.f32 %v1302, %v1455
    %v1608 = vmul.f32 %v1305, %v1457
    %v1609 = vmul.f32 %v1308, %v1459
    %v1610 = vmul.f32 %v1311, %v1461
    %v1611 = vmul.f32 %v1314, %v1463
    %v1612 = vmul.f32 %v1317, %v1465
    %v1613 = vmul.f32 %v1320, %v1467
    %v1614 = vmul.f32 %v1323, %v1469
    %v1615 = vmul.f32 %v1326, %v1471
    %v1616 = vmul.f32 %v1329, %v1473
    %v1617 = vmul.f32 %v1332, %v1475
    %v1618 = vmul.f32 %v1335, %v1477
    %v1619 = vmul.f32 %v1338, %v1479
    %v1620 = vmul.f32 %v1341, %v1481
    %v1621 = vmul.f32 %v1344, %v1483
    %v1622 = vmul.f32 %v1347, %v1485
    %v1623 = vmul.f32 %v1350, %v1487
    %v1624 = vmul.f32 %v1353, %v1489
    %v1625 = vmul.f32 %v1356, %v1491
    %v1626 = vmul.f32 %v1359, %v1493
    %v1627 = vmul.f32 %v1362, %v1495
    %v1628 = vmul.f32 %v1365, %v1497
    %v1629 = vmul.f32 %v1368, %v1499
    %v1630 = vmul.f32 %v1371, %v1501
    %v1631 = vmul.f32 %v1374, %v1503
    %v1632 = vld [vmem:[%s6] sm:$0xff]
    %v1633 = vld [vmem:[%s7] sm:$0x1]
    %v1635 = vperm.slane %v1633, 0
    %vm1637 = vcmask 64512
    %v1639 = vsel %vm1637, %v1568, 0
    %v1642 = vsel %vm1637, %v1569, 0
    %v1645 = vsel %vm1637, %v1570, 0
    %v1648 = vsel %vm1637, %v1571, 0
    %v1651 = vsel %vm1637, %v1572, 0
    %v1654 = vsel %vm1637, %v1573, 0
    %v1657 = vsel %vm1637, %v1574, 0
    %v1660 = vsel %vm1637, %v1575, 0
    %v1663 = vsel %vm1637, %v1576, 0
    %v1666 = vsel %vm1637, %v1577, 0
    %v1669 = vsel %vm1637, %v1578, 0
    %v1672 = vsel %vm1637, %v1579, 0
    %v1675 = vsel %vm1637, %v1580, 0
    %v1678 = vsel %vm1637, %v1581, 0
    %v1681 = vsel %vm1637, %v1582, 0
    %v1684 = vsel %vm1637, %v1583, 0
    %v1687 = vsel %vm1637, %v1584, 0
    %v1690 = vsel %vm1637, %v1585, 0
    %v1693 = vsel %vm1637, %v1586, 0
    %v1696 = vsel %vm1637, %v1587, 0
    %v1699 = vsel %vm1637, %v1588, 0
    %v1702 = vsel %vm1637, %v1589, 0
    %v1705 = vsel %vm1637, %v1590, 0
    %v1708 = vsel %vm1637, %v1591, 0
    %v1711 = vsel %vm1637, %v1592, 0
    %v1714 = vsel %vm1637, %v1593, 0
    %v1717 = vsel %vm1637, %v1594, 0
    %v1720 = vsel %vm1637, %v1595, 0
    %v1723 = vsel %vm1637, %v1596, 0
    %v1726 = vsel %vm1637, %v1597, 0
    %v1729 = vsel %vm1637, %v1598, 0
    %v1732 = vsel %vm1637, %v1599, 0
    %v1735 = vsel %vm1637, %v1600, 0
    %v1738 = vsel %vm1637, %v1601, 0
    %v1741 = vsel %vm1637, %v1602, 0
    %v1744 = vsel %vm1637, %v1603, 0
    %v1747 = vsel %vm1637, %v1604, 0
    %v1750 = vsel %vm1637, %v1605, 0
    %v1753 = vsel %vm1637, %v1606, 0
    %v1756 = vsel %vm1637, %v1607, 0
    %v1759 = vsel %vm1637, %v1608, 0
    %v1762 = vsel %vm1637, %v1609, 0
    %v1765 = vsel %vm1637, %v1610, 0
    %v1768 = vsel %vm1637, %v1611, 0
    %v1771 = vsel %vm1637, %v1612, 0
    %v1774 = vsel %vm1637, %v1613, 0
    %v1777 = vsel %vm1637, %v1614, 0
    %v1780 = vsel %vm1637, %v1615, 0
    %v1783 = vsel %vm1637, %v1616, 0
    %v1786 = vsel %vm1637, %v1617, 0
    %v1789 = vsel %vm1637, %v1618, 0
    %v1792 = vsel %vm1637, %v1619, 0
    %v1795 = vsel %vm1637, %v1620, 0
    %v1798 = vsel %vm1637, %v1621, 0
    %v1801 = vsel %vm1637, %v1622, 0
    %v1804 = vsel %vm1637, %v1623, 0
    %v1807 = vsel %vm1637, %v1624, 0
    %v1810 = vsel %vm1637, %v1625, 0
    %v1813 = vsel %vm1637, %v1626, 0
    %v1816 = vsel %vm1637, %v1627, 0
    %v1819 = vsel %vm1637, %v1628, 0
    %v1822 = vsel %vm1637, %v1629, 0
    %v1825 = vsel %vm1637, %v1630, 0
    %v1828 = vsel %vm1637, %v1631, 0
    %1830 = vmatpush.msra.mxu0 0.0
    %1831 = vmatpush.msra.mxu0 0.0
    %1832 = vmatpush.msra.mxu0 0.0
    %1833 = vmatpush.msra.mxu0 0.0
    %1834 = vmatpush.msra.mxu0 0.0
    %1835 = vmatpush.msra.mxu0 0.0
    %1836 = vmatpush.msra.mxu0 0.0
    %1837 = vmatpush.msra.mxu0 0.0
    %1838 = vmatpush.msra.mxu0 0.0
    %1839 = vmatpush.msra.mxu0 0.0
    %1840 = vmatpush.msra.mxu0 0.0
    %1841 = vmatpush.msra.mxu0 0.0
    %1842 = vmatpush.msra.mxu0 0.0
    %1843 = vmatpush.msra.mxu0 0.0
    %1844 = vmatpush.msra.mxu0 0.0
    %1845 = vmatpush.msra.mxu0 %v1632
    %1846 = vmatmul.f32.gmra.mxu0 %v1639
    %v1847 = vpop.f32.mrf.mxu0
    %v1848 = vadd.f32 %v1635, %v1847
    %1849 = vmatmul.f32.gmra.mxu0 %v1642
    %v1850 = vpop.f32.mrf.mxu0
    %v1851 = vadd.f32 %v1635, %v1850
    %1852 = vmatmul.f32.gmra.mxu0 %v1645
    %v1853 = vpop.f32.mrf.mxu0
    %v1854 = vadd.f32 %v1635, %v1853
    %1855 = vmatmul.f32.gmra.mxu0 %v1648
    %v1856 = vpop.f32.mrf.mxu0
    %v1857 = vadd.f32 %v1635, %v1856
    %1858 = vmatmul.f32.gmra.mxu0 %v1651
    %v1859 = vpop.f32.mrf.mxu0
    %v1860 = vadd.f32 %v1635, %v1859
    %1861 = vmatmul.f32.gmra.mxu0 %v1654
    %v1862 = vpop.f32.mrf.mxu0
    %v1863 = vadd.f32 %v1635, %v1862
    %1864 = vmatmul.f32.gmra.mxu0 %v1657
    %v1865 = vpop.f32.mrf.mxu0
    %v1866 = vadd.f32 %v1635, %v1865
    %1867 = vmatmul.f32.gmra.mxu0 %v1660
    %v1868 = vpop.f32.mrf.mxu0
    %v1869 = vadd.f32 %v1635, %v1868
    %1870 = vmatmul.f32.gmra.mxu0 %v1663
    %v1871 = vpop.f32.mrf.mxu0
    %v1872 = vadd.f32 %v1635, %v1871
    %1873 = vmatmul.f32.gmra.mxu0 %v1666
    %v1874 = vpop.f32.mrf.mxu0
    %v1875 = vadd.f32 %v1635, %v1874
    %1876 = vmatmul.f32.gmra.mxu0 %v1669
    %v1877 = vpop.f32.mrf.mxu0
    %v1878 = vadd.f32 %v1635, %v1877
    %1879 = vmatmul.f32.gmra.mxu0 %v1672
    %v1880 = vpop.f32.mrf.mxu0
    %v1881 = vadd.f32 %v1635, %v1880
    %1882 = vmatmul.f32.gmra.mxu0 %v1675
    %v1883 = vpop.f32.mrf.mxu0
    %v1884 = vadd.f32 %v1635, %v1883
    %1885 = vmatmul.f32.gmra.mxu0 %v1678
    %v1886 = vpop.f32.mrf.mxu0
    %v1887 = vadd.f32 %v1635, %v1886
    %1888 = vmatmul.f32.gmra.mxu0 %v1681
    %v1889 = vpop.f32.mrf.mxu0
    %v1890 = vadd.f32 %v1635, %v1889
    %1891 = vmatmul.f32.gmra.mxu0 %v1684
    %v1892 = vpop.f32.mrf.mxu0
    %v1893 = vadd.f32 %v1635, %v1892
    %1894 = vmatmul.f32.gmra.mxu0 %v1687
    %v1895 = vpop.f32.mrf.mxu0
    %v1896 = vadd.f32 %v1635, %v1895
    %1897 = vmatmul.f32.gmra.mxu0 %v1690
    %v1898 = vpop.f32.mrf.mxu0
    %v1899 = vadd.f32 %v1635, %v1898
    %1900 = vmatmul.f32.gmra.mxu0 %v1693
    %v1901 = vpop.f32.mrf.mxu0
    %v1902 = vadd.f32 %v1635, %v1901
    %1903 = vmatmul.f32.gmra.mxu0 %v1696
    %v1904 = vpop.f32.mrf.mxu0
    %v1905 = vadd.f32 %v1635, %v1904
    %1906 = vmatmul.f32.gmra.mxu0 %v1699
    %v1907 = vpop.f32.mrf.mxu0
    %v1908 = vadd.f32 %v1635, %v1907
    %1909 = vmatmul.f32.gmra.mxu0 %v1702
    %v1910 = vpop.f32.mrf.mxu0
    %v1911 = vadd.f32 %v1635, %v1910
    %1912 = vmatmul.f32.gmra.mxu0 %v1705
    %v1913 = vpop.f32.mrf.mxu0
    %v1914 = vadd.f32 %v1635, %v1913
    %1915 = vmatmul.f32.gmra.mxu0 %v1708
    %v1916 = vpop.f32.mrf.mxu0
    %v1917 = vadd.f32 %v1635, %v1916
    %1918 = vmatmul.f32.gmra.mxu0 %v1711
    %v1919 = vpop.f32.mrf.mxu0
    %v1920 = vadd.f32 %v1635, %v1919
    %1921 = vmatmul.f32.gmra.mxu0 %v1714
    %v1922 = vpop.f32.mrf.mxu0
    %v1923 = vadd.f32 %v1635, %v1922
    %1924 = vmatmul.f32.gmra.mxu0 %v1717
    %v1925 = vpop.f32.mrf.mxu0
    %v1926 = vadd.f32 %v1635, %v1925
    %1927 = vmatmul.f32.gmra.mxu0 %v1720
    %v1928 = vpop.f32.mrf.mxu0
    %v1929 = vadd.f32 %v1635, %v1928
    %1930 = vmatmul.f32.gmra.mxu0 %v1723
    %v1931 = vpop.f32.mrf.mxu0
    %v1932 = vadd.f32 %v1635, %v1931
    %1933 = vmatmul.f32.gmra.mxu0 %v1726
    %v1934 = vpop.f32.mrf.mxu0
    %v1935 = vadd.f32 %v1635, %v1934
    %1936 = vmatmul.f32.gmra.mxu0 %v1729
    %v1937 = vpop.f32.mrf.mxu0
    %v1938 = vadd.f32 %v1635, %v1937
    %1939 = vmatmul.f32.gmra.mxu0 %v1732
    %v1940 = vpop.f32.mrf.mxu0
    %v1941 = vadd.f32 %v1635, %v1940
    %1942 = vmatmul.f32.gmra.mxu0 %v1735
    %v1943 = vpop.f32.mrf.mxu0
    %v1944 = vadd.f32 %v1635, %v1943
    %1945 = vmatmul.f32.gmra.mxu0 %v1738
    %v1946 = vpop.f32.mrf.mxu0
    %v1947 = vadd.f32 %v1635, %v1946
    %1948 = vmatmul.f32.gmra.mxu0 %v1741
    %v1949 = vpop.f32.mrf.mxu0
    %v1950 = vadd.f32 %v1635, %v1949
    %1951 = vmatmul.f32.gmra.mxu0 %v1744
    %v1952 = vpop.f32.mrf.mxu0
    %v1953 = vadd.f32 %v1635, %v1952
    %1954 = vmatmul.f32.gmra.mxu0 %v1747
    %v1955 = vpop.f32.mrf.mxu0
    %v1956 = vadd.f32 %v1635, %v1955
    %1957 = vmatmul.f32.gmra.mxu0 %v1750
    %v1958 = vpop.f32.mrf.mxu0
    %v1959 = vadd.f32 %v1635, %v1958
    %1960 = vmatmul.f32.gmra.mxu0 %v1753
    %v1961 = vpop.f32.mrf.mxu0
    %v1962 = vadd.f32 %v1635, %v1961
    %1963 = vmatmul.f32.gmra.mxu0 %v1756
    %v1964 = vpop.f32.mrf.mxu0
    %v1965 = vadd.f32 %v1635, %v1964
    %1966 = vmatmul.f32.gmra.mxu0 %v1759
    %v1967 = vpop.f32.mrf.mxu0
    %v1968 = vadd.f32 %v1635, %v1967
    %1969 = vmatmul.f32.gmra.mxu0 %v1762
    %v1970 = vpop.f32.mrf.mxu0
    %v1971 = vadd.f32 %v1635, %v1970
    %1972 = vmatmul.f32.gmra.mxu0 %v1765
    %v1973 = vpop.f32.mrf.mxu0
    %v1974 = vadd.f32 %v1635, %v1973
    %1975 = vmatmul.f32.gmra.mxu0 %v1768
    %v1976 = vpop.f32.mrf.mxu0
    %v1977 = vadd.f32 %v1635, %v1976
    %1978 = vmatmul.f32.gmra.mxu0 %v1771
    %v1979 = vpop.f32.mrf.mxu0
    %v1980 = vadd.f32 %v1635, %v1979
    %1981 = vmatmul.f32.gmra.mxu0 %v1774
    %v1982 = vpop.f32.mrf.mxu0
    %v1983 = vadd.f32 %v1635, %v1982
    %1984 = vmatmul.f32.gmra.mxu0 %v1777
    %v1985 = vpop.f32.mrf.mxu0
    %v1986 = vadd.f32 %v1635, %v1985
    %1987 = vmatmul.f32.gmra.mxu0 %v1780
    %v1988 = vpop.f32.mrf.mxu0
    %v1989 = vadd.f32 %v1635, %v1988
    %1990 = vmatmul.f32.gmra.mxu0 %v1783
    %v1991 = vpop.f32.mrf.mxu0
    %v1992 = vadd.f32 %v1635, %v1991
    %1993 = vmatmul.f32.gmra.mxu0 %v1786
    %v1994 = vpop.f32.mrf.mxu0
    %v1995 = vadd.f32 %v1635, %v1994
    %1996 = vmatmul.f32.gmra.mxu0 %v1789
    %v1997 = vpop.f32.mrf.mxu0
    %v1998 = vadd.f32 %v1635, %v1997
    %1999 = vmatmul.f32.gmra.mxu0 %v1792
    %v2000 = vpop.f32.mrf.mxu0
    %v2001 = vadd.f32 %v1635, %v2000
    %2002 = vmatmul.f32.gmra.mxu0 %v1795
    %v2003 = vpop.f32.mrf.mxu0
    %v2004 = vadd.f32 %v1635, %v2003
    %2005 = vmatmul.f32.gmra.mxu0 %v1798
    %v2006 = vpop.f32.mrf.mxu0
    %v2007 = vadd.f32 %v1635, %v2006
    %2008 = vmatmul.f32.gmra.mxu0 %v1801
    %v2009 = vpop.f32.mrf.mxu0
    %v2010 = vadd.f32 %v1635, %v2009
    %2011 = vmatmul.f32.gmra.mxu0 %v1804
    %v2012 = vpop.f32.mrf.mxu0
    %v2013 = vadd.f32 %v1635, %v2012
    %2014 = vmatmul.f32.gmra.mxu0 %v1807
    %v2015 = vpop.f32.mrf.mxu0
    %v2016 = vadd.f32 %v1635, %v2015
    %2017 = vmatmul.f32.gmra.mxu0 %v1810
    %v2018 = vpop.f32.mrf.mxu0
    %v2019 = vadd.f32 %v1635, %v2018
    %2020 = vmatmul.f32.gmra.mxu0 %v1813
    %v2021 = vpop.f32.mrf.mxu0
    %v2022 = vadd.f32 %v1635, %v2021
    %2023 = vmatmul.f32.gmra.mxu0 %v1816
    %v2024 = vpop.f32.mrf.mxu0
    %v2025 = vadd.f32 %v1635, %v2024
    %2026 = vmatmul.f32.gmra.mxu0 %v1819
    %v2027 = vpop.f32.mrf.mxu0
    %v2028 = vadd.f32 %v1635, %v2027
    %2029 = vmatmul.f32.gmra.mxu0 %v1822
    %v2030 = vpop.f32.mrf.mxu0
    %v2031 = vadd.f32 %v1635, %v2030
    %2032 = vmatmul.f32.gmra.mxu0 %v1825
    %v2033 = vpop.f32.mrf.mxu0
    %v2034 = vadd.f32 %v1635, %v2033
    %2035 = vmatmul.f32.gmra.mxu0 %v1828
    %v2036 = vpop.f32.mrf.mxu0
    %v2037 = vadd.f32 %v1635, %v2036
    %2038 = vdwg.mxu0
    %2039 = vrot.lane.b32.xlu0 %v42, 114
    %v2040 = vpop.permute.xlu0 %2039
    %2041 = vrot.lane.b32.xlu0 %v43, 114
    %v2042 = vpop.permute.xlu0 %2041
    %2043 = vrot.lane.b32.xlu0 %v44, 114
    %v2044 = vpop.permute.xlu0 %2043
    %2045 = vrot.lane.b32.xlu0 %v45, 114
    %v2046 = vpop.permute.xlu0 %2045
    %2047 = vrot.lane.b32.xlu0 %v46, 114
    %v2048 = vpop.permute.xlu0 %2047
    %2049 = vrot.lane.b32.xlu0 %v47, 114
    %v2050 = vpop.permute.xlu0 %2049
    %2051 = vrot.lane.b32.xlu0 %v48, 114
    %v2052 = vpop.permute.xlu0 %2051
    %2053 = vrot.lane.b32.xlu0 %v49, 114
    %v2054 = vpop.permute.xlu0 %2053
    %2055 = vrot.lane.b32.xlu0 %v50, 114
    %v2056 = vpop.permute.xlu0 %2055
    %2057 = vrot.lane.b32.xlu0 %v51, 114
    %v2058 = vpop.permute.xlu0 %2057
    %2059 = vrot.lane.b32.xlu0 %v52, 114
    %v2060 = vpop.permute.xlu0 %2059
    %2061 = vrot.lane.b32.xlu0 %v53, 114
    %v2062 = vpop.permute.xlu0 %2061
    %2063 = vrot.lane.b32.xlu0 %v54, 114
    %v2064 = vpop.permute.xlu0 %2063
    %2065 = vrot.lane.b32.xlu0 %v55, 114
    %v2066 = vpop.permute.xlu0 %2065
    %2067 = vrot.lane.b32.xlu0 %v56, 114
    %v2068 = vpop.permute.xlu0 %2067
    %2069 = vrot.lane.b32.xlu0 %v57, 114
    %v2070 = vpop.permute.xlu0 %2069
    %2071 = vrot.lane.b32.xlu0 %v58, 114
    %v2072 = vpop.permute.xlu0 %2071
    %2073 = vrot.lane.b32.xlu0 %v59, 114
    %v2074 = vpop.permute.xlu0 %2073
    %2075 = vrot.lane.b32.xlu0 %v60, 114
    %v2076 = vpop.permute.xlu0 %2075
    %2077 = vrot.lane.b32.xlu0 %v61, 114
    %v2078 = vpop.permute.xlu0 %2077
    %2079 = vrot.lane.b32.xlu0 %v62, 114
    %v2080 = vpop.permute.xlu0 %2079
    %2081 = vrot.lane.b32.xlu0 %v63, 114
    %v2082 = vpop.permute.xlu0 %2081
    %2083 = vrot.lane.b32.xlu0 %v64, 114
    %v2084 = vpop.permute.xlu0 %2083
    %2085 = vrot.lane.b32.xlu0 %v65, 114
    %v2086 = vpop.permute.xlu0 %2085
    %2087 = vrot.lane.b32.xlu0 %v66, 114
    %v2088 = vpop.permute.xlu0 %2087
    %2089 = vrot.lane.b32.xlu0 %v67, 114
    %v2090 = vpop.permute.xlu0 %2089
    %2091 = vrot.lane.b32.xlu0 %v68, 114
    %v2092 = vpop.permute.xlu0 %2091
    %2093 = vrot.lane.b32.xlu0 %v69, 114
    %v2094 = vpop.permute.xlu0 %2093
    %2095 = vrot.lane.b32.xlu0 %v70, 114
    %v2096 = vpop.permute.xlu0 %2095
    %2097 = vrot.lane.b32.xlu0 %v71, 114
    %v2098 = vpop.permute.xlu0 %2097
    %2099 = vrot.lane.b32.xlu0 %v72, 114
    %v2100 = vpop.permute.xlu0 %2099
    %2101 = vrot.lane.b32.xlu0 %v73, 114
    %v2102 = vpop.permute.xlu0 %2101
    %2103 = vrot.lane.b32.xlu0 %v74, 114
    %v2104 = vpop.permute.xlu0 %2103
    %2105 = vrot.lane.b32.xlu0 %v75, 114
    %v2106 = vpop.permute.xlu0 %2105
    %2107 = vrot.lane.b32.xlu0 %v76, 114
    %v2108 = vpop.permute.xlu0 %2107
    %2109 = vrot.lane.b32.xlu0 %v77, 114
    %v2110 = vpop.permute.xlu0 %2109
    %2111 = vrot.lane.b32.xlu0 %v78, 114
    %v2112 = vpop.permute.xlu0 %2111
    %2113 = vrot.lane.b32.xlu0 %v79, 114
    %v2114 = vpop.permute.xlu0 %2113
    %2115 = vrot.lane.b32.xlu0 %v80, 114
    %v2116 = vpop.permute.xlu0 %2115
    %2117 = vrot.lane.b32.xlu0 %v81, 114
    %v2118 = vpop.permute.xlu0 %2117
    %2119 = vrot.lane.b32.xlu0 %v82, 114
    %v2120 = vpop.permute.xlu0 %2119
    %2121 = vrot.lane.b32.xlu0 %v83, 114
    %v2122 = vpop.permute.xlu0 %2121
    %2123 = vrot.lane.b32.xlu0 %v84, 114
    %v2124 = vpop.permute.xlu0 %2123
    %2125 = vrot.lane.b32.xlu0 %v85, 114
    %v2126 = vpop.permute.xlu0 %2125
    %2127 = vrot.lane.b32.xlu0 %v86, 114
    %v2128 = vpop.permute.xlu0 %2127
    %2129 = vrot.lane.b32.xlu0 %v87, 114
    %v2130 = vpop.permute.xlu0 %2129
    %2131 = vrot.lane.b32.xlu0 %v88, 114
    %v2132 = vpop.permute.xlu0 %2131
    %2133 = vrot.lane.b32.xlu0 %v89, 114
    %v2134 = vpop.permute.xlu0 %2133
    %2135 = vrot.lane.b32.xlu0 %v90, 114
    %v2136 = vpop.permute.xlu0 %2135
    %2137 = vrot.lane.b32.xlu0 %v91, 114
    %v2138 = vpop.permute.xlu0 %2137
    %2139 = vrot.lane.b32.xlu0 %v92, 114
    %v2140 = vpop.permute.xlu0 %2139
    %2141 = vrot.lane.b32.xlu0 %v93, 114
    %v2142 = vpop.permute.xlu0 %2141
    %2143 = vrot.lane.b32.xlu0 %v94, 114
    %v2144 = vpop.permute.xlu0 %2143
    %2145 = vrot.lane.b32.xlu0 %v95, 114
    %v2146 = vpop.permute.xlu0 %2145
    %2147 = vrot.lane.b32.xlu0 %v96, 114
    %v2148 = vpop.permute.xlu0 %2147
    %2149 = vrot.lane.b32.xlu0 %v97, 114
    %v2150 = vpop.permute.xlu0 %2149
    %2151 = vrot.lane.b32.xlu0 %v98, 114
    %v2152 = vpop.permute.xlu0 %2151
    %2153 = vrot.lane.b32.xlu0 %v99, 114
    %v2154 = vpop.permute.xlu0 %2153
    %2155 = vrot.lane.b32.xlu0 %v100, 114
    %v2156 = vpop.permute.xlu0 %2155
    %2157 = vrot.lane.b32.xlu0 %v101, 114
    %v2158 = vpop.permute.xlu0 %2157
    %2159 = vrot.lane.b32.xlu0 %v102, 114
    %v2160 = vpop.permute.xlu0 %2159
    %2161 = vrot.lane.b32.xlu0 %v103, 114
    %v2162 = vpop.permute.xlu0 %2161
    %2163 = vrot.lane.b32.xlu0 %v104, 114
    %v2164 = vpop.permute.xlu0 %2163
    %2165 = vrot.lane.b32.xlu0 %v105, 114
    %v2166 = vpop.permute.xlu0 %2165
    %v2231 = vmul.f32 %v1848, %v2040
    %v2232 = vmul.f32 %v1851, %v2042
    %v2233 = vmul.f32 %v1854, %v2044
    %v2234 = vmul.f32 %v1857, %v2046
    %v2235 = vmul.f32 %v1860, %v2048
    %v2236 = vmul.f32 %v1863, %v2050
    %v2237 = vmul.f32 %v1866, %v2052
    %v2238 = vmul.f32 %v1869, %v2054
    %v2239 = vmul.f32 %v1872, %v2056
    %v2240 = vmul.f32 %v1875, %v2058
    %v2241 = vmul.f32 %v1878, %v2060
    %v2242 = vmul.f32 %v1881, %v2062
    %v2243 = vmul.f32 %v1884, %v2064
    %v2244 = vmul.f32 %v1887, %v2066
    %v2245 = vmul.f32 %v1890, %v2068
    %v2246 = vmul.f32 %v1893, %v2070
    %v2247 = vmul.f32 %v1896, %v2072
    %v2248 = vmul.f32 %v1899, %v2074
    %v2249 = vmul.f32 %v1902, %v2076
    %v2250 = vmul.f32 %v1905, %v2078
    %v2251 = vmul.f32 %v1908, %v2080
    %v2252 = vmul.f32 %v1911, %v2082
    %v2253 = vmul.f32 %v1914, %v2084
    %v2254 = vmul.f32 %v1917, %v2086
    %v2255 = vmul.f32 %v1920, %v2088
    %v2256 = vmul.f32 %v1923, %v2090
    %v2257 = vmul.f32 %v1926, %v2092
    %v2258 = vmul.f32 %v1929, %v2094
    %v2259 = vmul.f32 %v1932, %v2096
    %v2260 = vmul.f32 %v1935, %v2098
    %v2261 = vmul.f32 %v1938, %v2100
    %v2262 = vmul.f32 %v1941, %v2102
    %v2263 = vmul.f32 %v1944, %v2104
    %v2264 = vmul.f32 %v1947, %v2106
    %v2265 = vmul.f32 %v1950, %v2108
    %v2266 = vmul.f32 %v1953, %v2110
    %v2267 = vmul.f32 %v1956, %v2112
    %v2268 = vmul.f32 %v1959, %v2114
    %v2269 = vmul.f32 %v1962, %v2116
    %v2270 = vmul.f32 %v1965, %v2118
    %v2271 = vmul.f32 %v1968, %v2120
    %v2272 = vmul.f32 %v1971, %v2122
    %v2273 = vmul.f32 %v1974, %v2124
    %v2274 = vmul.f32 %v1977, %v2126
    %v2275 = vmul.f32 %v1980, %v2128
    %v2276 = vmul.f32 %v1983, %v2130
    %v2277 = vmul.f32 %v1986, %v2132
    %v2278 = vmul.f32 %v1989, %v2134
    %v2279 = vmul.f32 %v1992, %v2136
    %v2280 = vmul.f32 %v1995, %v2138
    %v2281 = vmul.f32 %v1998, %v2140
    %v2282 = vmul.f32 %v2001, %v2142
    %v2283 = vmul.f32 %v2004, %v2144
    %v2284 = vmul.f32 %v2007, %v2146
    %v2285 = vmul.f32 %v2010, %v2148
    %v2286 = vmul.f32 %v2013, %v2150
    %v2287 = vmul.f32 %v2016, %v2152
    %v2288 = vmul.f32 %v2019, %v2154
    %v2289 = vmul.f32 %v2022, %v2156
    %v2290 = vmul.f32 %v2025, %v2158
    %v2291 = vmul.f32 %v2028, %v2160
    %v2292 = vmul.f32 %v2031, %v2162
    %v2293 = vmul.f32 %v2034, %v2164
    %v2294 = vmul.f32 %v2037, %v2166
    %v2295 = vld [vmem:[%s8] sm:$0xff]
    %v2296 = vld [vmem:[%s8 + $0x8] sm:$0xff]
    %v2297 = vld [vmem:[%s9] sm:$0x1]
    %v2299 = vperm.slane %v2297, 0
    %vm2301 = vcmask 130048
    %v2303 = vsel %vm2301, %v2231, 0
    %v2306 = vsel %vm2301, %v2232, 0
    %v2309 = vsel %vm2301, %v2233, 0
    %v2312 = vsel %vm2301, %v2234, 0
    %v2315 = vsel %vm2301, %v2235, 0
    %v2318 = vsel %vm2301, %v2236, 0
    %v2321 = vsel %vm2301, %v2237, 0
    %v2324 = vsel %vm2301, %v2238, 0
    %v2327 = vsel %vm2301, %v2239, 0
    %v2330 = vsel %vm2301, %v2240, 0
    %v2333 = vsel %vm2301, %v2241, 0
    %v2336 = vsel %vm2301, %v2242, 0
    %v2339 = vsel %vm2301, %v2243, 0
    %v2342 = vsel %vm2301, %v2244, 0
    %v2345 = vsel %vm2301, %v2245, 0
    %v2348 = vsel %vm2301, %v2246, 0
    %v2351 = vsel %vm2301, %v2247, 0
    %v2354 = vsel %vm2301, %v2248, 0
    %v2357 = vsel %vm2301, %v2249, 0
    %v2360 = vsel %vm2301, %v2250, 0
    %v2363 = vsel %vm2301, %v2251, 0
    %v2366 = vsel %vm2301, %v2252, 0
    %v2369 = vsel %vm2301, %v2253, 0
    %v2372 = vsel %vm2301, %v2254, 0
    %v2375 = vsel %vm2301, %v2255, 0
    %v2378 = vsel %vm2301, %v2256, 0
    %v2381 = vsel %vm2301, %v2257, 0
    %v2384 = vsel %vm2301, %v2258, 0
    %v2387 = vsel %vm2301, %v2259, 0
    %v2390 = vsel %vm2301, %v2260, 0
    %v2393 = vsel %vm2301, %v2261, 0
    %v2396 = vsel %vm2301, %v2262, 0
    %v2399 = vsel %vm2301, %v2263, 0
    %v2402 = vsel %vm2301, %v2264, 0
    %v2405 = vsel %vm2301, %v2265, 0
    %v2408 = vsel %vm2301, %v2266, 0
    %v2411 = vsel %vm2301, %v2267, 0
    %v2414 = vsel %vm2301, %v2268, 0
    %v2417 = vsel %vm2301, %v2269, 0
    %v2420 = vsel %vm2301, %v2270, 0
    %v2423 = vsel %vm2301, %v2271, 0
    %v2426 = vsel %vm2301, %v2272, 0
    %v2429 = vsel %vm2301, %v2273, 0
    %v2432 = vsel %vm2301, %v2274, 0
    %v2435 = vsel %vm2301, %v2275, 0
    %v2438 = vsel %vm2301, %v2276, 0
    %v2441 = vsel %vm2301, %v2277, 0
    %v2444 = vsel %vm2301, %v2278, 0
    %v2447 = vsel %vm2301, %v2279, 0
    %v2450 = vsel %vm2301, %v2280, 0
    %v2453 = vsel %vm2301, %v2281, 0
    %v2456 = vsel %vm2301, %v2282, 0
    %v2459 = vsel %vm2301, %v2283, 0
    %v2462 = vsel %vm2301, %v2284, 0
    %v2465 = vsel %vm2301, %v2285, 0
    %v2468 = vsel %vm2301, %v2286, 0
    %v2471 = vsel %vm2301, %v2287, 0
    %v2474 = vsel %vm2301, %v2288, 0
    %v2477 = vsel %vm2301, %v2289, 0
    %v2480 = vsel %vm2301, %v2290, 0
    %v2483 = vsel %vm2301, %v2291, 0
    %v2486 = vsel %vm2301, %v2292, 0
    %v2489 = vsel %vm2301, %v2293, 0
    %v2492 = vsel %vm2301, %v2294, 0
    %2494 = vmatpush.msra.mxu0 0.0
    %2495 = vmatpush.msra.mxu0 0.0
    %2496 = vmatpush.msra.mxu0 0.0
    %2497 = vmatpush.msra.mxu0 0.0
    %2498 = vmatpush.msra.mxu0 0.0
    %2499 = vmatpush.msra.mxu0 0.0
    %2500 = vmatpush.msra.mxu0 0.0
    %2501 = vmatpush.msra.mxu0 0.0
    %2502 = vmatpush.msra.mxu0 0.0
    %2503 = vmatpush.msra.mxu0 0.0
    %2504 = vmatpush.msra.mxu0 0.0
    %2505 = vmatpush.msra.mxu0 0.0
    %2506 = vmatpush.msra.mxu0 0.0
    %2507 = vmatpush.msra.mxu0 0.0
    %2508 = vmatpush.msra.mxu0 %v2296
    %2509 = vmatpush.msra.mxu0 %v2295
    %2510 = vmatmul.f32.gmra.mxu0 %v2303
    %v2511 = vpop.f32.mrf.mxu0
    %v2512 = vadd.f32 %v2299, %v2511
    %2513 = vmatmul.f32.gmra.mxu0 %v2306
    %v2514 = vpop.f32.mrf.mxu0
    %v2515 = vadd.f32 %v2299, %v2514
    %2516 = vmatmul.f32.gmra.mxu0 %v2309
    %v2517 = vpop.f32.mrf.mxu0
    %v2518 = vadd.f32 %v2299, %v2517
    %2519 = vmatmul.f32.gmra.mxu0 %v2312
    %v2520 = vpop.f32.mrf.mxu0
    %v2521 = vadd.f32 %v2299, %v2520
    %2522 = vmatmul.f32.gmra.mxu0 %v2315
    %v2523 = vpop.f32.mrf.mxu0
    %v2524 = vadd.f32 %v2299, %v2523
    %2525 = vmatmul.f32.gmra.mxu0 %v2318
    %v2526 = vpop.f32.mrf.mxu0
    %v2527 = vadd.f32 %v2299, %v2526
    %2528 = vmatmul.f32.gmra.mxu0 %v2321
    %v2529 = vpop.f32.mrf.mxu0
    %v2530 = vadd.f32 %v2299, %v2529
    %2531 = vmatmul.f32.gmra.mxu0 %v2324
    %v2532 = vpop.f32.mrf.mxu0
    %v2533 = vadd.f32 %v2299, %v2532
    %2534 = vmatmul.f32.gmra.mxu0 %v2327
    %v2535 = vpop.f32.mrf.mxu0
    %v2536 = vadd.f32 %v2299, %v2535
    %2537 = vmatmul.f32.gmra.mxu0 %v2330
    %v2538 = vpop.f32.mrf.mxu0
    %v2539 = vadd.f32 %v2299, %v2538
    %2540 = vmatmul.f32.gmra.mxu0 %v2333
    %v2541 = vpop.f32.mrf.mxu0
    %v2542 = vadd.f32 %v2299, %v2541
    %2543 = vmatmul.f32.gmra.mxu0 %v2336
    %v2544 = vpop.f32.mrf.mxu0
    %v2545 = vadd.f32 %v2299, %v2544
    %2546 = vmatmul.f32.gmra.mxu0 %v2339
    %v2547 = vpop.f32.mrf.mxu0
    %v2548 = vadd.f32 %v2299, %v2547
    %2549 = vmatmul.f32.gmra.mxu0 %v2342
    %v2550 = vpop.f32.mrf.mxu0
    %v2551 = vadd.f32 %v2299, %v2550
    %2552 = vmatmul.f32.gmra.mxu0 %v2345
    %v2553 = vpop.f32.mrf.mxu0
    %v2554 = vadd.f32 %v2299, %v2553
    %2555 = vmatmul.f32.gmra.mxu0 %v2348
    %v2556 = vpop.f32.mrf.mxu0
    %v2557 = vadd.f32 %v2299, %v2556
    %2558 = vmatmul.f32.gmra.mxu0 %v2351
    %v2559 = vpop.f32.mrf.mxu0
    %v2560 = vadd.f32 %v2299, %v2559
    %2561 = vmatmul.f32.gmra.mxu0 %v2354
    %v2562 = vpop.f32.mrf.mxu0
    %v2563 = vadd.f32 %v2299, %v2562
    %2564 = vmatmul.f32.gmra.mxu0 %v2357
    %v2565 = vpop.f32.mrf.mxu0
    %v2566 = vadd.f32 %v2299, %v2565
    %2567 = vmatmul.f32.gmra.mxu0 %v2360
    %v2568 = vpop.f32.mrf.mxu0
    %v2569 = vadd.f32 %v2299, %v2568
    %2570 = vmatmul.f32.gmra.mxu0 %v2363
    %v2571 = vpop.f32.mrf.mxu0
    %v2572 = vadd.f32 %v2299, %v2571
    %2573 = vmatmul.f32.gmra.mxu0 %v2366
    %v2574 = vpop.f32.mrf.mxu0
    %v2575 = vadd.f32 %v2299, %v2574
    %2576 = vmatmul.f32.gmra.mxu0 %v2369
    %v2577 = vpop.f32.mrf.mxu0
    %v2578 = vadd.f32 %v2299, %v2577
    %2579 = vmatmul.f32.gmra.mxu0 %v2372
    %v2580 = vpop.f32.mrf.mxu0
    %v2581 = vadd.f32 %v2299, %v2580
    %2582 = vmatmul.f32.gmra.mxu0 %v2375
    %v2583 = vpop.f32.mrf.mxu0
    %v2584 = vadd.f32 %v2299, %v2583
    %2585 = vmatmul.f32.gmra.mxu0 %v2378
    %v2586 = vpop.f32.mrf.mxu0
    %v2587 = vadd.f32 %v2299, %v2586
    %2588 = vmatmul.f32.gmra.mxu0 %v2381
    %v2589 = vpop.f32.mrf.mxu0
    %v2590 = vadd.f32 %v2299, %v2589
    %2591 = vmatmul.f32.gmra.mxu0 %v2384
    %v2592 = vpop.f32.mrf.mxu0
    %v2593 = vadd.f32 %v2299, %v2592
    %2594 = vmatmul.f32.gmra.mxu0 %v2387
    %v2595 = vpop.f32.mrf.mxu0
    %v2596 = vadd.f32 %v2299, %v2595
    %2597 = vmatmul.f32.gmra.mxu0 %v2390
    %v2598 = vpop.f32.mrf.mxu0
    %v2599 = vadd.f32 %v2299, %v2598
    %2600 = vmatmul.f32.gmra.mxu0 %v2393
    %v2601 = vpop.f32.mrf.mxu0
    %v2602 = vadd.f32 %v2299, %v2601
    %2603 = vmatmul.f32.gmra.mxu0 %v2396
    %v2604 = vpop.f32.mrf.mxu0
    %v2605 = vadd.f32 %v2299, %v2604
    %2606 = vmatmul.f32.gmra.mxu0 %v2399
    %v2607 = vpop.f32.mrf.mxu0
    %v2608 = vadd.f32 %v2299, %v2607
    %2609 = vmatmul.f32.gmra.mxu0 %v2402
    %v2610 = vpop.f32.mrf.mxu0
    %v2611 = vadd.f32 %v2299, %v2610
    %2612 = vmatmul.f32.gmra.mxu0 %v2405
    %v2613 = vpop.f32.mrf.mxu0
    %v2614 = vadd.f32 %v2299, %v2613
    %2615 = vmatmul.f32.gmra.mxu0 %v2408
    %v2616 = vpop.f32.mrf.mxu0
    %v2617 = vadd.f32 %v2299, %v2616
    %2618 = vmatmul.f32.gmra.mxu0 %v2411
    %v2619 = vpop.f32.mrf.mxu0
    %v2620 = vadd.f32 %v2299, %v2619
    %2621 = vmatmul.f32.gmra.mxu0 %v2414
    %v2622 = vpop.f32.mrf.mxu0
    %v2623 = vadd.f32 %v2299, %v2622
    %2624 = vmatmul.f32.gmra.mxu0 %v2417
    %v2625 = vpop.f32.mrf.mxu0
    %v2626 = vadd.f32 %v2299, %v2625
    %2627 = vmatmul.f32.gmra.mxu0 %v2420
    %v2628 = vpop.f32.mrf.mxu0
    %v2629 = vadd.f32 %v2299, %v2628
    %2630 = vmatmul.f32.gmra.mxu0 %v2423
    %v2631 = vpop.f32.mrf.mxu0
    %v2632 = vadd.f32 %v2299, %v2631
    %2633 = vmatmul.f32.gmra.mxu0 %v2426
    %v2634 = vpop.f32.mrf.mxu0
    %v2635 = vadd.f32 %v2299, %v2634
    %2636 = vmatmul.f32.gmra.mxu0 %v2429
    %v2637 = vpop.f32.mrf.mxu0
    %v2638 = vadd.f32 %v2299, %v2637
    %2639 = vmatmul.f32.gmra.mxu0 %v2432
    %v2640 = vpop.f32.mrf.mxu0
    %v2641 = vadd.f32 %v2299, %v2640
    %2642 = vmatmul.f32.gmra.mxu0 %v2435
    %v2643 = vpop.f32.mrf.mxu0
    %v2644 = vadd.f32 %v2299, %v2643
    %2645 = vmatmul.f32.gmra.mxu0 %v2438
    %v2646 = vpop.f32.mrf.mxu0
    %v2647 = vadd.f32 %v2299, %v2646
    %2648 = vmatmul.f32.gmra.mxu0 %v2441
    %v2649 = vpop.f32.mrf.mxu0
    %v2650 = vadd.f32 %v2299, %v2649
    %2651 = vmatmul.f32.gmra.mxu0 %v2444
    %v2652 = vpop.f32.mrf.mxu0
    %v2653 = vadd.f32 %v2299, %v2652
    %2654 = vmatmul.f32.gmra.mxu0 %v2447
    %v2655 = vpop.f32.mrf.mxu0
    %v2656 = vadd.f32 %v2299, %v2655
    %2657 = vmatmul.f32.gmra.mxu0 %v2450
    %v2658 = vpop.f32.mrf.mxu0
    %v2659 = vadd.f32 %v2299, %v2658
    %2660 = vmatmul.f32.gmra.mxu0 %v2453
    %v2661 = vpop.f32.mrf.mxu0
    %v2662 = vadd.f32 %v2299, %v2661
    %2663 = vmatmul.f32.gmra.mxu0 %v2456
    %v2664 = vpop.f32.mrf.mxu0
    %v2665 = vadd.f32 %v2299, %v2664
    %2666 = vmatmul.f32.gmra.mxu0 %v2459
    %v2667 = vpop.f32.mrf.mxu0
    %v2668 = vadd.f32 %v2299, %v2667
    %2669 = vmatmul.f32.gmra.mxu0 %v2462
    %v2670 = vpop.f32.mrf.mxu0
    %v2671 = vadd.f32 %v2299, %v2670
    %2672 = vmatmul.f32.gmra.mxu0 %v2465
    %v2673 = vpop.f32.mrf.mxu0
    %v2674 = vadd.f32 %v2299, %v2673
    %2675 = vmatmul.f32.gmra.mxu0 %v2468
    %v2676 = vpop.f32.mrf.mxu0
    %v2677 = vadd.f32 %v2299, %v2676
    %2678 = vmatmul.f32.gmra.mxu0 %v2471
    %v2679 = vpop.f32.mrf.mxu0
    %v2680 = vadd.f32 %v2299, %v2679
    %2681 = vmatmul.f32.gmra.mxu0 %v2474
    %v2682 = vpop.f32.mrf.mxu0
    %v2683 = vadd.f32 %v2299, %v2682
    %2684 = vmatmul.f32.gmra.mxu0 %v2477
    %v2685 = vpop.f32.mrf.mxu0
    %v2686 = vadd.f32 %v2299, %v2685
    %2687 = vmatmul.f32.gmra.mxu0 %v2480
    %v2688 = vpop.f32.mrf.mxu0
    %v2689 = vadd.f32 %v2299, %v2688
    %2690 = vmatmul.f32.gmra.mxu0 %v2483
    %v2691 = vpop.f32.mrf.mxu0
    %v2692 = vadd.f32 %v2299, %v2691
    %2693 = vmatmul.f32.gmra.mxu0 %v2486
    %v2694 = vpop.f32.mrf.mxu0
    %v2695 = vadd.f32 %v2299, %v2694
    %2696 = vmatmul.f32.gmra.mxu0 %v2489
    %v2697 = vpop.f32.mrf.mxu0
    %v2698 = vadd.f32 %v2299, %v2697
    %2699 = vmatmul.f32.gmra.mxu0 %v2492
    %v2700 = vpop.f32.mrf.mxu0
    %v2701 = vadd.f32 %v2299, %v2700
    %2702 = vdwg.mxu0
    %2703 = vrot.lane.b32.xlu0 %v42, 98
    %v2704 = vpop.permute.xlu0 %2703
    %2705 = vrot.lane.b32.xlu0 %v43, 98
    %v2706 = vpop.permute.xlu0 %2705
    %2707 = vrot.lane.b32.xlu0 %v44, 98
    %v2708 = vpop.permute.xlu0 %2707
    %2709 = vrot.lane.b32.xlu0 %v45, 98
    %v2710 = vpop.permute.xlu0 %2709
    %2711 = vrot.lane.b32.xlu0 %v46, 98
    %v2712 = vpop.permute.xlu0 %2711
    %2713 = vrot.lane.b32.xlu0 %v47, 98
    %v2714 = vpop.permute.xlu0 %2713
    %2715 = vrot.lane.b32.xlu0 %v48, 98
    %v2716 = vpop.permute.xlu0 %2715
    %2717 = vrot.lane.b32.xlu0 %v49, 98
    %v2718 = vpop.permute.xlu0 %2717
    %2719 = vrot.lane.b32.xlu0 %v50, 98
    %v2720 = vpop.permute.xlu0 %2719
    %2721 = vrot.lane.b32.xlu0 %v51, 98
    %v2722 = vpop.permute.xlu0 %2721
    %2723 = vrot.lane.b32.xlu0 %v52, 98
    %v2724 = vpop.permute.xlu0 %2723
    %2725 = vrot.lane.b32.xlu0 %v53, 98
    %v2726 = vpop.permute.xlu0 %2725
    %2727 = vrot.lane.b32.xlu0 %v54, 98
    %v2728 = vpop.permute.xlu0 %2727
    %2729 = vrot.lane.b32.xlu0 %v55, 98
    %v2730 = vpop.permute.xlu0 %2729
    %2731 = vrot.lane.b32.xlu0 %v56, 98
    %v2732 = vpop.permute.xlu0 %2731
    %2733 = vrot.lane.b32.xlu0 %v57, 98
    %v2734 = vpop.permute.xlu0 %2733
    %2735 = vrot.lane.b32.xlu0 %v58, 98
    %v2736 = vpop.permute.xlu0 %2735
    %2737 = vrot.lane.b32.xlu0 %v59, 98
    %v2738 = vpop.permute.xlu0 %2737
    %2739 = vrot.lane.b32.xlu0 %v60, 98
    %v2740 = vpop.permute.xlu0 %2739
    %2741 = vrot.lane.b32.xlu0 %v61, 98
    %v2742 = vpop.permute.xlu0 %2741
    %2743 = vrot.lane.b32.xlu0 %v62, 98
    %v2744 = vpop.permute.xlu0 %2743
    %2745 = vrot.lane.b32.xlu0 %v63, 98
    %v2746 = vpop.permute.xlu0 %2745
    %2747 = vrot.lane.b32.xlu0 %v64, 98
    %v2748 = vpop.permute.xlu0 %2747
    %2749 = vrot.lane.b32.xlu0 %v65, 98
    %v2750 = vpop.permute.xlu0 %2749
    %2751 = vrot.lane.b32.xlu0 %v66, 98
    %v2752 = vpop.permute.xlu0 %2751
    %2753 = vrot.lane.b32.xlu0 %v67, 98
    %v2754 = vpop.permute.xlu0 %2753
    %2755 = vrot.lane.b32.xlu0 %v68, 98
    %v2756 = vpop.permute.xlu0 %2755
    %2757 = vrot.lane.b32.xlu0 %v69, 98
    %v2758 = vpop.permute.xlu0 %2757
    %2759 = vrot.lane.b32.xlu0 %v70, 98
    %v2760 = vpop.permute.xlu0 %2759
    %2761 = vrot.lane.b32.xlu0 %v71, 98
    %v2762 = vpop.permute.xlu0 %2761
    %2763 = vrot.lane.b32.xlu0 %v72, 98
    %v2764 = vpop.permute.xlu0 %2763
    %2765 = vrot.lane.b32.xlu0 %v73, 98
    %v2766 = vpop.permute.xlu0 %2765
    %2767 = vrot.lane.b32.xlu0 %v74, 98
    %v2768 = vpop.permute.xlu0 %2767
    %2769 = vrot.lane.b32.xlu0 %v75, 98
    %v2770 = vpop.permute.xlu0 %2769
    %2771 = vrot.lane.b32.xlu0 %v76, 98
    %v2772 = vpop.permute.xlu0 %2771
    %2773 = vrot.lane.b32.xlu0 %v77, 98
    %v2774 = vpop.permute.xlu0 %2773
    %2775 = vrot.lane.b32.xlu0 %v78, 98
    %v2776 = vpop.permute.xlu0 %2775
    %2777 = vrot.lane.b32.xlu0 %v79, 98
    %v2778 = vpop.permute.xlu0 %2777
    %2779 = vrot.lane.b32.xlu0 %v80, 98
    %v2780 = vpop.permute.xlu0 %2779
    %2781 = vrot.lane.b32.xlu0 %v81, 98
    %v2782 = vpop.permute.xlu0 %2781
    %2783 = vrot.lane.b32.xlu0 %v82, 98
    %v2784 = vpop.permute.xlu0 %2783
    %2785 = vrot.lane.b32.xlu0 %v83, 98
    %v2786 = vpop.permute.xlu0 %2785
    %2787 = vrot.lane.b32.xlu0 %v84, 98
    %v2788 = vpop.permute.xlu0 %2787
    %2789 = vrot.lane.b32.xlu0 %v85, 98
    %v2790 = vpop.permute.xlu0 %2789
    %2791 = vrot.lane.b32.xlu0 %v86, 98
    %v2792 = vpop.permute.xlu0 %2791
    %2793 = vrot.lane.b32.xlu0 %v87, 98
    %v2794 = vpop.permute.xlu0 %2793
    %2795 = vrot.lane.b32.xlu0 %v88, 98
    %v2796 = vpop.permute.xlu0 %2795
    %2797 = vrot.lane.b32.xlu0 %v89, 98
    %v2798 = vpop.permute.xlu0 %2797
    %2799 = vrot.lane.b32.xlu0 %v90, 98
    %v2800 = vpop.permute.xlu0 %2799
    %2801 = vrot.lane.b32.xlu0 %v91, 98
    %v2802 = vpop.permute.xlu0 %2801
    %2803 = vrot.lane.b32.xlu0 %v92, 98
    %v2804 = vpop.permute.xlu0 %2803
    %2805 = vrot.lane.b32.xlu0 %v93, 98
    %v2806 = vpop.permute.xlu0 %2805
    %2807 = vrot.lane.b32.xlu0 %v94, 98
    %v2808 = vpop.permute.xlu0 %2807
    %2809 = vrot.lane.b32.xlu0 %v95, 98
    %v2810 = vpop.permute.xlu0 %2809
    %2811 = vrot.lane.b32.xlu0 %v96, 98
    %v2812 = vpop.permute.xlu0 %2811
    %2813 = vrot.lane.b32.xlu0 %v97, 98
    %v2814 = vpop.permute.xlu0 %2813
    %2815 = vrot.lane.b32.xlu0 %v98, 98
    %v2816 = vpop.permute.xlu0 %2815
    %2817 = vrot.lane.b32.xlu0 %v99, 98
    %v2818 = vpop.permute.xlu0 %2817
    %2819 = vrot.lane.b32.xlu0 %v100, 98
    %v2820 = vpop.permute.xlu0 %2819
    %2821 = vrot.lane.b32.xlu0 %v101, 98
    %v2822 = vpop.permute.xlu0 %2821
    %2823 = vrot.lane.b32.xlu0 %v102, 98
    %v2824 = vpop.permute.xlu0 %2823
    %2825 = vrot.lane.b32.xlu0 %v103, 98
    %v2826 = vpop.permute.xlu0 %2825
    %2827 = vrot.lane.b32.xlu0 %v104, 98
    %v2828 = vpop.permute.xlu0 %2827
    %2829 = vrot.lane.b32.xlu0 %v105, 98
    %v2830 = vpop.permute.xlu0 %2829
    %v2895 = vmul.f32 %v2512, %v2704
    %v2896 = vmul.f32 %v2515, %v2706
    %v2897 = vmul.f32 %v2518, %v2708
    %v2898 = vmul.f32 %v2521, %v2710
    %v2899 = vmul.f32 %v2524, %v2712
    %v2900 = vmul.f32 %v2527, %v2714
    %v2901 = vmul.f32 %v2530, %v2716
    %v2902 = vmul.f32 %v2533, %v2718
    %v2903 = vmul.f32 %v2536, %v2720
    %v2904 = vmul.f32 %v2539, %v2722
    %v2905 = vmul.f32 %v2542, %v2724
    %v2906 = vmul.f32 %v2545, %v2726
    %v2907 = vmul.f32 %v2548, %v2728
    %v2908 = vmul.f32 %v2551, %v2730
    %v2909 = vmul.f32 %v2554, %v2732
    %v2910 = vmul.f32 %v2557, %v2734
    %v2911 = vmul.f32 %v2560, %v2736
    %v2912 = vmul.f32 %v2563, %v2738
    %v2913 = vmul.f32 %v2566, %v2740
    %v2914 = vmul.f32 %v2569, %v2742
    %v2915 = vmul.f32 %v2572, %v2744
    %v2916 = vmul.f32 %v2575, %v2746
    %v2917 = vmul.f32 %v2578, %v2748
    %v2918 = vmul.f32 %v2581, %v2750
    %v2919 = vmul.f32 %v2584, %v2752
    %v2920 = vmul.f32 %v2587, %v2754
    %v2921 = vmul.f32 %v2590, %v2756
    %v2922 = vmul.f32 %v2593, %v2758
    %v2923 = vmul.f32 %v2596, %v2760
    %v2924 = vmul.f32 %v2599, %v2762
    %v2925 = vmul.f32 %v2602, %v2764
    %v2926 = vmul.f32 %v2605, %v2766
    %v2927 = vmul.f32 %v2608, %v2768
    %v2928 = vmul.f32 %v2611, %v2770
    %v2929 = vmul.f32 %v2614, %v2772
    %v2930 = vmul.f32 %v2617, %v2774
    %v2931 = vmul.f32 %v2620, %v2776
    %v2932 = vmul.f32 %v2623, %v2778
    %v2933 = vmul.f32 %v2626, %v2780
    %v2934 = vmul.f32 %v2629, %v2782
    %v2935 = vmul.f32 %v2632, %v2784
    %v2936 = vmul.f32 %v2635, %v2786
    %v2937 = vmul.f32 %v2638, %v2788
    %v2938 = vmul.f32 %v2641, %v2790
    %v2939 = vmul.f32 %v2644, %v2792
    %v2940 = vmul.f32 %v2647, %v2794
    %v2941 = vmul.f32 %v2650, %v2796
    %v2942 = vmul.f32 %v2653, %v2798
    %v2943 = vmul.f32 %v2656, %v2800
    %v2944 = vmul.f32 %v2659, %v2802
    %v2945 = vmul.f32 %v2662, %v2804
    %v2946 = vmul.f32 %v2665, %v2806
    %v2947 = vmul.f32 %v2668, %v2808
    %v2948 = vmul.f32 %v2671, %v2810
    %v2949 = vmul.f32 %v2674, %v2812
    %v2950 = vmul.f32 %v2677, %v2814
    %v2951 = vmul.f32 %v2680, %v2816
    %v2952 = vmul.f32 %v2683, %v2818
    %v2953 = vmul.f32 %v2686, %v2820
    %v2954 = vmul.f32 %v2689, %v2822
    %v2955 = vmul.f32 %v2692, %v2824
    %v2956 = vmul.f32 %v2695, %v2826
    %v2957 = vmul.f32 %v2698, %v2828
    %v2958 = vmul.f32 %v2701, %v2830
    %v2959 = vld [vmem:[%s10] sm:$0xff]
    %v2960 = vld [vmem:[%s10 + $0x8] sm:$0xff]
    %v2961 = vld [vmem:[%s10 + $0x10] sm:$0xff]
    %v2962 = vld [vmem:[%s10 + $0x18] sm:$0xff]
    %v2963 = vld [vmem:[%s11] sm:$0x1]
    %v2965 = vperm.slane %v2963, 0
    %vm2967 = vcmask 261120
    %v2969 = vsel %vm2967, %v2895, 0
    %v2972 = vsel %vm2967, %v2896, 0
    %v2975 = vsel %vm2967, %v2897, 0
    %v2978 = vsel %vm2967, %v2898, 0
    %v2981 = vsel %vm2967, %v2899, 0
    %v2984 = vsel %vm2967, %v2900, 0
    %v2987 = vsel %vm2967, %v2901, 0
    %v2990 = vsel %vm2967, %v2902, 0
    %v2993 = vsel %vm2967, %v2903, 0
    %v2996 = vsel %vm2967, %v2904, 0
    %v2999 = vsel %vm2967, %v2905, 0
    %v3002 = vsel %vm2967, %v2906, 0
    %v3005 = vsel %vm2967, %v2907, 0
    %v3008 = vsel %vm2967, %v2908, 0
    %v3011 = vsel %vm2967, %v2909, 0
    %v3014 = vsel %vm2967, %v2910, 0
    %v3017 = vsel %vm2967, %v2911, 0
    %v3020 = vsel %vm2967, %v2912, 0
    %v3023 = vsel %vm2967, %v2913, 0
    %v3026 = vsel %vm2967, %v2914, 0
    %v3029 = vsel %vm2967, %v2915, 0
    %v3032 = vsel %vm2967, %v2916, 0
    %v3035 = vsel %vm2967, %v2917, 0
    %v3038 = vsel %vm2967, %v2918, 0
    %v3041 = vsel %vm2967, %v2919, 0
    %v3044 = vsel %vm2967, %v2920, 0
    %v3047 = vsel %vm2967, %v2921, 0
    %v3050 = vsel %vm2967, %v2922, 0
    %v3053 = vsel %vm2967, %v2923, 0
    %v3056 = vsel %vm2967, %v2924, 0
    %v3059 = vsel %vm2967, %v2925, 0
    %v3062 = vsel %vm2967, %v2926, 0
    %v3065 = vsel %vm2967, %v2927, 0
    %v3068 = vsel %vm2967, %v2928, 0
    %v3071 = vsel %vm2967, %v2929, 0
    %v3074 = vsel %vm2967, %v2930, 0
    %v3077 = vsel %vm2967, %v2931, 0
    %v3080 = vsel %vm2967, %v2932, 0
    %v3083 = vsel %vm2967, %v2933, 0
    %v3086 = vsel %vm2967, %v2934, 0
    %v3089 = vsel %vm2967, %v2935, 0
    %v3092 = vsel %vm2967, %v2936, 0
    %v3095 = vsel %vm2967, %v2937, 0
    %v3098 = vsel %vm2967, %v2938, 0
    %v3101 = vsel %vm2967, %v2939, 0
    %v3104 = vsel %vm2967, %v2940, 0
    %v3107 = vsel %vm2967, %v2941, 0
    %v3110 = vsel %vm2967, %v2942, 0
    %v3113 = vsel %vm2967, %v2943, 0
    %v3116 = vsel %vm2967, %v2944, 0
    %v3119 = vsel %vm2967, %v2945, 0
    %v3122 = vsel %vm2967, %v2946, 0
    %v3125 = vsel %vm2967, %v2947, 0
    %v3128 = vsel %vm2967, %v2948, 0
    %v3131 = vsel %vm2967, %v2949, 0
    %v3134 = vsel %vm2967, %v2950, 0
    %v3137 = vsel %vm2967, %v2951, 0
    %v3140 = vsel %vm2967, %v2952, 0
    %v3143 = vsel %vm2967, %v2953, 0
    %v3146 = vsel %vm2967, %v2954, 0
    %v3149 = vsel %vm2967, %v2955, 0
    %v3152 = vsel %vm2967, %v2956, 0
    %v3155 = vsel %vm2967, %v2957, 0
    %v3158 = vsel %vm2967, %v2958, 0
    %3160 = vmatpush.msra.mxu0 0.0
    %3161 = vmatpush.msra.mxu0 0.0
    %3162 = vmatpush.msra.mxu0 0.0
    %3163 = vmatpush.msra.mxu0 0.0
    %3164 = vmatpush.msra.mxu0 0.0
    %3165 = vmatpush.msra.mxu0 0.0
    %3166 = vmatpush.msra.mxu0 0.0
    %3167 = vmatpush.msra.mxu0 0.0
    %3168 = vmatpush.msra.mxu0 0.0
    %3169 = vmatpush.msra.mxu0 0.0
    %3170 = vmatpush.msra.mxu0 0.0
    %3171 = vmatpush.msra.mxu0 0.0
    %3172 = vmatpush.msra.mxu0 %v2962
    %3173 = vmatpush.msra.mxu0 %v2961
    %3174 = vmatpush.msra.mxu0 %v2960
    %3175 = vmatpush.msra.mxu0 %v2959
    %3176 = vmatmul.f32.gmra.mxu0 %v2969
    %v3177 = vpop.f32.mrf.mxu0
    %v3178 = vadd.f32 %v2965, %v3177
    %3179 = vmatmul.f32.gmra.mxu0 %v2972
    %v3180 = vpop.f32.mrf.mxu0
    %v3181 = vadd.f32 %v2965, %v3180
    %3182 = vmatmul.f32.gmra.mxu0 %v2975
    %v3183 = vpop.f32.mrf.mxu0
    %v3184 = vadd.f32 %v2965, %v3183
    %3185 = vmatmul.f32.gmra.mxu0 %v2978
    %v3186 = vpop.f32.mrf.mxu0
    %v3187 = vadd.f32 %v2965, %v3186
    %3188 = vmatmul.f32.gmra.mxu0 %v2981
    %v3189 = vpop.f32.mrf.mxu0
    %v3190 = vadd.f32 %v2965, %v3189
    %3191 = vmatmul.f32.gmra.mxu0 %v2984
    %v3192 = vpop.f32.mrf.mxu0
    %v3193 = vadd.f32 %v2965, %v3192
    %3194 = vmatmul.f32.gmra.mxu0 %v2987
    %v3195 = vpop.f32.mrf.mxu0
    %v3196 = vadd.f32 %v2965, %v3195
    %3197 = vmatmul.f32.gmra.mxu0 %v2990
    %v3198 = vpop.f32.mrf.mxu0
    %v3199 = vadd.f32 %v2965, %v3198
    %3200 = vmatmul.f32.gmra.mxu0 %v2993
    %v3201 = vpop.f32.mrf.mxu0
    %v3202 = vadd.f32 %v2965, %v3201
    %3203 = vmatmul.f32.gmra.mxu0 %v2996
    %v3204 = vpop.f32.mrf.mxu0
    %v3205 = vadd.f32 %v2965, %v3204
    %3206 = vmatmul.f32.gmra.mxu0 %v2999
    %v3207 = vpop.f32.mrf.mxu0
    %v3208 = vadd.f32 %v2965, %v3207
    %3209 = vmatmul.f32.gmra.mxu0 %v3002
    %v3210 = vpop.f32.mrf.mxu0
    %v3211 = vadd.f32 %v2965, %v3210
    %3212 = vmatmul.f32.gmra.mxu0 %v3005
    %v3213 = vpop.f32.mrf.mxu0
    %v3214 = vadd.f32 %v2965, %v3213
    %3215 = vmatmul.f32.gmra.mxu0 %v3008
    %v3216 = vpop.f32.mrf.mxu0
    %v3217 = vadd.f32 %v2965, %v3216
    %3218 = vmatmul.f32.gmra.mxu0 %v3011
    %v3219 = vpop.f32.mrf.mxu0
    %v3220 = vadd.f32 %v2965, %v3219
    %3221 = vmatmul.f32.gmra.mxu0 %v3014
    %v3222 = vpop.f32.mrf.mxu0
    %v3223 = vadd.f32 %v2965, %v3222
    %3224 = vmatmul.f32.gmra.mxu0 %v3017
    %v3225 = vpop.f32.mrf.mxu0
    %v3226 = vadd.f32 %v2965, %v3225
    %3227 = vmatmul.f32.gmra.mxu0 %v3020
    %v3228 = vpop.f32.mrf.mxu0
    %v3229 = vadd.f32 %v2965, %v3228
    %3230 = vmatmul.f32.gmra.mxu0 %v3023
    %v3231 = vpop.f32.mrf.mxu0
    %v3232 = vadd.f32 %v2965, %v3231
    %3233 = vmatmul.f32.gmra.mxu0 %v3026
    %v3234 = vpop.f32.mrf.mxu0
    %v3235 = vadd.f32 %v2965, %v3234
    %3236 = vmatmul.f32.gmra.mxu0 %v3029
    %v3237 = vpop.f32.mrf.mxu0
    %v3238 = vadd.f32 %v2965, %v3237
    %3239 = vmatmul.f32.gmra.mxu0 %v3032
    %v3240 = vpop.f32.mrf.mxu0
    %v3241 = vadd.f32 %v2965, %v3240
    %3242 = vmatmul.f32.gmra.mxu0 %v3035
    %v3243 = vpop.f32.mrf.mxu0
    %v3244 = vadd.f32 %v2965, %v3243
    %3245 = vmatmul.f32.gmra.mxu0 %v3038
    %v3246 = vpop.f32.mrf.mxu0
    %v3247 = vadd.f32 %v2965, %v3246
    %3248 = vmatmul.f32.gmra.mxu0 %v3041
    %v3249 = vpop.f32.mrf.mxu0
    %v3250 = vadd.f32 %v2965, %v3249
    %3251 = vmatmul.f32.gmra.mxu0 %v3044
    %v3252 = vpop.f32.mrf.mxu0
    %v3253 = vadd.f32 %v2965, %v3252
    %3254 = vmatmul.f32.gmra.mxu0 %v3047
    %v3255 = vpop.f32.mrf.mxu0
    %v3256 = vadd.f32 %v2965, %v3255
    %3257 = vmatmul.f32.gmra.mxu0 %v3050
    %v3258 = vpop.f32.mrf.mxu0
    %v3259 = vadd.f32 %v2965, %v3258
    %3260 = vmatmul.f32.gmra.mxu0 %v3053
    %v3261 = vpop.f32.mrf.mxu0
    %v3262 = vadd.f32 %v2965, %v3261
    %3263 = vmatmul.f32.gmra.mxu0 %v3056
    %v3264 = vpop.f32.mrf.mxu0
    %v3265 = vadd.f32 %v2965, %v3264
    %3266 = vmatmul.f32.gmra.mxu0 %v3059
    %v3267 = vpop.f32.mrf.mxu0
    %v3268 = vadd.f32 %v2965, %v3267
    %3269 = vmatmul.f32.gmra.mxu0 %v3062
    %v3270 = vpop.f32.mrf.mxu0
    %v3271 = vadd.f32 %v2965, %v3270
    %3272 = vmatmul.f32.gmra.mxu0 %v3065
    %v3273 = vpop.f32.mrf.mxu0
    %v3274 = vadd.f32 %v2965, %v3273
    %3275 = vmatmul.f32.gmra.mxu0 %v3068
    %v3276 = vpop.f32.mrf.mxu0
    %v3277 = vadd.f32 %v2965, %v3276
    %3278 = vmatmul.f32.gmra.mxu0 %v3071
    %v3279 = vpop.f32.mrf.mxu0
    %v3280 = vadd.f32 %v2965, %v3279
    %3281 = vmatmul.f32.gmra.mxu0 %v3074
    %v3282 = vpop.f32.mrf.mxu0
    %v3283 = vadd.f32 %v2965, %v3282
    %3284 = vmatmul.f32.gmra.mxu0 %v3077
    %v3285 = vpop.f32.mrf.mxu0
    %v3286 = vadd.f32 %v2965, %v3285
    %3287 = vmatmul.f32.gmra.mxu0 %v3080
    %v3288 = vpop.f32.mrf.mxu0
    %v3289 = vadd.f32 %v2965, %v3288
    %3290 = vmatmul.f32.gmra.mxu0 %v3083
    %v3291 = vpop.f32.mrf.mxu0
    %v3292 = vadd.f32 %v2965, %v3291
    %3293 = vmatmul.f32.gmra.mxu0 %v3086
    %v3294 = vpop.f32.mrf.mxu0
    %v3295 = vadd.f32 %v2965, %v3294
    %3296 = vmatmul.f32.gmra.mxu0 %v3089
    %v3297 = vpop.f32.mrf.mxu0
    %v3298 = vadd.f32 %v2965, %v3297
    %3299 = vmatmul.f32.gmra.mxu0 %v3092
    %v3300 = vpop.f32.mrf.mxu0
    %v3301 = vadd.f32 %v2965, %v3300
    %3302 = vmatmul.f32.gmra.mxu0 %v3095
    %v3303 = vpop.f32.mrf.mxu0
    %v3304 = vadd.f32 %v2965, %v3303
    %3305 = vmatmul.f32.gmra.mxu0 %v3098
    %v3306 = vpop.f32.mrf.mxu0
    %v3307 = vadd.f32 %v2965, %v3306
    %3308 = vmatmul.f32.gmra.mxu0 %v3101
    %v3309 = vpop.f32.mrf.mxu0
    %v3310 = vadd.f32 %v2965, %v3309
    %3311 = vmatmul.f32.gmra.mxu0 %v3104
    %v3312 = vpop.f32.mrf.mxu0
    %v3313 = vadd.f32 %v2965, %v3312
    %3314 = vmatmul.f32.gmra.mxu0 %v3107
    %v3315 = vpop.f32.mrf.mxu0
    %v3316 = vadd.f32 %v2965, %v3315
    %3317 = vmatmul.f32.gmra.mxu0 %v3110
    %v3318 = vpop.f32.mrf.mxu0
    %v3319 = vadd.f32 %v2965, %v3318
    %3320 = vmatmul.f32.gmra.mxu0 %v3113
    %v3321 = vpop.f32.mrf.mxu0
    %v3322 = vadd.f32 %v2965, %v3321
    %3323 = vmatmul.f32.gmra.mxu0 %v3116
    %v3324 = vpop.f32.mrf.mxu0
    %v3325 = vadd.f32 %v2965, %v3324
    %3326 = vmatmul.f32.gmra.mxu0 %v3119
    %v3327 = vpop.f32.mrf.mxu0
    %v3328 = vadd.f32 %v2965, %v3327
    %3329 = vmatmul.f32.gmra.mxu0 %v3122
    %v3330 = vpop.f32.mrf.mxu0
    %v3331 = vadd.f32 %v2965, %v3330
    %3332 = vmatmul.f32.gmra.mxu0 %v3125
    %v3333 = vpop.f32.mrf.mxu0
    %v3334 = vadd.f32 %v2965, %v3333
    %3335 = vmatmul.f32.gmra.mxu0 %v3128
    %v3336 = vpop.f32.mrf.mxu0
    %v3337 = vadd.f32 %v2965, %v3336
    %3338 = vmatmul.f32.gmra.mxu0 %v3131
    %v3339 = vpop.f32.mrf.mxu0
    %v3340 = vadd.f32 %v2965, %v3339
    %3341 = vmatmul.f32.gmra.mxu0 %v3134
    %v3342 = vpop.f32.mrf.mxu0
    %v3343 = vadd.f32 %v2965, %v3342
    %3344 = vmatmul.f32.gmra.mxu0 %v3137
    %v3345 = vpop.f32.mrf.mxu0
    %v3346 = vadd.f32 %v2965, %v3345
    %3347 = vmatmul.f32.gmra.mxu0 %v3140
    %v3348 = vpop.f32.mrf.mxu0
    %v3349 = vadd.f32 %v2965, %v3348
    %3350 = vmatmul.f32.gmra.mxu0 %v3143
    %v3351 = vpop.f32.mrf.mxu0
    %v3352 = vadd.f32 %v2965, %v3351
    %3353 = vmatmul.f32.gmra.mxu0 %v3146
    %v3354 = vpop.f32.mrf.mxu0
    %v3355 = vadd.f32 %v2965, %v3354
    %3356 = vmatmul.f32.gmra.mxu0 %v3149
    %v3357 = vpop.f32.mrf.mxu0
    %v3358 = vadd.f32 %v2965, %v3357
    %3359 = vmatmul.f32.gmra.mxu0 %v3152
    %v3360 = vpop.f32.mrf.mxu0
    %v3361 = vadd.f32 %v2965, %v3360
    %3362 = vmatmul.f32.gmra.mxu0 %v3155
    %v3363 = vpop.f32.mrf.mxu0
    %v3364 = vadd.f32 %v2965, %v3363
    %3365 = vmatmul.f32.gmra.mxu0 %v3158
    %v3366 = vpop.f32.mrf.mxu0
    %v3367 = vadd.f32 %v2965, %v3366
    %3368 = vdwg.mxu0
    %3369 = vst.msk [vmem:[#allocation2] sm:$0xff] %vm2967, %v3178
    %3370 = vst.msk [vmem:[#allocation2 + $0x8] sm:$0xff] %vm2967, %v3181
    %3371 = vst.msk [vmem:[#allocation2 + $0x10] sm:$0xff] %vm2967, %v3184
    %3372 = vst.msk [vmem:[#allocation2 + $0x18] sm:$0xff] %vm2967, %v3187
    %3373 = vst.msk [vmem:[#allocation2 + $0x20] sm:$0xff] %vm2967, %v3190
    %3374 = vst.msk [vmem:[#allocation2 + $0x28] sm:$0xff] %vm2967, %v3193
    %3375 = vst.msk [vmem:[#allocation2 + $0x30] sm:$0xff] %vm2967, %v3196
    %3376 = vst.msk [vmem:[#allocation2 + $0x38] sm:$0xff] %vm2967, %v3199
    %3377 = vst.msk [vmem:[#allocation2 + $0x40] sm:$0xff] %vm2967, %v3202
    %3378 = vst.msk [vmem:[#allocation2 + $0x48] sm:$0xff] %vm2967, %v3205
    %3379 = vst.msk [vmem:[#allocation2 + $0x50] sm:$0xff] %vm2967, %v3208
    %3380 = vst.msk [vmem:[#allocation2 + $0x58] sm:$0xff] %vm2967, %v3211
    %3381 = vst.msk [vmem:[#allocation2 + $0x60] sm:$0xff] %vm2967, %v3214
    %3382 = vst.msk [vmem:[#allocation2 + $0x68] sm:$0xff] %vm2967, %v3217
    %3383 = vst.msk [vmem:[#allocation2 + $0x70] sm:$0xff] %vm2967, %v3220
    %3384 = vst.msk [vmem:[#allocation2 + $0x78] sm:$0xff] %vm2967, %v3223
    %3385 = vst.msk [vmem:[#allocation2 + $0x80] sm:$0xff] %vm2967, %v3226
    %3386 = vst.msk [vmem:[#allocation2 + $0x88] sm:$0xff] %vm2967, %v3229
    %3387 = vst.msk [vmem:[#allocation2 + $0x90] sm:$0xff] %vm2967, %v3232
    %3388 = vst.msk [vmem:[#allocation2 + $0x98] sm:$0xff] %vm2967, %v3235
    %3389 = vst.msk [vmem:[#allocation2 + $0xa0] sm:$0xff] %vm2967, %v3238
    %3390 = vst.msk [vmem:[#allocation2 + $0xa8] sm:$0xff] %vm2967, %v3241
    %3391 = vst.msk [vmem:[#allocation2 + $0xb0] sm:$0xff] %vm2967, %v3244
    %3392 = vst.msk [vmem:[#allocation2 + $0xb8] sm:$0xff] %vm2967, %v3247
    %3393 = vst.msk [vmem:[#allocation2 + $0xc0] sm:$0xff] %vm2967, %v3250
    %3394 = vst.msk [vmem:[#allocation2 + $0xc8] sm:$0xff] %vm2967, %v3253
    %3395 = vst.msk [vmem:[#allocation2 + $0xd0] sm:$0xff] %vm2967, %v3256
    %3396 = vst.msk [vmem:[#allocation2 + $0xd8] sm:$0xff] %vm2967, %v3259
    %3397 = vst.msk [vmem:[#allocation2 + $0xe0] sm:$0xff] %vm2967, %v3262
    %3398 = vst.msk [vmem:[#allocation2 + $0xe8] sm:$0xff] %vm2967, %v3265
    %3399 = vst.msk [vmem:[#allocation2 + $0xf0] sm:$0xff] %vm2967, %v3268
    %3400 = vst.msk [vmem:[#allocation2 + $0xf8] sm:$0xff] %vm2967, %v3271
    %3401 = vst.msk [vmem:[#allocation2 + $0x100] sm:$0xff] %vm2967, %v3274
    %3402 = vst.msk [vmem:[#allocation2 + $0x108] sm:$0xff] %vm2967, %v3277
    %3403 = vst.msk [vmem:[#allocation2 + $0x110] sm:$0xff] %vm2967, %v3280
    %3404 = vst.msk [vmem:[#allocation2 + $0x118] sm:$0xff] %vm2967, %v3283
    %3405 = vst.msk [vmem:[#allocation2 + $0x120] sm:$0xff] %vm2967, %v3286
    %3406 = vst.msk [vmem:[#allocation2 + $0x128] sm:$0xff] %vm2967, %v3289
    %3407 = vst.msk [vmem:[#allocation2 + $0x130] sm:$0xff] %vm2967, %v3292
    %3408 = vst.msk [vmem:[#allocation2 + $0x138] sm:$0xff] %vm2967, %v3295
    %3409 = vst.msk [vmem:[#allocation2 + $0x140] sm:$0xff] %vm2967, %v3298
    %3410 = vst.msk [vmem:[#allocation2 + $0x148] sm:$0xff] %vm2967, %v3301
    %3411 = vst.msk [vmem:[#allocation2 + $0x150] sm:$0xff] %vm2967, %v3304
    %3412 = vst.msk [vmem:[#allocation2 + $0x158] sm:$0xff] %vm2967, %v3307
    %3413 = vst.msk [vmem:[#allocation2 + $0x160] sm:$0xff] %vm2967, %v3310
    %3414 = vst.msk [vmem:[#allocation2 + $0x168] sm:$0xff] %vm2967, %v3313
    %3415 = vst.msk [vmem:[#allocation2 + $0x170] sm:$0xff] %vm2967, %v3316
    %3416 = vst.msk [vmem:[#allocation2 + $0x178] sm:$0xff] %vm2967, %v3319
    %3417 = vst.msk [vmem:[#allocation2 + $0x180] sm:$0xff] %vm2967, %v3322
    %3418 = vst.msk [vmem:[#allocation2 + $0x188] sm:$0xff] %vm2967, %v3325
    %3419 = vst.msk [vmem:[#allocation2 + $0x190] sm:$0xff] %vm2967, %v3328
    %3420 = vst.msk [vmem:[#allocation2 + $0x198] sm:$0xff] %vm2967, %v3331
    %3421 = vst.msk [vmem:[#allocation2 + $0x1a0] sm:$0xff] %vm2967, %v3334
    %3422 = vst.msk [vmem:[#allocation2 + $0x1a8] sm:$0xff] %vm2967, %v3337
    %3423 = vst.msk [vmem:[#allocation2 + $0x1b0] sm:$0xff] %vm2967, %v3340
    %3424 = vst.msk [vmem:[#allocation2 + $0x1b8] sm:$0xff] %vm2967, %v3343
    %3425 = vst.msk [vmem:[#allocation2 + $0x1c0] sm:$0xff] %vm2967, %v3346
    %3426 = vst.msk [vmem:[#allocation2 + $0x1c8] sm:$0xff] %vm2967, %v3349
    %3427 = vst.msk [vmem:[#allocation2 + $0x1d0] sm:$0xff] %vm2967, %v3352
    %3428 = vst.msk [vmem:[#allocation2 + $0x1d8] sm:$0xff] %vm2967, %v3355
    %3429 = vst.msk [vmem:[#allocation2 + $0x1e0] sm:$0xff] %vm2967, %v3358
    %3430 = vst.msk [vmem:[#allocation2 + $0x1e8] sm:$0xff] %vm2967, %v3361
    %3431 = vst.msk [vmem:[#allocation2 + $0x1f0] sm:$0xff] %vm2967, %v3364
    %3432 = vst.msk [vmem:[#allocation2 + $0x1f8] sm:$0xff] %vm2967, %v3367
    // Predicated region
    $region50: #{gnconv_forward.5} parent=1 // pred_check
      _
    $region51: #{gnconv_forward.5} parent=1 // pred_check_branch
      %3434 = sbr.rel (0) target = $region53
    $region52: #{gnconv_forward.5} parent=1 // pred_region
      %3436 = vsyncadd [#allocation3], 0
      %s3437 = sshll.u32 [#allocation2], 4
      %s3438 = int_to_ptr.vmem [resolvable:$true] %s3437
      %s3439 = sshll.u32 %s12, 4
      %s3440 = int_to_ptr.hbm [resolvable:$true] %s3439
      %3445 = dma.vmem_to_hbm [thread:$0]  %s3438, 8192, %s3440, [#allocation3], 128, 128, 8
    $region53: #{gnconv_forward.5} parent=1 // pred_fallthru
      _
    // Predicated region
    $region54: #{gnconv_forward.5} parent=1 // pred_check
      _
    $region55: #{gnconv_forward.5} parent=1 // pred_check_branch
      %3447 = sbr.rel (0) target = $region57
    $region56: #{gnconv_forward.5} parent=1 // pred_region
      %3449 = dma.done [#allocation3], 8192
    $region57: #{gnconv_forward.5} parent=1 // pred_fallthru
      _
    %3450 = vsyncpa [#allocation3], 1

// kernel: gnconv_forward.4
$region0: #{gnconv_forward.4}
  #allocation0 [shape = 'u32[]', space=smem, size = 0x4, offset = 0x4, fixed_abs, tag = 'smem constant byte address 0x4 - core index']
  #allocation1 [shape = 'u32[72,128]{1,0:T(1,128)}', space=vmem, size = 0x9000, scoped, tag = 'internal scratch']
  #allocation2 [shape = 'f32[14,22,128]{2,1,0:T(8,128)}', space=vmem, size = 0x2a000, scoped, tag = 'scratch operand']
  #allocation3 [shape = 'f32[98,16,128]{2,1,0:T(8,128)}', space=vmem, size = 0xc4000, scoped, tag = 'scratch operand']
  #allocation4 [shape = 's32[1]{0}', space=sflag, size = 0x4, scoped, tag = 'scratch operand']
  #allocation5 [shape = 's32[]', space=sflag, size = 0x4, offset = 0, fixed_abs, tag = 'sflag constant byte address 0x0 - dummy sync flag']
  %s0 = inlined_call_operand.vmem [shape: f32[2,22,22,128], index: 0, kind: input, shape index: {}]
  %s1 = inlined_call_operand.vmem [shape: f32[49,128], index: 1, kind: input, shape index: {}]
  %s2 = inlined_call_operand.vmem [shape: f32[1,128], index: 2, kind: input, shape index: {}]
  %s3 = inlined_call_operand.vmem [shape: f32[2,16,16,128], index: 3, kind: output, shape index: {}]
  %s4 = sld [smem:[#allocation0]]
  $region70: #{gnconv_forward.4} parent=0
    _
  %s6 = ssub.s32 1, %s4
  %s7 = scalar_select 0, %s6, %s4
  loop: start=0, step=1, limit=6
  $region2: #{gnconv_forward.4} parent=0 // loop_pre_header
    _
  $region3: #{gnconv_forward.4} parent=0 // loop_header
    %s9 = sphi 0, %s13
    %p10 = scmp.ge.s32.totalorder %s9, 6
    %s16 = sphi 0, %s35
    %s17 = sphi 0, %s31
    %s18 = sphi 0, %s27
    %s19 = sphi 0, %s16
    %s20 = sphi 0, %s17
    %s21 = sphi 0, %s18
    %s22 = sphi 0, %s19
    %s23 = sphi 0, %s20
    %s24 = sphi 0, %s21
    %s38 = sphi 0, %s40
    %s41 = sphi 0, %s38
    %s42 = sphi 0, %s41
    %s58 = sphi 0, %s42
    %s64 = sphi 0, %s66
    %s67 = sphi 0, %s64
    %s68 = sphi 0, %s67
    %s84 = sphi 0, %s68
    %s94 = sphi 0, %s96
    %s97 = sphi 0, %s94
    %s98 = sphi 0, %s97
    %s114 = sphi 0, %s98
  $region4: #{gnconv_forward.4} parent=0 // loop_header_branch
    %12 = sbr.rel (%p10) target = $region8
  $region5: #{gnconv_forward.4} parent=0 // loop_body
    %s14 = ssub.s32 %s9, 1
    %s15 = ssub.s32 %s9, 2
    %s25 = sadd.s32 1, %s18
    %p26 = scmp.ge.s32.totalorder %s25, 1
    %s27 = scalar_select %p26, 0, %s25
    %s28 = sadd.s32 1, %s17
    %s29 = scalar_select %p26, %s28, %s17
    %p30 = scmp.ge.s32.totalorder %s29, 2
    %s31 = scalar_select %p30, 0, %s29
    %s32 = sadd.s32 1, %s16
    %s33 = scalar_select %p30, %s32, %s16
    %p34 = scmp.ge.s32.totalorder %s33, 2
    %s35 = scalar_select %p34, 0, %s33
    %s36 = ssub.s32 %s18, %s27
    %p37 = scmp.eq.s32.totalorder %s36, 0
    %s39 = sadd.s32 %s38, 1
    %s40 = scalar_select %p37, %s38, %s39
    %p43 = pneg %p37
    %p44 = scmp.eq.s32.totalorder %s9, 3
    %p45 = por %p43, %p44
    %p46 = scmp.ne.s32.totalorder %s38, %s41
    %p47 = scmp.eq.s32.totalorder %s9, 0
    %p48 = por %p46, %p47
    %p49 = scmp.ne.s32.totalorder %s38, %s41
    %p50 = scmp.eq.s32.totalorder %s14, 3
    %p51 = por %p49, %p50
    %p52 = scmp.ne.s32.totalorder %s41, %s42
    %p53 = scmp.eq.s32.totalorder %s14, 0
    %p54 = por %p52, %p53
    %p55 = scmp.ne.s32.totalorder %s41, %s42
    %p56 = scmp.eq.s32.totalorder %s15, 3
    %p57 = por %p55, %p56
    %p59 = scmp.ne.s32.totalorder %s42, %s58
    %p60 = scmp.eq.s32.totalorder %s15, 0
    %p61 = por %p59, %p60
    %s62 = ssub.s32 %s18, %s27
    %p63 = scmp.eq.s32.totalorder %s62, 0
    %s65 = sadd.s32 %s64, 1
    %s66 = scalar_select %p63, %s64, %s65
    %p69 = pneg %p63
    %p70 = scmp.eq.s32.totalorder %s9, 3
    %p71 = por %p69, %p70
    %p72 = scmp.ne.s32.totalorder %s64, %s67
    %p73 = scmp.eq.s32.totalorder %s9, 0
    %p74 = por %p72, %p73
    %p75 = scmp.ne.s32.totalorder %s64, %s67
    %p76 = scmp.eq.s32.totalorder %s14, 3
    %p77 = por %p75, %p76
    %p78 = scmp.ne.s32.totalorder %s67, %s68
    %p79 = scmp.eq.s32.totalorder %s14, 0
    %p80 = por %p78, %p79
    %p81 = scmp.ne.s32.totalorder %s67, %s68
    %p82 = scmp.eq.s32.totalorder %s15, 3
    %p83 = por %p81, %p82
    %p85 = scmp.ne.s32.totalorder %s68, %s84
    %p86 = scmp.eq.s32.totalorder %s15, 0
    %p87 = por %p85, %p86
    %s88 = ssub.s32 %s16, %s35
    %s89 = ssub.s32 %s17, %s31
    %s90 = sor.u32 %s88, %s89
    %s91 = ssub.s32 %s18, %s27
    %s92 = sor.u32 %s90, %s91
    %p93 = scmp.eq.s32.totalorder %s92, 0
    %s95 = sadd.s32 %s94, 1
    %s96 = scalar_select %p93, %s94, %s95
    %p99 = pneg %p93
    %p100 = scmp.eq.s32.totalorder %s9, 3
    %p101 = por %p99, %p100
    %p102 = scmp.ne.s32.totalorder %s94, %s97
    %p103 = scmp.eq.s32.totalorder %s9, 0
    %p104 = por %p102, %p103
    %p105 = scmp.ne.s32.totalorder %s94, %s97
    %p106 = scmp.eq.s32.totalorder %s14, 3
    %p107 = por %p105, %p106
    %p108 = scmp.ne.s32.totalorder %s97, %s98
    %p109 = scmp.eq.s32.totalorder %s14, 0
    %p110 = por %p108, %p109
    %p111 = scmp.ne.s32.totalorder %s97, %s98
    %p112 = scmp.eq.s32.totalorder %s15, 3
    %p113 = por %p111, %p112
    %p115 = scmp.ne.s32.totalorder %s98, %s114
    %p116 = scmp.eq.s32.totalorder %s15, 0
    %p117 = por %p115, %p116
    %p118 = scmp.le.s32.totalorder 1, %s9
    %p119 = scmp.lt.s32.totalorder %s9, 5
    %p120 = pnand %p118, %p119
    %p121 = pneg %p120
    // Predicated region
    $region9: #{gnconv_forward.4} parent=5 // pred_check
      _
    $region10: #{gnconv_forward.4} parent=5 // pred_check_branch
      %123 = sbr.rel (%p120) target = $region12
    $region11: #{gnconv_forward.4} parent=5 // pred_region
      %s124 = ssub.s32 %s9, 1
      // Predicated region
      $region13: #{gnconv_forward.4} parent=11 // pred_check
        %p125 = pneg %p54
      $region14: #{gnconv_forward.4} parent=11 // pred_check_branch
        %127 = sbr.rel (%p125) target = $region16
      $region15: #{gnconv_forward.4} parent=11 // pred_region
        %p128 = scmp.lt.s32.totalorder %s21, 0
        %s129 = scalar_select %p128, %s21, 0
        %s130 = smul.addr %s129, 8
        %s131 = scalar_lea.vmem %s1, %s130
      $region16: #{gnconv_forward.4} parent=11 // pred_fallthru
        _
      // Predicated region
      $region17: #{gnconv_forward.4} parent=11 // pred_check
        %p132 = pneg %p80
      $region18: #{gnconv_forward.4} parent=11 // pred_check_branch
        %134 = sbr.rel (%p132) target = $region20
      $region19: #{gnconv_forward.4} parent=11 // pred_region
        %p135 = scmp.lt.s32.totalorder %s21, 0
        %s136 = scalar_select %p135, %s21, 0
        %s137 = scalar_lea.vmem %s2, %s136
      $region20: #{gnconv_forward.4} parent=11 // pred_fallthru
        _
    $region12: #{gnconv_forward.4} parent=5 // pred_fallthru
      _
    %p138 = scmp.lt.s32.totalorder %s9, 4
    // Predicated region
    $region21: #{gnconv_forward.4} parent=5 // pred_check
      %p139 = pneg %p138
    $region22: #{gnconv_forward.4} parent=5 // pred_check_branch
      %141 = sbr.rel (%p139) target = $region24
    $region23: #{gnconv_forward.4} parent=5 // pred_region
      _
    $region24: #{gnconv_forward.4} parent=5 // pred_fallthru
      _
    %p142 = scmp.le.s32.totalorder 1, %s9
    %p143 = scmp.lt.s32.totalorder %s9, 5
    %p144 = pnand %p142, %p143
    %p145 = pneg %p144
    // Predicated region
    $region25: #{gnconv_forward.4} parent=5 // pred_check
      _
    $region26: #{gnconv_forward.4} parent=5 // pred_check_branch
      %147 = sbr.rel (%p144) target = $region28
    $region27: #{gnconv_forward.4} parent=5 // pred_region
      %s148 = ssub.s32 %s9, 1
      %p149 = scmp.lt.s32.totalorder %s21, 0
      %s150 = scalar_select %p149, %s21, 0
      %s151 = smul.addr %s150, 8
      %s152 = scalar_lea.vmem %s1, %s151
      %p153 = pneg %p54
      %p154 = pneg %p51
      %p155 = scmp.lt.s32.totalorder %s21, 0
      %s156 = scalar_select %p155, %s21, 0
      %s157 = scalar_lea.vmem %s2, %s156
      %p158 = pneg %p80
      %p159 = pneg %p77
      %p160 = pneg %p110
      %p161 = pneg %p107
      %s162 = smul.u32 8, %s20
      %p163 = scmp.lt.s32.totalorder %s19, 1
      %s164 = scalar_select %p163, %s19, 1
      %p165 = scmp.lt.s32.totalorder %s162, 15
      %s166 = scalar_select %p165, %s162, 15
      %p167 = scmp.lt.s32.totalorder %s21, 0
      %s168 = scalar_select %p167, %s21, 0
      %s169 = smul.addr %s166, 2
      %s170 = sadd.s32 %s168, %s169
      %s171 = smul.addr %s164, 32
      %s172 = sadd.s32 %s170, %s171
      %s173 = smul.addr %s172, 8
      %s174 = scalar_lea.vmem %s3, %s173
      %p175 = scmp.lt.s32.totalorder %s21, 0
      %s176 = scalar_select %p175, %s21, 0
      %s177 = smul.addr %s176, 8
      %s178 = scalar_lea.vmem %s1, %s177
      %p179 = scmp.lt.s32.totalorder %s21, 0
      %s180 = scalar_select %p179, %s21, 0
      %s181 = scalar_lea.vmem %s2, %s180
      %s182 = smul.u32 8, %s20
      %p183 = scmp.lt.s32.totalorder %s19, 1
      %s184 = scalar_select %p183, %s19, 1
      %p185 = scmp.lt.s32.totalorder %s182, 15
      %s186 = scalar_select %p185, %s182, 15
      %p187 = scmp.lt.s32.totalorder %s21, 0
      %s188 = scalar_select %p187, %s21, 0
      %s189 = smul.addr %s186, 2
      %s190 = sadd.s32 %s188, %s189
      %s191 = smul.addr %s184, 32
      %s192 = sadd.s32 %s190, %s191
      %s193 = smul.addr %s192, 8
      %s194 = scalar_lea.vmem %s3, %s193
      %s195 = smul.u32 8, %s20
      %s196 = smul.u32 %s20, 8
      %s197 = smul.u32 %s21, 128
      %s198 = sshra.s32 %s197, 7
      %s199 = sand.u32 %s197, 127
      %s200 = smul.u32 %s196, 24
      %s201 = sadd.s32 %s198, %s200
      %s202 = smul.u32 %s19, 528
      %s203 = sadd.s32 %s201, %s202
      %s204 = scalar_lea.vmem %s0, %s203
      // Predicated region
      $region29: #{gnconv_forward.4} parent=27 // pred_check
        _
      $region30: #{gnconv_forward.4} parent=27 // pred_check_branch
        %206 = sbr.rel (0) target = $region32
      $region31: #{gnconv_forward.4} parent=27 // pred_region
        %s207 = scalar_lea.vmem %s204, 16
        %s208 = scalar_lea.vmem [#allocation2], 16
        loop: start=0, step=1, limit=1
        $region33: #{gnconv_forward.4} parent=31 // loop_pre_header
          _
        $region34: #{gnconv_forward.4} parent=31 // loop_header
          %s210 = sphi 0, %s214
          %p211 = scmp.ge.s32.totalorder %s210, 1
          %s215 = sphi %s204, %s204
          %s216 = sphi [#allocation2], [#allocation2]
        $region35: #{gnconv_forward.4} parent=31 // loop_header_branch
          %213 = sbr.rel (%p211) target = $region39
        $region36: #{gnconv_forward.4} parent=31 // loop_body
          %v217 = vld [vmem:[%s215] sm:$0xff]
          %218 = vst [vmem:[%s216] sm:$0xff] %v217
          %v219 = vld [vmem:[%s215 + $0x8] sm:$0xff]
          %220 = vst [vmem:[%s216 + $0x8] sm:$0xff] %v219
          %v221 = vld [vmem:[%s215 + $0x18] sm:$0xff]
          %222 = vst [vmem:[%s216 + $0x18] sm:$0xff] %v221
          %v223 = vld [vmem:[%s215 + $0x20] sm:$0xff]
          %224 = vst [vmem:[%s216 + $0x20] sm:$0xff] %v223
          %v225 = vld [vmem:[%s215 + $0x30] sm:$0xff]
          %226 = vst [vmem:[%s216 + $0x30] sm:$0xff] %v225
          %v227 = vld [vmem:[%s215 + $0x38] sm:$0xff]
          %228 = vst [vmem:[%s216 + $0x38] sm:$0xff] %v227
          %v229 = vld [vmem:[%s215 + $0x48] sm:$0xff]
          %230 = vst [vmem:[%s216 + $0x48] sm:$0xff] %v229
          %v231 = vld [vmem:[%s215 + $0x50] sm:$0xff]
          %232 = vst [vmem:[%s216 + $0x50] sm:$0xff] %v231
          %v233 = vld [vmem:[%s215 + $0x60] sm:$0xff]
          %234 = vst [vmem:[%s216 + $0x60] sm:$0xff] %v233
          %v235 = vld [vmem:[%s215 + $0x68] sm:$0xff]
          %236 = vst [vmem:[%s216 + $0x68] sm:$0xff] %v235
          %v237 = vld [vmem:[%s215 + $0x78] sm:$0xff]
          %238 = vst [vmem:[%s216 + $0x78] sm:$0xff] %v237
          %v239 = vld [vmem:[%s215 + $0x80] sm:$0xff]
          %240 = vst [vmem:[%s216 + $0x80] sm:$0xff] %v239
          %v241 = vld [vmem:[%s215 + $0x90] sm:$0xff]
          %242 = vst [vmem:[%s216 + $0x90] sm:$0xff] %v241
          %v243 = vld [vmem:[%s215 + $0x98] sm:$0xff]
          %244 = vst [vmem:[%s216 + $0x98] sm:$0xff] %v243
          %v245 = vld [vmem:[%s215 + $0xa8] sm:$0xff]
          %246 = vst [vmem:[%s216 + $0xa8] sm:$0xff] %v245
          %v247 = vld [vmem:[%s215 + $0xb0] sm:$0xff]
          %248 = vst [vmem:[%s216 + $0xb0] sm:$0xff] %v247
          %v249 = vld [vmem:[%s215 + $0xc0] sm:$0xff]
          %250 = vst [vmem:[%s216 + $0xc0] sm:$0xff] %v249
          %v251 = vld [vmem:[%s215 + $0xc8] sm:$0xff]
          %252 = vst [vmem:[%s216 + $0xc8] sm:$0xff] %v251
          %v253 = vld [vmem:[%s215 + $0xd8] sm:$0xff]
          %254 = vst [vmem:[%s216 + $0xd8] sm:$0xff] %v253
          %v255 = vld [vmem:[%s215 + $0xe0] sm:$0xff]
          %256 = vst [vmem:[%s216 + $0xe0] sm:$0xff] %v255
          %v257 = vld [vmem:[%s215 + $0xf0] sm:$0xff]
          %258 = vst [vmem:[%s216 + $0xf0] sm:$0xff] %v257
          %v259 = vld [vmem:[%s215 + $0xf8] sm:$0xff]
          %260 = vst [vmem:[%s216 + $0xf8] sm:$0xff] %v259
          %v261 = vld [vmem:[%s215 + $0x108] sm:$0xff]
          %262 = vst [vmem:[%s216 + $0x108] sm:$0xff] %v261
          %v263 = vld [vmem:[%s215 + $0x110] sm:$0xff]
          %264 = vst [vmem:[%s216 + $0x110] sm:$0xff] %v263
          %v265 = vld [vmem:[%s215 + $0x120] sm:$0xff]
          %266 = vst [vmem:[%s216 + $0x120] sm:$0xff] %v265
          %v267 = vld [vmem:[%s215 + $0x128] sm:$0xff]
          %268 = vst [vmem:[%s216 + $0x128] sm:$0xff] %v267
          %v269 = vld [vmem:[%s215 + $0x138] sm:$0xff]
          %270 = vst [vmem:[%s216 + $0x138] sm:$0xff] %v269
          %v271 = vld [vmem:[%s215 + $0x140] sm:$0xff]
          %272 = vst [vmem:[%s216 + $0x140] sm:$0xff] %v271
        $region37: #{gnconv_forward.4} parent=31 // loop_footer
          %s214 = sadd.s32 1, %s210
        $region38: #{gnconv_forward.4} parent=31 // loop_footer_branch
          %209 = sbr.rel target = $region34
        $region39: #{gnconv_forward.4} parent=31 // loop_exit
          _
        %s274 = ssub.s32 64, 1
        loop: start=0, step=1, limit=1
        $region40: #{gnconv_forward.4} parent=31 // loop_pre_header
          _
        $region41: #{gnconv_forward.4} parent=31 // loop_header
          %s276 = sphi 0, %s280
          %p277 = scmp.ge.s32.totalorder %s276, 1
          %s281 = sphi %s207, %s207
          %s282 = sphi %s208, %s208
        $region42: #{gnconv_forward.4} parent=31 // loop_header_branch
          %279 = sbr.rel (%p277) target = $region46
        $region43: #{gnconv_forward.4} parent=31 // loop_body
          %v283 = vld [vmem:[%s281] sm:%s274]
          %284 = vst [vmem:[%s282] sm:%s274] %v283
          %v285 = vld [vmem:[%s281 + $0x18] sm:%s274]
          %286 = vst [vmem:[%s282 + $0x18] sm:%s274] %v285
          %v287 = vld [vmem:[%s281 + $0x30] sm:%s274]
          %288 = vst [vmem:[%s282 + $0x30] sm:%s274] %v287
          %v289 = vld [vmem:[%s281 + $0x48] sm:%s274]
          %290 = vst [vmem:[%s282 + $0x48] sm:%s274] %v289
          %v291 = vld [vmem:[%s281 + $0x60] sm:%s274]
          %292 = vst [vmem:[%s282 + $0x60] sm:%s274] %v291
          %v293 = vld [vmem:[%s281 + $0x78] sm:%s274]
          %294 = vst [vmem:[%s282 + $0x78] sm:%s274] %v293
          %v295 = vld [vmem:[%s281 + $0x90] sm:%s274]
          %296 = vst [vmem:[%s282 + $0x90] sm:%s274] %v295
          %v297 = vld [vmem:[%s281 + $0xa8] sm:%s274]
          %298 = vst [vmem:[%s282 + $0xa8] sm:%s274] %v297
          %v299 = vld [vmem:[%s281 + $0xc0] sm:%s274]
          %300 = vst [vmem:[%s282 + $0xc0] sm:%s274] %v299
          %v301 = vld [vmem:[%s281 + $0xd8] sm:%s274]
          %302 = vst [vmem:[%s282 + $0xd8] sm:%s274] %v301
          %v303 = vld [vmem:[%s281 + $0xf0] sm:%s274]
          %304 = vst [vmem:[%s282 + $0xf0] sm:%s274] %v303
          %v305 = vld [vmem:[%s281 + $0x108] sm:%s274]
          %306 = vst [vmem:[%s282 + $0x108] sm:%s274] %v305
          %v307 = vld [vmem:[%s281 + $0x120] sm:%s274]
          %308 = vst [vmem:[%s282 + $0x120] sm:%s274] %v307
          %v309 = vld [vmem:[%s281 + $0x138] sm:%s274]
          %310 = vst [vmem:[%s282 + $0x138] sm:%s274] %v309
        $region44: #{gnconv_forward.4} parent=31 // loop_footer
          %s280 = sadd.s32 1, %s276
        $region45: #{gnconv_forward.4} parent=31 // loop_footer_branch
          %275 = sbr.rel target = $region41
        $region46: #{gnconv_forward.4} parent=31 // loop_exit
          _
      $region32: #{gnconv_forward.4} parent=27 // pred_fallthru
        _
      // Predicated region
      $region47: #{gnconv_forward.4} parent=27 // pred_check
        _
      $region48: #{gnconv_forward.4} parent=27 // pred_check_branch
        %313 = sbr.rel (0) target = $region50
      $region49: #{gnconv_forward.4} parent=27 // pred_region
        %314 = vsyncadd [#allocation4], 4928
      $region50: #{gnconv_forward.4} parent=27 // pred_fallthru
        _
      %s315 = smul.u32 14, 22
      %s316 = smul.u32 %s315, 1
      %s317 = sshll.u32 %s316, 4
      %318 = dma.done [#allocation4], %s317
      %v319 = vld [vmem:[#allocation2] sm:$0xff]
      %v320 = vld [vmem:[#allocation2 + $0x8] sm:$0xff]
      %v321 = vld [vmem:[#allocation2 + $0x18] sm:$0xff]
      %v322 = vld [vmem:[#allocation2 + $0x20] sm:$0xff]
      %v323 = vld [vmem:[#allocation2 + $0x30] sm:$0xff]
      %v324 = vld [vmem:[#allocation2 + $0x38] sm:$0xff]
      %v325 = vld [vmem:[#allocation2 + $0x48] sm:$0xff]
      %v326 = vld [vmem:[#allocation2 + $0x50] sm:$0xff]
      %v327 = vld [vmem:[#allocation2 + $0x60] sm:$0xff]
      %v328 = vld [vmem:[#allocation2 + $0x68] sm:$0xff]
      %v329 = vld [vmem:[#allocation2 + $0x78] sm:$0xff]
      %v330 = vld [vmem:[#allocation2 + $0x80] sm:$0xff]
      %v331 = vld [vmem:[#allocation2 + $0x90] sm:$0xff]
      %v332 = vld [vmem:[#allocation2 + $0x98] sm:$0xff]
      %v333 = vld [vmem:[#allocation2 + $0xa8] sm:$0xff]
      %v334 = vld [vmem:[#allocation2 + $0xb0] sm:$0xff]
      %v335 = vld [vmem:[#allocation2 + $0xc0] sm:$0xff]
      %v336 = vld [vmem:[#allocation2 + $0xc8] sm:$0xff]
      %v337 = vld [vmem:[#allocation2 + $0xd8] sm:$0xff]
      %v338 = vld [vmem:[#allocation2 + $0xe0] sm:$0xff]
      %v339 = vld [vmem:[#allocation2 + $0xf0] sm:$0xff]
      %v340 = vld [vmem:[#allocation2 + $0xf8] sm:$0xff]
      %v341 = vld [vmem:[#allocation2 + $0x108] sm:$0xff]
      %v342 = vld [vmem:[#allocation2 + $0x110] sm:$0xff]
      %v343 = vld [vmem:[#allocation2 + $0x120] sm:$0xff]
      %v344 = vld [vmem:[#allocation2 + $0x128] sm:$0xff]
      %v345 = vld [vmem:[#allocation2 + $0x138] sm:$0xff]
      %v346 = vld [vmem:[#allocation2 + $0x140] sm:$0xff]
      %347 = vst [vmem:[#allocation3] sm:$0xff] %v319
      %348 = vst [vmem:[#allocation3 + $0x8] sm:$0xff] %v320
      %349 = vst [vmem:[#allocation3 + $0x10] sm:$0xff] %v321
      %350 = vst [vmem:[#allocation3 + $0x18] sm:$0xff] %v322
      %351 = vst [vmem:[#allocation3 + $0x20] sm:$0xff] %v323
      %352 = vst [vmem:[#allocation3 + $0x28] sm:$0xff] %v324
      %353 = vst [vmem:[#allocation3 + $0x30] sm:$0xff] %v325
      %354 = vst [vmem:[#allocation3 + $0x38] sm:$0xff] %v326
      %355 = vst [vmem:[#allocation3 + $0x40] sm:$0xff] %v327
      %356 = vst [vmem:[#allocation3 + $0x48] sm:$0xff] %v328
      %357 = vst [vmem:[#allocation3 + $0x50] sm:$0xff] %v329
      %358 = vst [vmem:[#allocation3 + $0x58] sm:$0xff] %v330
      %359 = vst [vmem:[#allocation3 + $0x60] sm:$0xff] %v331
      %360 = vst [vmem:[#allocation3 + $0x68] sm:$0xff] %v332
      %361 = vst [vmem:[#allocation3 + $0x70] sm:$0xff] %v333
      %362 = vst [vmem:[#allocation3 + $0x78] sm:$0xff] %v334
      %363 = vst [vmem:[#allocation3 + $0x80] sm:$0xff] %v335
      %364 = vst [vmem:[#allocation3 + $0x88] sm:$0xff] %v336
      %365 = vst [vmem:[#allocation3 + $0x90] sm:$0xff] %v337
      %366 = vst [vmem:[#allocation3 + $0x98] sm:$0xff] %v338
      %367 = vst [vmem:[#allocation3 + $0xa0] sm:$0xff] %v339
      %368 = vst [vmem:[#allocation3 + $0xa8] sm:$0xff] %v340
      %369 = vst [vmem:[#allocation3 + $0xb0] sm:$0xff] %v341
      %370 = vst [vmem:[#allocation3 + $0xb8] sm:$0xff] %v342
      %371 = vst [vmem:[#allocation3 + $0xc0] sm:$0xff] %v343
      %372 = vst [vmem:[#allocation3 + $0xc8] sm:$0xff] %v344
      %373 = vst [vmem:[#allocation3 + $0xd0] sm:$0xff] %v345
      %374 = vst [vmem:[#allocation3 + $0xd8] sm:$0xff] %v346
      %v375 = vld [vmem:[#allocation2 + $0x1] sm:$0xff]
      %v376 = vld [vmem:[#allocation2 + $0x9] sm:$0xff]
      %v377 = vld [vmem:[#allocation2 + $0x19] sm:$0xff]
      %v378 = vld [vmem:[#allocation2 + $0x21] sm:$0xff]
      %v379 = vld [vmem:[#allocation2 + $0x31] sm:$0xff]
      %v380 = vld [vmem:[#allocation2 + $0x39] sm:$0xff]
      %v381 = vld [vmem:[#allocation2 + $0x49] sm:$0xff]
      %v382 = vld [vmem:[#allocation2 + $0x51] sm:$0xff]
      %v383 = vld [vmem:[#allocation2 + $0x61] sm:$0xff]
      %v384 = vld [vmem:[#allocation2 + $0x69] sm:$0xff]
      %v385 = vld [vmem:[#allocation2 + $0x79] sm:$0xff]
      %v386 = vld [vmem:[#allocation2 + $0x81] sm:$0xff]
      %v387 = vld [vmem:[#allocation2 + $0x91] sm:$0xff]
      %v388 = vld [vmem:[#allocation2 + $0x99] sm:$0xff]
      %v389 = vld [vmem:[#allocation2 + $0xa9] sm:$0xff]
      %v390 = vld [vmem:[#allocation2 + $0xb1] sm:$0xff]
      %v391 = vld [vmem:[#allocation2 + $0xc1] sm:$0xff]
      %v392 = vld [vmem:[#allocation2 + $0xc9] sm:$0xff]
      %v393 = vld [vmem:[#allocation2 + $0xd9] sm:$0xff]
      %v394 = vld [vmem:[#allocation2 + $0xe1] sm:$0xff]
      %v395 = vld [vmem:[#allocation2 + $0xf1] sm:$0xff]
      %v396 = vld [vmem:[#allocation2 + $0xf9] sm:$0xff]
      %v397 = vld [vmem:[#allocation2 + $0x109] sm:$0xff]
      %v398 = vld [vmem:[#allocation2 + $0x111] sm:$0xff]
      %v399 = vld [vmem:[#allocation2 + $0x121] sm:$0xff]
      %v400 = vld [vmem:[#allocation2 + $0x129] sm:$0xff]
      %v401 = vld [vmem:[#allocation2 + $0x139] sm:$0xff]
      %v402 = vld [vmem:[#allocation2 + $0x141] sm:$0xff]
      %s403 = scalar_lea.vmem [#allocation3], 224
      %404 = vst [vmem:[%s403] sm:$0xff] %v375
      %405 = vst [vmem:[%s403 + $0x8] sm:$0xff] %v376
      %406 = vst [vmem:[%s403 + $0x10] sm:$0xff] %v377
      %407 = vst [vmem:[%s403 + $0x18] sm:$0xff] %v378
      %408 = vst [vmem:[%s403 + $0x20] sm:$0xff] %v379
      %409 = vst [vmem:[%s403 + $0x28] sm:$0xff] %v380
      %410 = vst [vmem:[%s403 + $0x30] sm:$0xff] %v381
      %411 = vst [vmem:[%s403 + $0x38] sm:$0xff] %v382
      %412 = vst [vmem:[%s403 + $0x40] sm:$0xff] %v383
      %413 = vst [vmem:[%s403 + $0x48] sm:$0xff] %v384
      %414 = vst [vmem:[%s403 + $0x50] sm:$0xff] %v385
      %415 = vst [vmem:[%s403 + $0x58] sm:$0xff] %v386
      %416 = vst [vmem:[%s403 + $0x60] sm:$0xff] %v387
      %417 = vst [vmem:[%s403 + $0x68] sm:$0xff] %v388
      %418 = vst [vmem:[%s403 + $0x70] sm:$0xff] %v389
      %419 = vst [vmem:[%s403 + $0x78] sm:$0xff] %v390
      %420 = vst [vmem:[%s403 + $0x80] sm:$0xff] %v391
      %421 = vst [vmem:[%s403 + $0x88] sm:$0xff] %v392
      %422 = vst [vmem:[%s403 + $0x90] sm:$0xff] %v393
      %423 = vst [vmem:[%s403 + $0x98] sm:$0xff] %v394
      %424 = vst [vmem:[%s403 + $0xa0] sm:$0xff] %v395
      %425 = vst [vmem:[%s403 + $0xa8] sm:$0xff] %v396
      %426 = vst [vmem:[%s403 + $0xb0] sm:$0xff] %v397
      %427 = vst [vmem:[%s403 + $0xb8] sm:$0xff] %v398
      %428 = vst [vmem:[%s403 + $0xc0] sm:$0xff] %v399
      %429 = vst [vmem:[%s403 + $0xc8] sm:$0xff] %v400
      %430 = vst [vmem:[%s403 + $0xd0] sm:$0xff] %v401
      %431 = vst [vmem:[%s403 + $0xd8] sm:$0xff] %v402
      %v432 = vld [vmem:[#allocation2 + $0x2] sm:$0xff]
      %v433 = vld [vmem:[#allocation2 + $0xa] sm:$0xff]
      %v434 = vld [vmem:[#allocation2 + $0x1a] sm:$0xff]
      %v435 = vld [vmem:[#allocation2 + $0x22] sm:$0xff]
      %v436 = vld [vmem:[#allocation2 + $0x32] sm:$0xff]
      %v437 = vld [vmem:[#allocation2 + $0x3a] sm:$0xff]
      %v438 = vld [vmem:[#allocation2 + $0x4a] sm:$0xff]
      %v439 = vld [vmem:[#allocation2 + $0x52] sm:$0xff]
      %v440 = vld [vmem:[#allocation2 + $0x62] sm:$0xff]
      %v441 = vld [vmem:[#allocation2 + $0x6a] sm:$0xff]
      %v442 = vld [vmem:[#allocation2 + $0x7a] sm:$0xff]
      %v443 = vld [vmem:[#allocation2 + $0x82] sm:$0xff]
      %v444 = vld [vmem:[#allocation2 + $0x92] sm:$0xff]
      %v445 = vld [vmem:[#allocation2 + $0x9a] sm:$0xff]
      %v446 = vld [vmem:[#allocation2 + $0xaa] sm:$0xff]
      %v447 = vld [vmem:[#allocation2 + $0xb2] sm:$0xff]
      %v448 = vld [vmem:[#allocation2 + $0xc2] sm:$0xff]
      %v449 = vld [vmem:[#allocation2 + $0xca] sm:$0xff]
      %v450 = vld [vmem:[#allocation2 + $0xda] sm:$0xff]
      %v451 = vld [vmem:[#allocation2 + $0xe2] sm:$0xff]
      %v452 = vld [vmem:[#allocation2 + $0xf2] sm:$0xff]
      %v453 = vld [vmem:[#allocation2 + $0xfa] sm:$0xff]
      %v454 = vld [vmem:[#allocation2 + $0x10a] sm:$0xff]
      %v455 = vld [vmem:[#allocation2 + $0x112] sm:$0xff]
      %v456 = vld [vmem:[#allocation2 + $0x122] sm:$0xff]
      %v457 = vld [vmem:[#allocation2 + $0x12a] sm:$0xff]
      %v458 = vld [vmem:[#allocation2 + $0x13a] sm:$0xff]
      %v459 = vld [vmem:[#allocation2 + $0x142] sm:$0xff]
      %s460 = scalar_lea.vmem [#allocation3], 448
      %461 = vst [vmem:[%s460] sm:$0xff] %v432
      %462 = vst [vmem:[%s460 + $0x8] sm:$0xff] %v433
      %463 = vst [vmem:[%s460 + $0x10] sm:$0xff] %v434
      %464 = vst [vmem:[%s460 + $0x18] sm:$0xff] %v435
      %465 = vst [vmem:[%s460 + $0x20] sm:$0xff] %v436
      %466 = vst [vmem:[%s460 + $0x28] sm:$0xff] %v437
      %467 = vst [vmem:[%s460 + $0x30] sm:$0xff] %v438
      %468 = vst [vmem:[%s460 + $0x38] sm:$0xff] %v439
      %469 = vst [vmem:[%s460 + $0x40] sm:$0xff] %v440
      %470 = vst [vmem:[%s460 + $0x48] sm:$0xff] %v441
      %471 = vst [vmem:[%s460 + $0x50] sm:$0xff] %v442
      %472 = vst [vmem:[%s460 + $0x58] sm:$0xff] %v443
      %473 = vst [vmem:[%s460 + $0x60] sm:$0xff] %v444
      %474 = vst [vmem:[%s460 + $0x68] sm:$0xff] %v445
      %475 = vst [vmem:[%s460 + $0x70] sm:$0xff] %v446
      %476 = vst [vmem:[%s460 + $0x78] sm:$0xff] %v447
      %477 = vst [vmem:[%s460 + $0x80] sm:$0xff] %v448
      %478 = vst [vmem:[%s460 + $0x88] sm:$0xff] %v449
      %479 = vst [vmem:[%s460 + $0x90] sm:$0xff] %v450
      %480 = vst [vmem:[%s460 + $0x98] sm:$0xff] %v451
      %481 = vst [vmem:[%s460 + $0xa0] sm:$0xff] %v452
      %482 = vst [vmem:[%s460 + $0xa8] sm:$0xff] %v453
      %483 = vst [vmem:[%s460 + $0xb0] sm:$0xff] %v454
      %484 = vst [vmem:[%s460 + $0xb8] sm:$0xff] %v455
      %485 = vst [vmem:[%s460 + $0xc0] sm:$0xff] %v456
      %486 = vst [vmem:[%s460 + $0xc8] sm:$0xff] %v457
      %487 = vst [vmem:[%s460 + $0xd0] sm:$0xff] %v458
      %488 = vst [vmem:[%s460 + $0xd8] sm:$0xff] %v459
      %v489 = vld [vmem:[#allocation2 + $0x3] sm:$0xff]
      %v490 = vld [vmem:[#allocation2 + $0xb] sm:$0xff]
      %v491 = vld [vmem:[#allocation2 + $0x1b] sm:$0xff]
      %v492 = vld [vmem:[#allocation2 + $0x23] sm:$0xff]
      %v493 = vld [vmem:[#allocation2 + $0x33] sm:$0xff]
      %v494 = vld [vmem:[#allocation2 + $0x3b] sm:$0xff]
      %v495 = vld [vmem:[#allocation2 + $0x4b] sm:$0xff]
      %v496 = vld [vmem:[#allocation2 + $0x53] sm:$0xff]
      %v497 = vld [vmem:[#allocation2 + $0x63] sm:$0xff]
      %v498 = vld [vmem:[#allocation2 + $0x6b] sm:$0xff]
      %v499 = vld [vmem:[#allocation2 + $0x7b] sm:$0xff]
      %v500 = vld [vmem:[#allocation2 + $0x83] sm:$0xff]
      %v501 = vld [vmem:[#allocation2 + $0x93] sm:$0xff]
      %v502 = vld [vmem:[#allocation2 + $0x9b] sm:$0xff]
      %v503 = vld [vmem:[#allocation2 + $0xab] sm:$0xff]
      %v504 = vld [vmem:[#allocation2 + $0xb3] sm:$0xff]
      %v505 = vld [vmem:[#allocation2 + $0xc3] sm:$0xff]
      %v506 = vld [vmem:[#allocation2 + $0xcb] sm:$0xff]
      %v507 = vld [vmem:[#allocation2 + $0xdb] sm:$0xff]
      %v508 = vld [vmem:[#allocation2 + $0xe3] sm:$0xff]
      %v509 = vld [vmem:[#allocation2 + $0xf3] sm:$0xff]
      %v510 = vld [vmem:[#allocation2 + $0xfb] sm:$0xff]
      %v511 = vld [vmem:[#allocation2 + $0x10b] sm:$0xff]
      %v512 = vld [vmem:[#allocation2 + $0x113] sm:$0xff]
      %v513 = vld [vmem:[#allocation2 + $0x123] sm:$0xff]
      %v514 = vld [vmem:[#allocation2 + $0x12b] sm:$0xff]
      %v515 = vld [vmem:[#allocation2 + $0x13b] sm:$0xff]
      %v516 = vld [vmem:[#allocation2 + $0x143] sm:$0xff]
      %s517 = scalar_lea.vmem [#allocation3], 672
      %518 = vst [vmem:[%s517] sm:$0xff] %v489
      %519 = vst [vmem:[%s517 + $0x8] sm:$0xff] %v490
      %520 = vst [vmem:[%s517 + $0x10] sm:$0xff] %v491
      %521 = vst [vmem:[%s517 + $0x18] sm:$0xff] %v492
      %522 = vst [vmem:[%s517 + $0x20] sm:$0xff] %v493
      %523 = vst [vmem:[%s517 + $0x28] sm:$0xff] %v494
      %524 = vst [vmem:[%s517 + $0x30] sm:$0xff] %v495
      %525 = vst [vmem:[%s517 + $0x38] sm:$0xff] %v496
      %526 = vst [vmem:[%s517 + $0x40] sm:$0xff] %v497
      %527 = vst [vmem:[%s517 + $0x48] sm:$0xff] %v498
      %528 = vst [vmem:[%s517 + $0x50] sm:$0xff] %v499
      %529 = vst [vmem:[%s517 + $0x58] sm:$0xff] %v500
      %530 = vst [vmem:[%s517 + $0x60] sm:$0xff] %v501
      %531 = vst [vmem:[%s517 + $0x68] sm:$0xff] %v502
      %532 = vst [vmem:[%s517 + $0x70] sm:$0xff] %v503
      %533 = vst [vmem:[%s517 + $0x78] sm:$0xff] %v504
      %534 = vst [vmem:[%s517 + $0x80] sm:$0xff] %v505
      %535 = vst [vmem:[%s517 + $0x88] sm:$0xff] %v506
      %536 = vst [vmem:[%s517 + $0x90] sm:$0xff] %v507
      %537 = vst [vmem:[%s517 + $0x98] sm:$0xff] %v508
      %538 = vst [vmem:[%s517 + $0xa0] sm:$0xff] %v509
      %539 = vst [vmem:[%s517 + $0xa8] sm:$0xff] %v510
      %540 = vst [vmem:[%s517 + $0xb0] sm:$0xff] %v511
      %541 = vst [vmem:[%s517 + $0xb8] sm:$0xff] %v512
      %542 = vst [vmem:[%s517 + $0xc0] sm:$0xff] %v513
      %543 = vst [vmem:[%s517 + $0xc8] sm:$0xff] %v514
      %544 = vst [vmem:[%s517 + $0xd0] sm:$0xff] %v515
      %545 = vst [vmem:[%s517 + $0xd8] sm:$0xff] %v516
      %v546 = vld [vmem:[#allocation2 + $0x4] sm:$0xff]
      %v547 = vld [vmem:[#allocation2 + $0xc] sm:$0xff]
      %v548 = vld [vmem:[#allocation2 + $0x1c] sm:$0xff]
      %v549 = vld [vmem:[#allocation2 + $0x24] sm:$0xff]
      %v550 = vld [vmem:[#allocation2 + $0x34] sm:$0xff]
      %v551 = vld [vmem:[#allocation2 + $0x3c] sm:$0xff]
      %v552 = vld [vmem:[#allocation2 + $0x4c] sm:$0xff]
      %v553 = vld [vmem:[#allocation2 + $0x54] sm:$0xff]
      %v554 = vld [vmem:[#allocation2 + $0x64] sm:$0xff]
      %v555 = vld [vmem:[#allocation2 + $0x6c] sm:$0xff]
      %v556 = vld [vmem:[#allocation2 + $0x7c] sm:$0xff]
      %v557 = vld [vmem:[#allocation2 + $0x84] sm:$0xff]
      %v558 = vld [vmem:[#allocation2 + $0x94] sm:$0xff]
      %v559 = vld [vmem:[#allocation2 + $0x9c] sm:$0xff]
      %v560 = vld [vmem:[#allocation2 + $0xac] sm:$0xff]
      %v561 = vld [vmem:[#allocation2 + $0xb4] sm:$0xff]
      %v562 = vld [vmem:[#allocation2 + $0xc4] sm:$0xff]
      %v563 = vld [vmem:[#allocation2 + $0xcc] sm:$0xff]
      %v564 = vld [vmem:[#allocation2 + $0xdc] sm:$0xff]
      %v565 = vld [vmem:[#allocation2 + $0xe4] sm:$0xff]
      %v566 = vld [vmem:[#allocation2 + $0xf4] sm:$0xff]
      %v567 = vld [vmem:[#allocation2 + $0xfc] sm:$0xff]
      %v568 = vld [vmem:[#allocation2 + $0x10c] sm:$0xff]
      %v569 = vld [vmem:[#allocation2 + $0x114] sm:$0xff]
      %v570 = vld [vmem:[#allocation2 + $0x124] sm:$0xff]
      %v571 = vld [vmem:[#allocation2 + $0x12c] sm:$0xff]
      %v572 = vld [vmem:[#allocation2 + $0x13c] sm:$0xff]
      %v573 = vld [vmem:[#allocation2 + $0x144] sm:$0xff]
      %s574 = scalar_lea.vmem [#allocation3], 896
      %575 = vst [vmem:[%s574] sm:$0xff] %v546
      %576 = vst [vmem:[%s574 + $0x8] sm:$0xff] %v547
      %577 = vst [vmem:[%s574 + $0x10] sm:$0xff] %v548
      %578 = vst [vmem:[%s574 + $0x18] sm:$0xff] %v549
      %579 = vst [vmem:[%s574 + $0x20] sm:$0xff] %v550
      %580 = vst [vmem:[%s574 + $0x28] sm:$0xff] %v551
      %581 = vst [vmem:[%s574 + $0x30] sm:$0xff] %v552
      %582 = vst [vmem:[%s574 + $0x38] sm:$0xff] %v553
      %583 = vst [vmem:[%s574 + $0x40] sm:$0xff] %v554
      %584 = vst [vmem:[%s574 + $0x48] sm:$0xff] %v555
      %585 = vst [vmem:[%s574 + $0x50] sm:$0xff] %v556
      %586 = vst [vmem:[%s574 + $0x58] sm:$0xff] %v557
      %587 = vst [vmem:[%s574 + $0x60] sm:$0xff] %v558
      %588 = vst [vmem:[%s574 + $0x68] sm:$0xff] %v559
      %589 = vst [vmem:[%s574 + $0x70] sm:$0xff] %v560
      %590 = vst [vmem:[%s574 + $0x78] sm:$0xff] %v561
      %591 = vst [vmem:[%s574 + $0x80] sm:$0xff] %v562
      %592 = vst [vmem:[%s574 + $0x88] sm:$0xff] %v563
      %593 = vst [vmem:[%s574 + $0x90] sm:$0xff] %v564
      %594 = vst [vmem:[%s574 + $0x98] sm:$0xff] %v565
      %595 = vst [vmem:[%s574 + $0xa0] sm:$0xff] %v566
      %596 = vst [vmem:[%s574 + $0xa8] sm:$0xff] %v567
      %597 = vst [vmem:[%s574 + $0xb0] sm:$0xff] %v568
      %598 = vst [vmem:[%s574 + $0xb8] sm:$0xff] %v569
      %599 = vst [vmem:[%s574 + $0xc0] sm:$0xff] %v570
      %600 = vst [vmem:[%s574 + $0xc8] sm:$0xff] %v571
      %601 = vst [vmem:[%s574 + $0xd0] sm:$0xff] %v572
      %602 = vst [vmem:[%s574 + $0xd8] sm:$0xff] %v573
      %v603 = vld [vmem:[#allocation2 + $0x5] sm:$0xff]
      %v604 = vld [vmem:[#allocation2 + $0xd] sm:$0xff]
      %v605 = vld [vmem:[#allocation2 + $0x1d] sm:$0xff]
      %v606 = vld [vmem:[#allocation2 + $0x25] sm:$0xff]
      %v607 = vld [vmem:[#allocation2 + $0x35] sm:$0xff]
      %v608 = vld [vmem:[#allocation2 + $0x3d] sm:$0xff]
      %v609 = vld [vmem:[#allocation2 + $0x4d] sm:$0xff]
      %v610 = vld [vmem:[#allocation2 + $0x55] sm:$0xff]
      %v611 = vld [vmem:[#allocation2 + $0x65] sm:$0xff]
      %v612 = vld [vmem:[#allocation2 + $0x6d] sm:$0xff]
      %v613 = vld [vmem:[#allocation2 + $0x7d] sm:$0xff]
      %v614 = vld [vmem:[#allocation2 + $0x85] sm:$0xff]
      %v615 = vld [vmem:[#allocation2 + $0x95] sm:$0xff]
      %v616 = vld [vmem:[#allocation2 + $0x9d] sm:$0xff]
      %v617 = vld [vmem:[#allocation2 + $0xad] sm:$0xff]
      %v618 = vld [vmem:[#allocation2 + $0xb5] sm:$0xff]
      %v619 = vld [vmem:[#allocation2 + $0xc5] sm:$0xff]
      %v620 = vld [vmem:[#allocation2 + $0xcd] sm:$0xff]
      %v621 = vld [vmem:[#allocation2 + $0xdd] sm:$0xff]
      %v622 = vld [vmem:[#allocation2 + $0xe5] sm:$0xff]
      %v623 = vld [vmem:[#allocation2 + $0xf5] sm:$0xff]
      %v624 = vld [vmem:[#allocation2 + $0xfd] sm:$0xff]
      %v625 = vld [vmem:[#allocation2 + $0x10d] sm:$0xff]
      %v626 = vld [vmem:[#allocation2 + $0x115] sm:$0xff]
      %v627 = vld [vmem:[#allocation2 + $0x125] sm:$0xff]
      %v628 = vld [vmem:[#allocation2 + $0x12d] sm:$0xff]
      %v629 = vld [vmem:[#allocation2 + $0x13d] sm:$0xff]
      %v630 = vld [vmem:[#allocation2 + $0x145] sm:$0xff]
      %s631 = scalar_lea.vmem [#allocation3], 1120
      %632 = vst [vmem:[%s631] sm:$0xff] %v603
      %633 = vst [vmem:[%s631 + $0x8] sm:$0xff] %v604
      %634 = vst [vmem:[%s631 + $0x10] sm:$0xff] %v605
      %635 = vst [vmem:[%s631 + $0x18] sm:$0xff] %v606
      %636 = vst [vmem:[%s631 + $0x20] sm:$0xff] %v607
      %637 = vst [vmem:[%s631 + $0x28] sm:$0xff] %v608
      %638 = vst [vmem:[%s631 + $0x30] sm:$0xff] %v609
      %639 = vst [vmem:[%s631 + $0x38] sm:$0xff] %v610
      %640 = vst [vmem:[%s631 + $0x40] sm:$0xff] %v611
      %641 = vst [vmem:[%s631 + $0x48] sm:$0xff] %v612
      %642 = vst [vmem:[%s631 + $0x50] sm:$0xff] %v613
      %643 = vst [vmem:[%s631 + $0x58] sm:$0xff] %v614
      %644 = vst [vmem:[%s631 + $0x60] sm:$0xff] %v615
      %645 = vst [vmem:[%s631 + $0x68] sm:$0xff] %v616
      %646 = vst [vmem:[%s631 + $0x70] sm:$0xff] %v617
      %647 = vst [vmem:[%s631 + $0x78] sm:$0xff] %v618
      %648 = vst [vmem:[%s631 + $0x80] sm:$0xff] %v619
      %649 = vst [vmem:[%s631 + $0x88] sm:$0xff] %v620
      %650 = vst [vmem:[%s631 + $0x90] sm:$0xff] %v621
      %651 = vst [vmem:[%s631 + $0x98] sm:$0xff] %v622
      %652 = vst [vmem:[%s631 + $0xa0] sm:$0xff] %v623
      %653 = vst [vmem:[%s631 + $0xa8] sm:$0xff] %v624
      %654 = vst [vmem:[%s631 + $0xb0] sm:$0xff] %v625
      %655 = vst [vmem:[%s631 + $0xb8] sm:$0xff] %v626
      %656 = vst [vmem:[%s631 + $0xc0] sm:$0xff] %v627
      %657 = vst [vmem:[%s631 + $0xc8] sm:$0xff] %v628
      %658 = vst [vmem:[%s631 + $0xd0] sm:$0xff] %v629
      %659 = vst [vmem:[%s631 + $0xd8] sm:$0xff] %v630
      %v660 = vld [vmem:[#allocation2 + $0x6] sm:$0xff]
      %v661 = vld [vmem:[#allocation2 + $0xe] sm:$0xff]
      %v662 = vld [vmem:[#allocation2 + $0x1e] sm:$0xff]
      %v663 = vld [vmem:[#allocation2 + $0x26] sm:$0xff]
      %v664 = vld [vmem:[#allocation2 + $0x36] sm:$0xff]
      %v665 = vld [vmem:[#allocation2 + $0x3e] sm:$0xff]
      %v666 = vld [vmem:[#allocation2 + $0x4e] sm:$0xff]
      %v667 = vld [vmem:[#allocation2 + $0x56] sm:$0xff]
      %v668 = vld [vmem:[#allocation2 + $0x66] sm:$0xff]
      %v669 = vld [vmem:[#allocation2 + $0x6e] sm:$0xff]
      %v670 = vld [vmem:[#allocation2 + $0x7e] sm:$0xff]
      %v671 = vld [vmem:[#allocation2 + $0x86] sm:$0xff]
      %v672 = vld [vmem:[#allocation2 + $0x96] sm:$0xff]
      %v673 = vld [vmem:[#allocation2 + $0x9e] sm:$0xff]
      %v674 = vld [vmem:[#allocation2 + $0xae] sm:$0xff]
      %v675 = vld [vmem:[#allocation2 + $0xb6] sm:$0xff]
      %v676 = vld [vmem:[#allocation2 + $0xc6] sm:$0xff]
      %v677 = vld [vmem:[#allocation2 + $0xce] sm:$0xff]
      %v678 = vld [vmem:[#allocation2 + $0xde] sm:$0xff]
      %v679 = vld [vmem:[#allocation2 + $0xe6] sm:$0xff]
      %v680 = vld [vmem:[#allocation2 + $0xf6] sm:$0xff]
      %v681 = vld [vmem:[#allocation2 + $0xfe] sm:$0xff]
      %v682 = vld [vmem:[#allocation2 + $0x10e] sm:$0xff]
      %v683 = vld [vmem:[#allocation2 + $0x116] sm:$0xff]
      %v684 = vld [vmem:[#allocation2 + $0x126] sm:$0xff]
      %v685 = vld [vmem:[#allocation2 + $0x12e] sm:$0xff]
      %v686 = vld [vmem:[#allocation2 + $0x13e] sm:$0xff]
      %v687 = vld [vmem:[#allocation2 + $0x146] sm:$0xff]
      %s688 = scalar_lea.vmem [#allocation3], 1344
      %689 = vst [vmem:[%s688] sm:$0xff] %v660
      %690 = vst [vmem:[%s688 + $0x8] sm:$0xff] %v661
      %691 = vst [vmem:[%s688 + $0x10] sm:$0xff] %v662
      %692 = vst [vmem:[%s688 + $0x18] sm:$0xff] %v663
      %693 = vst [vmem:[%s688 + $0x20] sm:$0xff] %v664
      %694 = vst [vmem:[%s688 + $0x28] sm:$0xff] %v665
      %695 = vst [vmem:[%s688 + $0x30] sm:$0xff] %v666
      %696 = vst [vmem:[%s688 + $0x38] sm:$0xff] %v667
      %697 = vst [vmem:[%s688 + $0x40] sm:$0xff] %v668
      %698 = vst [vmem:[%s688 + $0x48] sm:$0xff] %v669
      %699 = vst [vmem:[%s688 + $0x50] sm:$0xff] %v670
      %700 = vst [vmem:[%s688 + $0x58] sm:$0xff] %v671
      %701 = vst [vmem:[%s688 + $0x60] sm:$0xff] %v672
      %702 = vst [vmem:[%s688 + $0x68] sm:$0xff] %v673
      %703 = vst [vmem:[%s688 + $0x70] sm:$0xff] %v674
      %704 = vst [vmem:[%s688 + $0x78] sm:$0xff] %v675
      %705 = vst [vmem:[%s688 + $0x80] sm:$0xff] %v676
      %706 = vst [vmem:[%s688 + $0x88] sm:$0xff] %v677
      %707 = vst [vmem:[%s688 + $0x90] sm:$0xff] %v678
      %708 = vst [vmem:[%s688 + $0x98] sm:$0xff] %v679
      %709 = vst [vmem:[%s688 + $0xa0] sm:$0xff] %v680
      %710 = vst [vmem:[%s688 + $0xa8] sm:$0xff] %v681
      %711 = vst [vmem:[%s688 + $0xb0] sm:$0xff] %v682
      %712 = vst [vmem:[%s688 + $0xb8] sm:$0xff] %v683
      %713 = vst [vmem:[%s688 + $0xc0] sm:$0xff] %v684
      %714 = vst [vmem:[%s688 + $0xc8] sm:$0xff] %v685
      %715 = vst [vmem:[%s688 + $0xd0] sm:$0xff] %v686
      %716 = vst [vmem:[%s688 + $0xd8] sm:$0xff] %v687
      %v717 = vld [vmem:[%s178] sm:$0xff]
      %v718 = vld [vmem:[%s178 + $0x8] sm:$0xff]
      %v719 = vld [vmem:[%s178 + $0x10] sm:$0xff]
      %v720 = vld [vmem:[%s178 + $0x18] sm:$0xff]
      %v721 = vld [vmem:[%s178 + $0x20] sm:$0xff]
      %v722 = vld [vmem:[%s178 + $0x28] sm:$0xff]
      %v723 = vld [vmem:[%s178 + $0x30] sm:$0x1]
      %v724 = vld [vmem:[%s181] sm:$0x1]
      loop: start=0, step=1, limit=8
      $region51: #{gnconv_forward.4} parent=27 // loop_pre_header
        _
      $region52: #{gnconv_forward.4} parent=27 // loop_header
        %s726 = sphi 0, %s730
        %p727 = scmp.ge.s32.totalorder %s726, 8
      $region53: #{gnconv_forward.4} parent=27 // loop_header_branch
        %729 = sbr.rel (%p727) target = $region57
      $region54: #{gnconv_forward.4} parent=27 // loop_body
        %s731 = smul.u32 %s726, 16
        %s732 = scalar_lea.vmem [#allocation3], %s731
        %v733 = vld [vmem:[%s732] sm:$0xff]
        %v734 = vld [vmem:[%s732 + $0x8] sm:$0xff]
        %v735 = vperm.slane %v717, 0
        %v736 = vmul.f32 %v733, %v735
        %v737 = vmul.f32 %v734, %v735
        %v738 = vadd.f32 %v736, 0.0
        %v739 = vadd.f32 %v737, 0.0
        %s740 = sadd.s32 %s726, 14
        %s741 = smul.u32 %s740, 16
        %s742 = scalar_lea.vmem [#allocation3], %s741
        %v743 = vld [vmem:[%s742] sm:$0xff]
        %v744 = vld [vmem:[%s742 + $0x8] sm:$0xff]
        %v745 = vperm.slane %v717, 1
        %v746 = vmul.f32 %v743, %v745
        %v747 = vmul.f32 %v744, %v745
        %v748 = vadd.f32 %v738, %v746
        %v749 = vadd.f32 %v739, %v747
        %s750 = sadd.s32 %s726, 28
        %s751 = smul.u32 %s750, 16
        %s752 = scalar_lea.vmem [#allocation3], %s751
        %v753 = vld [vmem:[%s752] sm:$0xff]
        %v754 = vld [vmem:[%s752 + $0x8] sm:$0xff]
        %v755 = vperm.slane %v717, 2
        %v756 = vmul.f32 %v753, %v755
        %v757 = vmul.f32 %v754, %v755
        %v758 = vadd.f32 %v748, %v756
        %v759 = vadd.f32 %v749, %v757
        %s760 = sadd.s32 %s726, 42
        %s761 = smul.u32 %s760, 16
        %s762 = scalar_lea.vmem [#allocation3], %s761
        %v763 = vld [vmem:[%s762] sm:$0xff]
        %v764 = vld [vmem:[%s762 + $0x8] sm:$0xff]
        %v765 = vperm.slane %v717, 3
        %v766 = vmul.f32 %v763, %v765
        %v767 = vmul.f32 %v764, %v765
        %v768 = vadd.f32 %v758, %v766
        %v769 = vadd.f32 %v759, %v767
        %s770 = sadd.s32 %s726, 56
        %s771 = smul.u32 %s770, 16
        %s772 = scalar_lea.vmem [#allocation3], %s771
        %v773 = vld [vmem:[%s772] sm:$0xff]
        %v774 = vld [vmem:[%s772 + $0x8] sm:$0xff]
        %v775 = vperm.slane %v717, 4
        %v776 = vmul.f32 %v773, %v775
        %v777 = vmul.f32 %v774, %v775
        %v778 = vadd.f32 %v768, %v776
        %v779 = vadd.f32 %v769, %v777
        %s780 = sadd.s32 %s726, 70
        %s781 = smul.u32 %s780, 16
        %s782 = scalar_lea.vmem [#allocation3], %s781
        %v783 = vld [vmem:[%s782] sm:$0xff]
        %v784 = vld [vmem:[%s782 + $0x8] sm:$0xff]
        %v785 = vperm.slane %v717, 5
        %v786 = vmul.f32 %v783, %v785
        %v787 = vmul.f32 %v784, %v785
        %v788 = vadd.f32 %v778, %v786
        %v789 = vadd.f32 %v779, %v787
        %s790 = sadd.s32 %s726, 84
        %s791 = smul.u32 %s790, 16
        %s792 = scalar_lea.vmem [#allocation3], %s791
        %v793 = vld [vmem:[%s792] sm:$0xff]
        %v794 = vld [vmem:[%s792 + $0x8] sm:$0xff]
        %v795 = vperm.slane %v717, 6
        %v796 = vmul.f32 %v793, %v795
        %v797 = vmul.f32 %v794, %v795
        %v798 = vadd.f32 %v788, %v796
        %v799 = vadd.f32 %v789, %v797
        %s800 = sadd.s32 %s726, 1
        %s801 = smul.u32 %s800, 16
        %s802 = scalar_lea.vmem [#allocation3], %s801
        %v803 = vld [vmem:[%s802] sm:$0xff]
        %v804 = vld [vmem:[%s802 + $0x8] sm:$0xff]
        %v805 = vperm.slane %v717, 7
        %v806 = vmul.f32 %v803, %v805
        %v807 = vmul.f32 %v804, %v805
        %v808 = vadd.f32 %v798, %v806
        %v809 = vadd.f32 %v799, %v807
        %s810 = sadd.s32 %s726, 15
        %s811 = smul.u32 %s810, 16
        %s812 = scalar_lea.vmem [#allocation3], %s811
        %v813 = vld [vmem:[%s812] sm:$0xff]
        %v814 = vld [vmem:[%s812 + $0x8] sm:$0xff]
        %v815 = vperm.slane %v718, 0
        %v816 = vmul.f32 %v813, %v815
        %v817 = vmul.f32 %v814, %v815
        %v818 = vadd.f32 %v808, %v816
        %v819 = vadd.f32 %v809, %v817
        %s820 = sadd.s32 %s726, 29
        %s821 = smul.u32 %s820, 16
        %s822 = scalar_lea.vmem [#allocation3], %s821
        %v823 = vld [vmem:[%s822] sm:$0xff]
        %v824 = vld [vmem:[%s822 + $0x8] sm:$0xff]
        %v825 = vperm.slane %v718, 1
        %v826 = vmul.f32 %v823, %v825
        %v827 = vmul.f32 %v824, %v825
        %v828 = vadd.f32 %v818, %v826
        %v829 = vadd.f32 %v819, %v827
        %s830 = sadd.s32 %s726, 43
        %s831 = smul.u32 %s830, 16
        %s832 = scalar_lea.vmem [#allocation3], %s831
        %v833 = vld [vmem:[%s832] sm:$0xff]
        %v834 = vld [vmem:[%s832 + $0x8] sm:$0xff]
        %v835 = vperm.slane %v718, 2
        %v836 = vmul.f32 %v833, %v835
        %v837 = vmul.f32 %v834, %v835
        %v838 = vadd.f32 %v828, %v836
        %v839 = vadd.f32 %v829, %v837
        %s840 = sadd.s32 %s726, 57
        %s841 = smul.u32 %s840, 16
        %s842 = scalar_lea.vmem [#allocation3], %s841
        %v843 = vld [vmem:[%s842] sm:$0xff]
        %v844 = vld [vmem:[%s842 + $0x8] sm:$0xff]
        %v845 = vperm.slane %v718, 3
        %v846 = vmul.f32 %v843, %v845
        %v847 = vmul.f32 %v844, %v845
        %v848 = vadd.f32 %v838, %v846
        %v849 = vadd.f32 %v839, %v847
        %s850 = sadd.s32 %s726, 71
        %s851 = smul.u32 %s850, 16
        %s852 = scalar_lea.vmem [#allocation3], %s851
        %v853 = vld [vmem:[%s852] sm:$0xff]
        %v854 = vld [vmem:[%s852 + $0x8] sm:$0xff]
        %v855 = vperm.slane %v718, 4
        %v856 = vmul.f32 %v853, %v855
        %v857 = vmul.f32 %v854, %v855
        %v858 = vadd.f32 %v848, %v856
        %v859 = vadd.f32 %v849, %v857
        %s860 = sadd.s32 %s726, 85
        %s861 = smul.u32 %s860, 16
        %s862 = scalar_lea.vmem [#allocation3], %s861
        %v863 = vld [vmem:[%s862] sm:$0xff]
        %v864 = vld [vmem:[%s862 + $0x8] sm:$0xff]
        %v865 = vperm.slane %v718, 5
        %v866 = vmul.f32 %v863, %v865
        %v867 = vmul.f32 %v864, %v865
        %v868 = vadd.f32 %v858, %v866
        %v869 = vadd.f32 %v859, %v867
        %s870 = sadd.s32 %s726, 2
        %s871 = smul.u32 %s870, 16
        %s872 = scalar_lea.vmem [#allocation3], %s871
        %v873 = vld [vmem:[%s872] sm:$0xff]
        %v874 = vld [vmem:[%s872 + $0x8] sm:$0xff]
        %v875 = vperm.slane %v718, 6
        %v876 = vmul.f32 %v873, %v875
        %v877 = vmul.f32 %v874, %v875
        %v878 = vadd.f32 %v868, %v876
        %v879 = vadd.f32 %v869, %v877
        %s880 = sadd.s32 %s726, 16
        %s881 = smul.u32 %s880, 16
        %s882 = scalar_lea.vmem [#allocation3], %s881
        %v883 = vld [vmem:[%s882] sm:$0xff]
        %v884 = vld [vmem:[%s882 + $0x8] sm:$0xff]
        %v885 = vperm.slane %v718, 7
        %v886 = vmul.f32 %v883, %v885
        %v887 = vmul.f32 %v884, %v885
        %v888 = vadd.f32 %v878, %v886
        %v889 = vadd.f32 %v879, %v887
        %s890 = sadd.s32 %s726, 30
        %s891 = smul.u32 %s890, 16
        %s892 = scalar_lea.vmem [#allocation3], %s891
        %v893 = vld [vmem:[%s892] sm:$0xff]
        %v894 = vld [vmem:[%s892 + $0x8] sm:$0xff]
        %v895 = vperm.slane %v719, 0
        %v896 = vmul.f32 %v893, %v895
        %v897 = vmul.f32 %v894, %v895
        %v898 = vadd.f32 %v888, %v896
        %v899 = vadd.f32 %v889, %v897
        %s900 = sadd.s32 %s726, 44
        %s901 = smul.u32 %s900, 16
        %s902 = scalar_lea.vmem [#allocation3], %s901
        %v903 = vld [vmem:[%s902] sm:$0xff]
        %v904 = vld [vmem:[%s902 + $0x8] sm:$0xff]
        %v905 = vperm.slane %v719, 1
        %v906 = vmul.f32 %v903, %v905
        %v907 = vmul.f32 %v904, %v905
        %v908 = vadd.f32 %v898, %v906
        %v909 = vadd.f32 %v899, %v907
        %s910 = sadd.s32 %s726, 58
        %s911 = smul.u32 %s910, 16
        %s912 = scalar_lea.vmem [#allocation3], %s911
        %v913 = vld [vmem:[%s912] sm:$0xff]
        %v914 = vld [vmem:[%s912 + $0x8] sm:$0xff]
        %v915 = vperm.slane %v719, 2
        %v916 = vmul.f32 %v913, %v915
        %v917 = vmul.f32 %v914, %v915
        %v918 = vadd.f32 %v908, %v916
        %v919 = vadd.f32 %v909, %v917
        %s920 = sadd.s32 %s726, 72
        %s921 = smul.u32 %s920, 16
        %s922 = scalar_lea.vmem [#allocation3], %s921
        %v923 = vld [vmem:[%s922] sm:$0xff]
        %v924 = vld [vmem:[%s922 + $0x8] sm:$0xff]
        %v925 = vperm.slane %v719, 3
        %v926 = vmul.f32 %v923, %v925
        %v927 = vmul.f32 %v924, %v925
        %v928 = vadd.f32 %v918, %v926
        %v929 = vadd.f32 %v919, %v927
        %s930 = sadd.s32 %s726, 86
        %s931 = smul.u32 %s930, 16
        %s932 = scalar_lea.vmem [#allocation3], %s931
        %v933 = vld [vmem:[%s932] sm:$0xff]
        %v934 = vld [vmem:[%s932 + $0x8] sm:$0xff]
        %v935 = vperm.slane %v719, 4
        %v936 = vmul.f32 %v933, %v935
        %v937 = vmul.f32 %v934, %v935
        %v938 = vadd.f32 %v928, %v936
        %v939 = vadd.f32 %v929, %v937
        %s940 = sadd.s32 %s726, 3
        %s941 = smul.u32 %s940, 16
        %s942 = scalar_lea.vmem [#allocation3], %s941
        %v943 = vld [vmem:[%s942] sm:$0xff]
        %v944 = vld [vmem:[%s942 + $0x8] sm:$0xff]
        %v945 = vperm.slane %v719, 5
        %v946 = vmul.f32 %v943, %v945
        %v947 = vmul.f32 %v944, %v945
        %v948 = vadd.f32 %v938, %v946
        %v949 = vadd.f32 %v939, %v947
        %s950 = sadd.s32 %s726, 17
        %s951 = smul.u32 %s950, 16
        %s952 = scalar_lea.vmem [#allocation3], %s951
        %v953 = vld [vmem:[%s952] sm:$0xff]
        %v954 = vld [vmem:[%s952 + $0x8] sm:$0xff]
        %v955 = vperm.slane %v719, 6
        %v956 = vmul.f32 %v953, %v955
        %v957 = vmul.f32 %v954, %v955
        %v958 = vadd.f32 %v948, %v956
        %v959 = vadd.f32 %v949, %v957
        %s960 = sadd.s32 %s726, 31
        %s961 = smul.u32 %s960, 16
        %s962 = scalar_lea.vmem [#allocation3], %s961
        %v963 = vld [vmem:[%s962] sm:$0xff]
        %v964 = vld [vmem:[%s962 + $0x8] sm:$0xff]
        %v965 = vperm.slane %v719, 7
        %v966 = vmul.f32 %v963, %v965
        %v967 = vmul.f32 %v964, %v965
        %v968 = vadd.f32 %v958, %v966
        %v969 = vadd.f32 %v959, %v967
        %s970 = sadd.s32 %s726, 45
        %s971 = smul.u32 %s970, 16
        %s972 = scalar_lea.vmem [#allocation3], %s971
        %v973 = vld [vmem:[%s972] sm:$0xff]
        %v974 = vld [vmem:[%s972 + $0x8] sm:$0xff]
        %v975 = vperm.slane %v720, 0
        %v976 = vmul.f32 %v973, %v975
        %v977 = vmul.f32 %v974, %v975
        %v978 = vadd.f32 %v968, %v976
        %v979 = vadd.f32 %v969, %v977
        %s980 = sadd.s32 %s726, 59
        %s981 = smul.u32 %s980, 16
        %s982 = scalar_lea.vmem [#allocation3], %s981
        %v983 = vld [vmem:[%s982] sm:$0xff]
        %v984 = vld [vmem:[%s982 + $0x8] sm:$0xff]
        %v985 = vperm.slane %v720, 1
        %v986 = vmul.f32 %v983, %v985
        %v987 = vmul.f32 %v984, %v985
        %v988 = vadd.f32 %v978, %v986
        %v989 = vadd.f32 %v979, %v987
        %s990 = sadd.s32 %s726, 73
        %s991 = smul.u32 %s990, 16
        %s992 = scalar_lea.vmem [#allocation3], %s991
        %v993 = vld [vmem:[%s992] sm:$0xff]
        %v994 = vld [vmem:[%s992 + $0x8] sm:$0xff]
        %v995 = vperm.slane %v720, 2
        %v996 = vmul.f32 %v993, %v995
        %v997 = vmul.f32 %v994, %v995
        %v998 = vadd.f32 %v988, %v996
        %v999 = vadd.f32 %v989, %v997
        %s1000 = sadd.s32 %s726, 87
        %s1001 = smul.u32 %s1000, 16
        %s1002 = scalar_lea.vmem [#allocation3], %s1001
        %v1003 = vld [vmem:[%s1002] sm:$0xff]
        %v1004 = vld [vmem:[%s1002 + $0x8] sm:$0xff]
        %v1005 = vperm.slane %v720, 3
        %v1006 = vmul.f32 %v1003, %v1005
        %v1007 = vmul.f32 %v1004, %v1005
        %v1008 = vadd.f32 %v998, %v1006
        %v1009 = vadd.f32 %v999, %v1007
        %s1010 = sadd.s32 %s726, 4
        %s1011 = smul.u32 %s1010, 16
        %s1012 = scalar_lea.vmem [#allocation3], %s1011
        %v1013 = vld [vmem:[%s1012] sm:$0xff]
        %v1014 = vld [vmem:[%s1012 + $0x8] sm:$0xff]
        %v1015 = vperm.slane %v720, 4
        %v1016 = vmul.f32 %v1013, %v1015
        %v1017 = vmul.f32 %v1014, %v1015
        %v1018 = vadd.f32 %v1008, %v1016
        %v1019 = vadd.f32 %v1009, %v1017
        %s1020 = sadd.s32 %s726, 18
        %s1021 = smul.u32 %s1020, 16
        %s1022 = scalar_lea.vmem [#allocation3], %s1021
        %v1023 = vld [vmem:[%s1022] sm:$0xff]
        %v1024 = vld [vmem:[%s1022 + $0x8] sm:$0xff]
        %v1025 = vperm.slane %v720, 5
        %v1026 = vmul.f32 %v1023, %v1025
        %v1027 = vmul.f32 %v1024, %v1025
        %v1028 = vadd.f32 %v1018, %v1026
        %v1029 = vadd.f32 %v1019, %v1027
        %s1030 = sadd.s32 %s726, 32
        %s1031 = smul.u32 %s1030, 16
        %s1032 = scalar_lea.vmem [#allocation3], %s1031
        %v1033 = vld [vmem:[%s1032] sm:$0xff]
        %v1034 = vld [vmem:[%s1032 + $0x8] sm:$0xff]
        %v1035 = vperm.slane %v720, 6
        %v1036 = vmul.f32 %v1033, %v1035
        %v1037 = vmul.f32 %v1034, %v1035
        %v1038 = vadd.f32 %v1028, %v1036
        %v1039 = vadd.f32 %v1029, %v1037
        %s1040 = sadd.s32 %s726, 46
        %s1041 = smul.u32 %s1040, 16
        %s1042 = scalar_lea.vmem [#allocation3], %s1041
        %v1043 = vld [vmem:[%s1042] sm:$0xff]
        %v1044 = vld [vmem:[%s1042 + $0x8] sm:$0xff]
        %v1045 = vperm.slane %v720, 7
        %v1046 = vmul.f32 %v1043, %v1045
        %v1047 = vmul.f32 %v1044, %v1045
        %v1048 = vadd.f32 %v1038, %v1046
        %v1049 = vadd.f32 %v1039, %v1047
        %s1050 = sadd.s32 %s726, 60
        %s1051 = smul.u32 %s1050, 16
        %s1052 = scalar_lea.vmem [#allocation3], %s1051
        %v1053 = vld [vmem:[%s1052] sm:$0xff]
        %v1054 = vld [vmem:[%s1052 + $0x8] sm:$0xff]
        %v1055 = vperm.slane %v721, 0
        %v1056 = vmul.f32 %v1053, %v1055
        %v1057 = vmul.f32 %v1054, %v1055
        %v1058 = vadd.f32 %v1048, %v1056
        %v1059 = vadd.f32 %v1049, %v1057
        %s1060 = sadd.s32 %s726, 74
        %s1061 = smul.u32 %s1060, 16
        %s1062 = scalar_lea.vmem [#allocation3], %s1061
        %v1063 = vld [vmem:[%s1062] sm:$0xff]
        %v1064 = vld [vmem:[%s1062 + $0x8] sm:$0xff]
        %v1065 = vperm.slane %v721, 1
        %v1066 = vmul.f32 %v1063, %v1065
        %v1067 = vmul.f32 %v1064, %v1065
        %v1068 = vadd.f32 %v1058, %v1066
        %v1069 = vadd.f32 %v1059, %v1067
        %s1070 = sadd.s32 %s726, 88
        %s1071 = smul.u32 %s1070, 16
        %s1072 = scalar_lea.vmem [#allocation3], %s1071
        %v1073 = vld [vmem:[%s1072] sm:$0xff]
        %v1074 = vld [vmem:[%s1072 + $0x8] sm:$0xff]
        %v1075 = vperm.slane %v721, 2
        %v1076 = vmul.f32 %v1073, %v1075
        %v1077 = vmul.f32 %v1074, %v1075
        %v1078 = vadd.f32 %v1068, %v1076
        %v1079 = vadd.f32 %v1069, %v1077
        %s1080 = sadd.s32 %s726, 5
        %s1081 = smul.u32 %s1080, 16
        %s1082 = scalar_lea.vmem [#allocation3], %s1081
        %v1083 = vld [vmem:[%s1082] sm:$0xff]
        %v1084 = vld [vmem:[%s1082 + $0x8] sm:$0xff]
        %v1085 = vperm.slane %v721, 3
        %v1086 = vmul.f32 %v1083, %v1085
        %v1087 = vmul.f32 %v1084, %v1085
        %v1088 = vadd.f32 %v1078, %v1086
        %v1089 = vadd.f32 %v1079, %v1087
        %s1090 = sadd.s32 %s726, 19
        %s1091 = smul.u32 %s1090, 16
        %s1092 = scalar_lea.vmem [#allocation3], %s1091
        %v1093 = vld [vmem:[%s1092] sm:$0xff]
        %v1094 = vld [vmem:[%s1092 + $0x8] sm:$0xff]
        %v1095 = vperm.slane %v721, 4
        %v1096 = vmul.f32 %v1093, %v1095
        %v1097 = vmul.f32 %v1094, %v1095
        %v1098 = vadd.f32 %v1088, %v1096
        %v1099 = vadd.f32 %v1089, %v1097
        %s1100 = sadd.s32 %s726, 33
        %s1101 = smul.u32 %s1100, 16
        %s1102 = scalar_lea.vmem [#allocation3], %s1101
        %v1103 = vld [vmem:[%s1102] sm:$0xff]
        %v1104 = vld [vmem:[%s1102 + $0x8] sm:$0xff]
        %v1105 = vperm.slane %v721, 5
        %v1106 = vmul.f32 %v1103, %v1105
        %v1107 = vmul.f32 %v1104, %v1105
        %v1108 = vadd.f32 %v1098, %v1106
        %v1109 = vadd.f32 %v1099, %v1107
        %s1110 = sadd.s32 %s726, 47
        %s1111 = smul.u32 %s1110, 16
        %s1112 = scalar_lea.vmem [#allocation3], %s1111
        %v1113 = vld [vmem:[%s1112] sm:$0xff]
        %v1114 = vld [vmem:[%s1112 + $0x8] sm:$0xff]
        %v1115 = vperm.slane %v721, 6
        %v1116 = vmul.f32 %v1113, %v1115
        %v1117 = vmul.f32 %v1114, %v1115
        %v1118 = vadd.f32 %v1108, %v1116
        %v1119 = vadd.f32 %v1109, %v1117
        %s1120 = sadd.s32 %s726, 61
        %s1121 = smul.u32 %s1120, 16
        %s1122 = scalar_lea.vmem [#allocation3], %s1121
        %v1123 = vld [vmem:[%s1122] sm:$0xff]
        %v1124 = vld [vmem:[%s1122 + $0x8] sm:$0xff]
        %v1125 = vperm.slane %v721, 7
        %v1126 = vmul.f32 %v1123, %v1125
        %v1127 = vmul.f32 %v1124, %v1125
        %v1128 = vadd.f32 %v1118, %v1126
        %v1129 = vadd.f32 %v1119, %v1127
        %s1130 = sadd.s32 %s726, 75
        %s1131 = smul.u32 %s1130, 16
        %s1132 = scalar_lea.vmem [#allocation3], %s1131
        %v1133 = vld [vmem:[%s1132] sm:$0xff]
        %v1134 = vld [vmem:[%s1132 + $0x8] sm:$0xff]
        %v1135 = vperm.slane %v722, 0
        %v1136 = vmul.f32 %v1133, %v1135
        %v1137 = vmul.f32 %v1134, %v1135
        %v1138 = vadd.f32 %v1128, %v1136
        %v1139 = vadd.f32 %v1129, %v1137
        %s1140 = sadd.s32 %s726, 89
        %s1141 = smul.u32 %s1140, 16
        %s1142 = scalar_lea.vmem [#allocation3], %s1141
        %v1143 = vld [vmem:[%s1142] sm:$0xff]
        %v1144 = vld [vmem:[%s1142 + $0x8] sm:$0xff]
        %v1145 = vperm.slane %v722, 1
        %v1146 = vmul.f32 %v1143, %v1145
        %v1147 = vmul.f32 %v1144, %v1145
        %v1148 = vadd.f32 %v1138, %v1146
        %v1149 = vadd.f32 %v1139, %v1147
        %s1150 = sadd.s32 %s726, 6
        %s1151 = smul.u32 %s1150, 16
        %s1152 = scalar_lea.vmem [#allocation3], %s1151
        %v1153 = vld [vmem:[%s1152] sm:$0xff]
        %v1154 = vld [vmem:[%s1152 + $0x8] sm:$0xff]
        %v1155 = vperm.slane %v722, 2
        %v1156 = vmul.f32 %v1153, %v1155
        %v1157 = vmul.f32 %v1154, %v1155
        %v1158 = vadd.f32 %v1148, %v1156
        %v1159 = vadd.f32 %v1149, %v1157
        %s1160 = sadd.s32 %s726, 20
        %s1161 = smul.u32 %s1160, 16
        %s1162 = scalar_lea.vmem [#allocation3], %s1161
        %v1163 = vld [vmem:[%s1162] sm:$0xff]
        %v1164 = vld [vmem:[%s1162 + $0x8] sm:$0xff]
        %v1165 = vperm.slane %v722, 3
        %v1166 = vmul.f32 %v1163, %v1165
        %v1167 = vmul.f32 %v1164, %v1165
        %v1168 = vadd.f32 %v1158, %v1166
        %v1169 = vadd.f32 %v1159, %v1167
        %s1170 = sadd.s32 %s726, 34
        %s1171 = smul.u32 %s1170, 16
        %s1172 = scalar_lea.vmem [#allocation3], %s1171
        %v1173 = vld [vmem:[%s1172] sm:$0xff]
        %v1174 = vld [vmem:[%s1172 + $0x8] sm:$0xff]
        %v1175 = vperm.slane %v722, 4
        %v1176 = vmul.f32 %v1173, %v1175
        %v1177 = vmul.f32 %v1174, %v1175
        %v1178 = vadd.f32 %v1168, %v1176
        %v1179 = vadd.f32 %v1169, %v1177
        %s1180 = sadd.s32 %s726, 48
        %s1181 = smul.u32 %s1180, 16
        %s1182 = scalar_lea.vmem [#allocation3], %s1181
        %v1183 = vld [vmem:[%s1182] sm:$0xff]
        %v1184 = vld [vmem:[%s1182 + $0x8] sm:$0xff]
        %v1185 = vperm.slane %v722, 5
        %v1186 = vmul.f32 %v1183, %v1185
        %v1187 = vmul.f32 %v1184, %v1185
        %v1188 = vadd.f32 %v1178, %v1186
        %v1189 = vadd.f32 %v1179, %v1187
        %s1190 = sadd.s32 %s726, 62
        %s1191 = smul.u32 %s1190, 16
        %s1192 = scalar_lea.vmem [#allocation3], %s1191
        %v1193 = vld [vmem:[%s1192] sm:$0xff]
        %v1194 = vld [vmem:[%s1192 + $0x8] sm:$0xff]
        %v1195 = vperm.slane %v722, 6
        %v1196 = vmul.f32 %v1193, %v1195
        %v1197 = vmul.f32 %v1194, %v1195
        %v1198 = vadd.f32 %v1188, %v1196
        %v1199 = vadd.f32 %v1189, %v1197
        %s1200 = sadd.s32 %s726, 76
        %s1201 = smul.u32 %s1200, 16
        %s1202 = scalar_lea.vmem [#allocation3], %s1201
        %v1203 = vld [vmem:[%s1202] sm:$0xff]
        %v1204 = vld [vmem:[%s1202 + $0x8] sm:$0xff]
        %v1205 = vperm.slane %v722, 7
        %v1206 = vmul.f32 %v1203, %v1205
        %v1207 = vmul.f32 %v1204, %v1205
        %v1208 = vadd.f32 %v1198, %v1206
        %v1209 = vadd.f32 %v1199, %v1207
        %s1210 = sadd.s32 %s726, 90
        %s1211 = smul.u32 %s1210, 16
        %s1212 = scalar_lea.vmem [#allocation3], %s1211
        %v1213 = vld [vmem:[%s1212] sm:$0xff]
        %v1214 = vld [vmem:[%s1212 + $0x8] sm:$0xff]
        %v1215 = vperm.slane %v723, 0
        %v1216 = vmul.f32 %v1213, %v1215
        %v1217 = vmul.f32 %v1214, %v1215
        %v1218 = vadd.f32 %v1208, %v1216
        %v1219 = vadd.f32 %v1209, %v1217
        %v1221 = vperm.slane %v724, 0
        %v1223 = vadd.f32 %v1218, %v1221
        %v1224 = vadd.f32 %v1219, %v1221
        %s1225 = scalar_lea.vmem %s194, %s731
        %1226 = vst [vmem:[%s1225] sm:$0xff] %v1223
        %1227 = vst [vmem:[%s1225 + $0x8] sm:$0xff] %v1224
      $region55: #{gnconv_forward.4} parent=27 // loop_footer
        %s730 = sadd.s32 1, %s726
      $region56: #{gnconv_forward.4} parent=27 // loop_footer_branch
        %725 = sbr.rel target = $region52
      $region57: #{gnconv_forward.4} parent=27 // loop_exit
        _
      %s1228 = smul.u32 8, %s20
      %p1229 = scmp.lt.s32.totalorder %s19, 1
      %s1230 = scalar_select %p1229, %s19, 1
      %p1231 = scmp.lt.s32.totalorder %s1228, 15
      %s1232 = scalar_select %p1231, %s1228, 15
      %p1233 = scmp.lt.s32.totalorder %s21, 0
      %s1234 = scalar_select %p1233, %s21, 0
      %s1235 = smul.addr %s1232, 2
      %s1236 = sadd.s32 %s1234, %s1235
      %s1237 = smul.addr %s1230, 32
      %s1238 = sadd.s32 %s1236, %s1237
      %s1239 = smul.addr %s1238, 8
      %s1240 = scalar_lea.vmem %s3, %s1239
      // Predicated region
      $region58: #{gnconv_forward.4} parent=27 // pred_check
        %p1241 = pneg %p107
      $region59: #{gnconv_forward.4} parent=27 // pred_check_branch
        %1243 = sbr.rel (%p1241) target = $region61
      $region60: #{gnconv_forward.4} parent=27 // pred_region
        %s1244 = smul.u32 8, %s20
      $region61: #{gnconv_forward.4} parent=27 // pred_fallthru
        _
    $region28: #{gnconv_forward.4} parent=5 // pred_fallthru
      _
    %p1245 = scmp.le.s32.totalorder 2, %s9
    // Predicated region
    $region62: #{gnconv_forward.4} parent=5 // pred_check
      %p1246 = pneg %p1245
    $region63: #{gnconv_forward.4} parent=5 // pred_check_branch
      %1248 = sbr.rel (%p1246) target = $region65
    $region64: #{gnconv_forward.4} parent=5 // pred_region
      %s1249 = ssub.s32 %s9, 2
      // Predicated region
      $region66: #{gnconv_forward.4} parent=64 // pred_check
        %p1250 = pneg %p113
      $region67: #{gnconv_forward.4} parent=64 // pred_check_branch
        %1252 = sbr.rel (%p1250) target = $region69
      $region68: #{gnconv_forward.4} parent=64 // pred_region
        %s1253 = smul.u32 8, %s23
        %p1254 = scmp.lt.s32.totalorder %s22, 1
        %s1255 = scalar_select %p1254, %s22, 1
        %p1256 = scmp.lt.s32.totalorder %s1253, 15
        %s1257 = scalar_select %p1256, %s1253, 15
        %p1258 = scmp.lt.s32.totalorder %s24, 0
        %s1259 = scalar_select %p1258, %s24, 0
        %s1260 = smul.addr %s1257, 2
        %s1261 = sadd.s32 %s1259, %s1260
        %s1262 = smul.addr %s1255, 32
        %s1263 = sadd.s32 %s1261, %s1262
        %s1264 = smul.addr %s1263, 8
        %s1265 = scalar_lea.vmem %s3, %s1264
      $region69: #{gnconv_forward.4} parent=64 // pred_fallthru
        _
    $region65: #{gnconv_forward.4} parent=5 // pred_fallthru
      _
  $region6: #{gnconv_forward.4} parent=0 // loop_footer
    %s13 = sadd.s32 1, %s9
  $region7: #{gnconv_forward.4} parent=0 // loop_footer_branch
    %8 = sbr.rel target = $region3
  $region8: #{gnconv_forward.4} parent=0 // loop_exit
    _
  %1266 = vsyncmov [#allocation4]
  %s1267 = vpop.sfrf %1266
  %p1268 = scmp.eq.s32.totalorder %s1267, 0
  %p1269 = pneg %p1268
  %1271 = shalt.err (%p1269)

</llo_original>
